<compile_context>
chip_gen: v7x
topology: tpu7x:2x2x1
jax: 0.10.0
libtpu: 0.0.40
codegen_flags: <defaults>
</compile_context>

<pallas_src>
import jax
import jax.numpy as jnp
from jax.experimental import pallas as pl
from jax.experimental.pallas import tpu as pltpu

# ---- model hyperparameters (small, consistent with the module) -------------
NUM_LAYERS = 2
D_MODEL    = 32
NUM_HEADS  = 4
D_FF       = 64
EPS        = 1e-6          # LayerNorm eps (added to std, as in the torch code)
VEC_W      = 3 * D_MODEL   # lane width of the packed per-layer vector slab

# row indices inside the packed per-layer (8, VEC_W) vector slab
_ROW_BQKV, _ROW_BO, _ROW_B1, _ROW_B2, _ROW_G1, _ROW_BE1, _ROW_G2, _ROW_BE2 = range(8)


# ----------------------------- in-kernel helpers -----------------------------
def _layer_norm_kernel(x, gamma, beta):
    # matches torch reference: unbiased std (ddof=1), eps added to std.
    mean = jnp.mean(x, axis=-1, keepdims=True)
    d = x - mean
    var = jnp.sum(d * d, axis=-1, keepdims=True) / (x.shape[-1] - 1)
    inv = pl.reciprocal(jnp.sqrt(var) + EPS, approx=True)
    return gamma * (d * inv) + beta


# --------------------------------- wrapper ------------------------------------
def encoder_forward(x, wqkv_all, wo_all, w1_all, w2_all, vecs_all, fin):
    """x: (B, S, D) f32.  Weight slabs already bf16 (except vecs/fin, f32)."""
    B, S, D = x.shape
    L = wqkv_all.shape[0]
    H = NUM_HEADS
    dk = D // H
    F = w1_all.shape[-1]
    scale = 1.0 / float(jnp.sqrt(jnp.float32(dk)))

    def kernel(x_ref, wqkv_ref, wo_ref, w1_ref, w2_ref, vec_ref, fin_ref,
               out_ref, attn_ref):
        xcur = x_ref[...]                               # (B*S, D) f32
        p_slabs = []                                    # per-(l,b) (S, H*S)

        for l in range(L):                              # static, unrolled
            wqkv = wqkv_ref[l]                          # bf16 (D, 3D) fused Q|K|V
            wo   = wo_ref[l]                            # bf16 (D, D)
            w1   = w1_ref[l]                            # bf16 (D, F)
            w2   = w2_ref[l]                            # bf16 (F, D)

            vl   = vec_ref[l]                           # (8, VEC_W) packed f32
            bqkv = vl[_ROW_BQKV:_ROW_BQKV + 1, :]       # (1, 3D)
            bo   = vl[_ROW_BO:_ROW_BO + 1, :D]
            b1   = vl[_ROW_B1:_ROW_B1 + 1, :F]
            b2   = vl[_ROW_B2:_ROW_B2 + 1, :D]
            g1   = vl[_ROW_G1:_ROW_G1 + 1, :D]
            be1  = vl[_ROW_BE1:_ROW_BE1 + 1, :D]
            g2   = vl[_ROW_G2:_ROW_G2 + 1, :D]
            be2  = vl[_ROW_BE2:_ROW_BE2 + 1, :D]

            # ---- fused QKV projection for the whole (B*S, D) slab -----------
            qkv = jnp.dot(xcur.astype(jnp.bfloat16), wqkv,
                          preferred_element_type=jnp.float32) + bqkv
            qkv_b = qkv.astype(jnp.bfloat16)            # one cast for q,k,v
            q = qkv_b[:, 0:D]
            k = qkv_b[:, D:2 * D]
            v = qkv_b[:, 2 * D:3 * D]

            # ---- multi-head self-attention (mask=None path) ------------------
            ctx_parts = []
            for b in range(B):                          # tiny static loops
                r0, r1 = b * S, (b + 1) * S
                p_heads = []
                ctx_heads = []
                for h in range(H):
                    c0, c1 = h * dk, (h + 1) * dk
                    qh = q[r0:r1, c0:c1]
                    kh = k[r0:r1, c0:c1]
                    vh = v[r0:r1, c0:c1]
                    # transpose folded into the MXU operand feed
                    s = jax.lax.dot_general(
                        qh, kh,
                        dimension_numbers=(((1,), (1,)), ((), ())),
                        preferred_element_type=jnp.float32) * scale
                    s = s - jnp.max(s, axis=-1, keepdims=True)
                    e = jnp.exp(s)
                    p = e * pl.reciprocal(jnp.sum(e, axis=-1, keepdims=True),
                                          approx=True)
                    p_heads.append(p)
                    ctx_heads.append(jnp.dot(p.astype(jnp.bfloat16), vh,
                                             preferred_element_type=jnp.float32))
                p_slabs.append(jnp.concatenate(p_heads, axis=-1))   # (S, H*S)
                ctx_parts.append(jnp.concatenate(ctx_heads, axis=-1))

            ctx = jnp.concatenate(ctx_parts, axis=0)                 # (B*S, D)

            attn_out = jnp.dot(ctx.astype(jnp.bfloat16), wo,
                               preferred_element_type=jnp.float32) + bo

            # ---- residual + LayerNorm 1 (dropout == identity) ----------------
            y1 = _layer_norm_kernel(xcur + attn_out, g1, be1)

            # ---- position-wise feed-forward ----------------------------------
            h1 = jnp.maximum(
                jnp.dot(y1.astype(jnp.bfloat16), w1,
                        preferred_element_type=jnp.float32) + b1, 0.0)
            ff = jnp.dot(h1.astype(jnp.bfloat16), w2,
                         preferred_element_type=jnp.float32) + b2

            # ---- residual + LayerNorm 2 --------------------------------------
            xcur = _layer_norm_kernel(y1 + ff, g2, be2)

        # ---- final encoder LayerNorm on the whole slab ------------------------
        out_ref[...] = _layer_norm_kernel(xcur, fin_ref[0:1, :], fin_ref[1:2, :])

        # one lane-dense (S, L*B*H*S) store for all attention probabilities
        attn_ref[...] = jnp.concatenate(p_slabs, axis=-1)

    # ---- pallas_call plumbing --------------------------------------------------
    def full_spec(a):
        n = a.ndim
        return pl.BlockSpec(a.shape, lambda i, n=n: (0,) * n)

    x2d = x.reshape(B * S, D)
    args = (x2d, wqkv_all, wo_all, w1_all, w2_all, vecs_all, fin)
    in_specs = [full_spec(a) for a in args]

    out_shape = (jax.ShapeDtypeStruct((B * S, D), jnp.float32),
                 jax.ShapeDtypeStruct((S, L * B * H * S), jnp.float32))
    out_specs = (pl.BlockSpec((B * S, D), lambda i: (0, 0)),
                 pl.BlockSpec((S, L * B * H * S), lambda i: (0, 0)))

    # advisory cost estimate so XLA doesn't mis-schedule around the custom call
    flops = (2 * L * B * S * D * (3 * D + D + 2 * F)      # QKV, Wo, FFN
             + 4 * L * B * H * S * S * dk                 # scores + context
             + 12 * L * B * S * D)                        # LN / residual-ish
    transcendentals = L * B * H * S * S + 3 * (L * 2 + 1) * B * S
    bytes_accessed = (x2d.size * 4 + wqkv_all.size * 2 + wo_all.size * 2
                      + w1_all.size * 2 + w2_all.size * 2 + vecs_all.size * 4
                      + fin.size * 4 + B * S * D * 4 + S * L * B * H * S * 4)

    out2d, attn_packed = pl.pallas_call(
        kernel,
        out_shape=out_shape,
        grid_spec=pltpu.PrefetchScalarGridSpec(
            num_scalar_prefetch=0,
            grid=(1,),                 # collapsed grid: whole Encoder, one step
            in_specs=in_specs,
            out_specs=out_specs),
        compiler_params=pltpu.CompilerParams(
            dimension_semantics=("arbitrary",)),
        cost_estimate=pl.CostEstimate(flops=flops,
                                      transcendentals=transcendentals,
                                      bytes_accessed=bytes_accessed),
    )(*args)

    out = out2d.reshape(B, S, D)
    # (S_q, L*B*H*S_k) -> (L, B, H, S_q, S_k)
    attn = attn_packed.reshape(S, L, B, H, S).transpose(1, 2, 3, 0, 4)
    return out, [attn[i] for i in range(L)]


# ------------------------- parameter packing helpers --------------------------
def pack_layer_params(p):
    """Pack one layer: fused bf16 QKV weight, bf16 Wo/W1/W2, (8, VEC_W) f32 slab."""
    wqkv = jnp.concatenate([p["wq"], p["wk"], p["wv"]], axis=1)      # (D, 3D)

    def row(v):
        v = v.reshape(-1)
        return jnp.pad(v, (0, VEC_W - v.shape[0]))

    rows = [jnp.concatenate([p["bq"], p["bk"], p["bv"]]),
            p["bo"], p["b1"], p["b2"],
            p["g1"], p["be1"], p["g2"], p["be2"]]
    vec = jnp.stack([row(r) for r in rows])                          # (8, VEC_W)
    return (wqkv.astype(jnp.bfloat16), p["wo"].astype(jnp.bfloat16),
            p["w1"].astype(jnp.bfloat16), p["w2"].astype(jnp.bfloat16), vec)


# ---------------------------- reference (plain JAX) ----------------------------
def _layer_norm_ref(x, gamma, beta):
    mean = jnp.mean(x, axis=-1, keepdims=True)
    d = x - mean
    var = jnp.sum(d * d, axis=-1, keepdims=True) / (x.shape[-1] - 1)
    return gamma * (d / (jnp.sqrt(var) + EPS)) + beta


def encoder_layer_ref(x, p):
    B, S, D = x.shape
    H, dk = NUM_HEADS, D // NUM_HEADS

    def lin(a, w, b):
        return jnp.einsum("bsd,df->bsf", a, w, precision="highest") + b

    q = lin(x, p["wq"], p["bq"]).reshape(B, S, H, dk).transpose(0, 2, 1, 3)
    k = lin(x, p["wk"], p["bk"]).reshape(B, S, H, dk).transpose(0, 2, 1, 3)
    v = lin(x, p["wv"], p["bv"]).reshape(B, S, H, dk).transpose(0, 2, 1, 3)
    s = jnp.einsum("bhqd,bhkd->bhqk", q, k,
                   precision="highest") / jnp.sqrt(jnp.float32(dk))
    attn = jax.nn.softmax(s, axis=-1)
    ctx = jnp.einsum("bhqk,bhkd->bhqd", attn, v, precision="highest")
    ctx = ctx.transpose(0, 2, 1, 3).reshape(B, S, D)
    y1 = _layer_norm_ref(x + lin(ctx, p["wo"], p["bo"]), p["g1"], p["be1"])
    h1 = jnp.maximum(lin(y1, p["w1"], p["b1"]), 0.0)
    y2 = _layer_norm_ref(y1 + lin(h1, p["w2"], p["b2"]), p["g2"], p["be2"])
    return y2, attn


def encoder_ref(x, layer_params, fin_gamma, fin_beta):
    attns = []
    for p in layer_params:
        x, a = encoder_layer_ref(x, p)
        attns.append(a)
    return _layer_norm_ref(x, fin_gamma, fin_beta), attns


# ----------------------------------- main --------------------------------------
if __name__ == "__main__":
    D, F, L = D_MODEL, D_FF, NUM_LAYERS
    B, S = 2, 8

    key = jax.random.PRNGKey(0)
    keys = jax.random.split(key, L * 12 + 1)

    def w(k, shape, scale=0.1):
        return (scale * jax.random.normal(k, shape)).astype(jnp.float32)

    layer_params = []
    ki = 0
    for _ in range(L):
        p = {
            "wq": w(keys[ki + 0], (D, D)), "bq": w(keys[ki + 1], (D,)),
            "wk": w(keys[ki + 2], (D, D)), "bk": w(keys[ki + 3], (D,)),
            "wv": w(keys[ki + 4], (D, D)), "bv": w(keys[ki + 5], (D,)),
            "wo": w(keys[ki + 6], (D, D)), "bo": w(keys[ki + 7], (D,)),
            "w1": w(keys[ki + 8], (D, F)), "b1": w(keys[ki + 9], (F,)),
            "w2": w(keys[ki + 10], (F, D)), "b2": w(keys[ki + 11], (D,)),
            "g1": jnp.ones((D,), jnp.float32), "be1": jnp.zeros((D,), jnp.float32),
            "g2": jnp.ones((D,), jnp.float32), "be2": jnp.zeros((D,), jnp.float32),
        }
        layer_params.append(p)
        ki += 12

    x = jax.random.normal(keys[-1], (B, S, D), dtype=jnp.float32)

    packed = [pack_layer_params(p) for p in layer_params]
    wqkv_all = jnp.stack([t[0] for t in packed])      # (L, D, 3D)  bf16
    wo_all   = jnp.stack([t[1] for t in packed])      # (L, D, D)   bf16
    w1_all   = jnp.stack([t[2] for t in packed])      # (L, D, F)   bf16
    w2_all   = jnp.stack([t[3] for t in packed])      # (L, F, D)   bf16
    vecs_all = jnp.stack([t[4] for t in packed])      # (L, 8, VEC_W) f32

    fin_gamma = jnp.ones((D,), jnp.float32)
    fin_beta  = jnp.zeros((D,), jnp.float32)
    fin = jnp.stack([fin_gamma, fin_beta])            # (2, D)

    out, attn_list = encoder_forward(x, wqkv_all, wo_all, w1_all, w2_all,
                                     vecs_all, fin)
    out = jax.block_until_ready(out)
    attn_list = [jax.block_until_ready(a) for a in attn_list]

    ref_out, ref_attns = encoder_ref(x, layer_params, fin_gamma, fin_beta)

    assert out.shape == (B, S, D)
    assert len(attn_list) == L and attn_list[0].shape == (B, NUM_HEADS, S, S)
    # bf16 MXU operands (f32 accumulation) introduce ~1e-3 drift vs the f32 ref.
    assert jnp.allclose(out, ref_out, atol=2e-2, rtol=2e-2)
    for a, ra in zip(attn_list, ref_attns):
        assert jnp.allclose(a, ra, atol=2e-2, rtol=2e-2)

    print("KERNEL_OK")
</pallas_src>

<mosaic_0001>
module attributes {stable_mosaic.version = 11 : i64} {
  func.func @kernel(%arg0: i32, %arg1: memref<16x32xf32, #tpu.memory_space<vmem>>, %arg2: memref<2x32x96xbf16, #tpu.memory_space<vmem>>, %arg3: memref<2x32x32xbf16, #tpu.memory_space<vmem>>, %arg4: memref<2x32x64xbf16, #tpu.memory_space<vmem>>, %arg5: memref<2x64x32xbf16, #tpu.memory_space<vmem>>, %arg6: memref<2x8x96xf32, #tpu.memory_space<vmem>>, %arg7: memref<2x32xf32, #tpu.memory_space<vmem>>, %arg8: memref<16x32xf32, #tpu.memory_space<vmem>>, %arg9: memref<8x128xf32, #tpu.memory_space<vmem>>) attributes {dimension_semantics = [#tpu.dimension_semantics<arbitrary>], iteration_bounds = array<i64: 1>, scalar_prefetch = 0 : i64, scratch_operands = 0 : i64, tpu.core_type = #tpu.core_type<tc>, window_params = [{pipeline_mode = #tpu.pipeline_mode<synchronous>, transform_indices = @transform_0, window_bounds = array<i64: 16, 32>}, {pipeline_mode = #tpu.pipeline_mode<synchronous>, transform_indices = @transform_1, window_bounds = array<i64: 2, 32, 96>}, {pipeline_mode = #tpu.pipeline_mode<synchronous>, transform_indices = @transform_2, window_bounds = array<i64: 2, 32, 32>}, {pipeline_mode = #tpu.pipeline_mode<synchronous>, transform_indices = @transform_3, window_bounds = array<i64: 2, 32, 64>}, {pipeline_mode = #tpu.pipeline_mode<synchronous>, transform_indices = @transform_4, window_bounds = array<i64: 2, 64, 32>}, {pipeline_mode = #tpu.pipeline_mode<synchronous>, transform_indices = @transform_5, window_bounds = array<i64: 2, 8, 96>}, {pipeline_mode = #tpu.pipeline_mode<synchronous>, transform_indices = @transform_6, window_bounds = array<i64: 2, 32>}, {pipeline_mode = #tpu.pipeline_mode<synchronous>, transform_indices = @transform_7, window_bounds = array<i64: 16, 32>}, {pipeline_mode = #tpu.pipeline_mode<synchronous>, transform_indices = @transform_8, window_bounds = array<i64: 8, 128>}]} {
    %c0 = arith.constant 0 : index
    %c0_0 = arith.constant 0 : index
    %0 = vector.load %arg1[%c0, %c0_0] : memref<16x32xf32, #tpu.memory_space<vmem>>, vector<16x32xf32>
    %c0_1 = arith.constant 0 : index
    %c0_2 = arith.constant 0 : index
    %c0_3 = arith.constant 0 : index
    %1 = vector.load %arg2[%c0_1, %c0_2, %c0_3] : memref<2x32x96xbf16, #tpu.memory_space<vmem>>, vector<1x32x96xbf16>
    %2 = vector.shape_cast %1 : vector<1x32x96xbf16> to vector<32x96xbf16>
    %c0_4 = arith.constant 0 : index
    %c0_5 = arith.constant 0 : index
    %c0_6 = arith.constant 0 : index
    %3 = vector.load %arg3[%c0_4, %c0_5, %c0_6] : memref<2x32x32xbf16, #tpu.memory_space<vmem>>, vector<1x32x32xbf16>
    %4 = vector.shape_cast %3 : vector<1x32x32xbf16> to vector<32x32xbf16>
    %c0_7 = arith.constant 0 : index
    %c0_8 = arith.constant 0 : index
    %c0_9 = arith.constant 0 : index
    %5 = vector.load %arg4[%c0_7, %c0_8, %c0_9] : memref<2x32x64xbf16, #tpu.memory_space<vmem>>, vector<1x32x64xbf16>
    %6 = vector.shape_cast %5 : vector<1x32x64xbf16> to vector<32x64xbf16>
    %c0_10 = arith.constant 0 : index
    %c0_11 = arith.constant 0 : index
    %c0_12 = arith.constant 0 : index
    %7 = vector.load %arg5[%c0_10, %c0_11, %c0_12] : memref<2x64x32xbf16, #tpu.memory_space<vmem>>, vector<1x64x32xbf16>
    %8 = vector.shape_cast %7 : vector<1x64x32xbf16> to vector<64x32xbf16>
    %c0_13 = arith.constant 0 : index
    %c0_14 = arith.constant 0 : index
    %c0_15 = arith.constant 0 : index
    %9 = vector.load %arg6[%c0_13, %c0_14, %c0_15] : memref<2x8x96xf32, #tpu.memory_space<vmem>>, vector<1x8x96xf32>
    %10 = vector.shape_cast %9 : vector<1x8x96xf32> to vector<8x96xf32>
    %11 = vector.extract_strided_slice %10 {offsets = [0, 0], sizes = [1, 96], strides = [1, 1]} : vector<8x96xf32> to vector<1x96xf32>
    %12 = vector.extract_strided_slice %10 {offsets = [1, 0], sizes = [1, 32], strides = [1, 1]} : vector<8x96xf32> to vector<1x32xf32>
    %13 = vector.extract_strided_slice %10 {offsets = [2, 0], sizes = [1, 64], strides = [1, 1]} : vector<8x96xf32> to vector<1x64xf32>
    %14 = vector.extract_strided_slice %10 {offsets = [3, 0], sizes = [1, 32], strides = [1, 1]} : vector<8x96xf32> to vector<1x32xf32>
    %15 = vector.extract_strided_slice %10 {offsets = [4, 0], sizes = [1, 32], strides = [1, 1]} : vector<8x96xf32> to vector<1x32xf32>
    %16 = vector.extract_strided_slice %10 {offsets = [5, 0], sizes = [1, 32], strides = [1, 1]} : vector<8x96xf32> to vector<1x32xf32>
    %17 = vector.extract_strided_slice %10 {offsets = [6, 0], sizes = [1, 32], strides = [1, 1]} : vector<8x96xf32> to vector<1x32xf32>
    %18 = vector.extract_strided_slice %10 {offsets = [7, 0], sizes = [1, 32], strides = [1, 1]} : vector<8x96xf32> to vector<1x32xf32>
    %19 = arith.truncf %0 : vector<16x32xf32> to vector<16x32xbf16>
    %cst = arith.constant dense<0.000000e+00> : vector<16x96xf32>
    %20 = tpu.matmul %19, %2, %cst {dimension_numbers = #tpu.dot_dimension_numbers<[1], [0], [0], [1], [0, 0, 1, 1], [], []>} : vector<16x32xbf16>, vector<32x96xbf16>, vector<16x96xf32> -> vector<16x96xf32>
    %21 = vector.broadcast %11 : vector<1x96xf32> to vector<16x96xf32>
    %22 = arith.addf %20, %21 : vector<16x96xf32>
    %23 = arith.truncf %22 : vector<16x96xf32> to vector<16x96xbf16>
    %24 = vector.extract_strided_slice %23 {offsets = [0, 0], sizes = [16, 32], strides = [1, 1]} : vector<16x96xbf16> to vector<16x32xbf16>
    %25 = vector.extract_strided_slice %23 {offsets = [0, 32], sizes = [16, 32], strides = [1, 1]} : vector<16x96xbf16> to vector<16x32xbf16>
    %26 = vector.extract_strided_slice %23 {offsets = [0, 64], sizes = [16, 32], strides = [1, 1]} : vector<16x96xbf16> to vector<16x32xbf16>
    %27 = vector.extract_strided_slice %24 {offsets = [0, 0], sizes = [8, 8], strides = [1, 1]} : vector<16x32xbf16> to vector<8x8xbf16>
    %28 = vector.extract_strided_slice %25 {offsets = [0, 0], sizes = [8, 8], strides = [1, 1]} : vector<16x32xbf16> to vector<8x8xbf16>
    %29 = vector.extract_strided_slice %26 {offsets = [0, 0], sizes = [8, 8], strides = [1, 1]} : vector<16x32xbf16> to vector<8x8xbf16>
    %cst_16 = arith.constant dense<0.000000e+00> : vector<8x8xf32>
    %30 = tpu.matmul %27, %28, %cst_16 {dimension_numbers = #tpu.dot_dimension_numbers<[1], [1], [0], [0], [0, 0, 1, 0], [], []>} : vector<8x8xbf16>, vector<8x8xbf16>, vector<8x8xf32> -> vector<8x8xf32>
    %cst_17 = arith.constant 0.353553385 : f32
    %31 = vector.broadcast %cst_17 : f32 to vector<8x8xf32>
    %32 = arith.mulf %30, %31 : vector<8x8xf32>
    %cst_18 = arith.constant dense<0xFF800000> : vector<8xf32>
    %33 = vector.multi_reduction <maximumf>, %32, %cst_18 [1] : vector<8x8xf32> to vector<8xf32>
    %34 = vector.shape_cast %33 : vector<8xf32> to vector<8x1xf32>
    %35 = vector.broadcast %34 : vector<8x1xf32> to vector<8x8xf32>
    %36 = arith.subf %32, %35 : vector<8x8xf32>
    %37 = math.exp %36 : vector<8x8xf32>
    %cst_19 = arith.constant dense<0.000000e+00> : vector<8xf32>
    %38 = vector.multi_reduction <add>, %37, %cst_19 [1] : vector<8x8xf32> to vector<8xf32>
    %39 = vector.shape_cast %38 : vector<8xf32> to vector<8x1xf32>
    %40 = tpu.reciprocal %39 {approx = true} : vector<8x1xf32> -> vector<8x1xf32>
    %41 = vector.broadcast %40 : vector<8x1xf32> to vector<8x8xf32>
    %42 = arith.mulf %37, %41 : vector<8x8xf32>
    %43 = arith.truncf %42 : vector<8x8xf32> to vector<8x8xbf16>
    %cst_20 = arith.constant dense<0.000000e+00> : vector<8x8xf32>
    %44 = tpu.matmul %43, %29, %cst_20 {dimension_numbers = #tpu.dot_dimension_numbers<[1], [0], [0], [1], [0, 0, 1, 1], [], []>} : vector<8x8xbf16>, vector<8x8xbf16>, vector<8x8xf32> -> vector<8x8xf32>
    %45 = vector.extract_strided_slice %24 {offsets = [0, 8], sizes = [8, 8], strides = [1, 1]} : vector<16x32xbf16> to vector<8x8xbf16>
    %46 = vector.extract_strided_slice %25 {offsets = [0, 8], sizes = [8, 8], strides = [1, 1]} : vector<16x32xbf16> to vector<8x8xbf16>
    %47 = vector.extract_strided_slice %26 {offsets = [0, 8], sizes = [8, 8], strides = [1, 1]} : vector<16x32xbf16> to vector<8x8xbf16>
    %cst_21 = arith.constant dense<0.000000e+00> : vector<8x8xf32>
    %48 = tpu.matmul %45, %46, %cst_21 {dimension_numbers = #tpu.dot_dimension_numbers<[1], [1], [0], [0], [0, 0, 1, 0], [], []>} : vector<8x8xbf16>, vector<8x8xbf16>, vector<8x8xf32> -> vector<8x8xf32>
    %cst_22 = arith.constant 0.353553385 : f32
    %49 = vector.broadcast %cst_22 : f32 to vector<8x8xf32>
    %50 = arith.mulf %48, %49 : vector<8x8xf32>
    %cst_23 = arith.constant dense<0xFF800000> : vector<8xf32>
    %51 = vector.multi_reduction <maximumf>, %50, %cst_23 [1] : vector<8x8xf32> to vector<8xf32>
    %52 = vector.shape_cast %51 : vector<8xf32> to vector<8x1xf32>
    %53 = vector.broadcast %52 : vector<8x1xf32> to vector<8x8xf32>
    %54 = arith.subf %50, %53 : vector<8x8xf32>
    %55 = math.exp %54 : vector<8x8xf32>
    %cst_24 = arith.constant dense<0.000000e+00> : vector<8xf32>
    %56 = vector.multi_reduction <add>, %55, %cst_24 [1] : vector<8x8xf32> to vector<8xf32>
    %57 = vector.shape_cast %56 : vector<8xf32> to vector<8x1xf32>
    %58 = tpu.reciprocal %57 {approx = true} : vector<8x1xf32> -> vector<8x1xf32>
    %59 = vector.broadcast %58 : vector<8x1xf32> to vector<8x8xf32>
    %60 = arith.mulf %55, %59 : vector<8x8xf32>
    %61 = arith.truncf %60 : vector<8x8xf32> to vector<8x8xbf16>
    %cst_25 = arith.constant dense<0.000000e+00> : vector<8x8xf32>
    %62 = tpu.matmul %61, %47, %cst_25 {dimension_numbers = #tpu.dot_dimension_numbers<[1], [0], [0], [1], [0, 0, 1, 1], [], []>} : vector<8x8xbf16>, vector<8x8xbf16>, vector<8x8xf32> -> vector<8x8xf32>
    %63 = vector.extract_strided_slice %24 {offsets = [0, 16], sizes = [8, 8], strides = [1, 1]} : vector<16x32xbf16> to vector<8x8xbf16>
    %64 = vector.extract_strided_slice %25 {offsets = [0, 16], sizes = [8, 8], strides = [1, 1]} : vector<16x32xbf16> to vector<8x8xbf16>
    %65 = vector.extract_strided_slice %26 {offsets = [0, 16], sizes = [8, 8], strides = [1, 1]} : vector<16x32xbf16> to vector<8x8xbf16>
    %cst_26 = arith.constant dense<0.000000e+00> : vector<8x8xf32>
    %66 = tpu.matmul %63, %64, %cst_26 {dimension_numbers = #tpu.dot_dimension_numbers<[1], [1], [0], [0], [0, 0, 1, 0], [], []>} : vector<8x8xbf16>, vector<8x8xbf16>, vector<8x8xf32> -> vector<8x8xf32>
    %cst_27 = arith.constant 0.353553385 : f32
    %67 = vector.broadcast %cst_27 : f32 to vector<8x8xf32>
    %68 = arith.mulf %66, %67 : vector<8x8xf32>
    %cst_28 = arith.constant dense<0xFF800000> : vector<8xf32>
    %69 = vector.multi_reduction <maximumf>, %68, %cst_28 [1] : vector<8x8xf32> to vector<8xf32>
    %70 = vector.shape_cast %69 : vector<8xf32> to vector<8x1xf32>
    %71 = vector.broadcast %70 : vector<8x1xf32> to vector<8x8xf32>
    %72 = arith.subf %68, %71 : vector<8x8xf32>
    %73 = math.exp %72 : vector<8x8xf32>
    %cst_29 = arith.constant dense<0.000000e+00> : vector<8xf32>
    %74 = vector.multi_reduction <add>, %73, %cst_29 [1] : vector<8x8xf32> to vector<8xf32>
    %75 = vector.shape_cast %74 : vector<8xf32> to vector<8x1xf32>
    %76 = tpu.reciprocal %75 {approx = true} : vector<8x1xf32> -> vector<8x1xf32>
    %77 = vector.broadcast %76 : vector<8x1xf32> to vector<8x8xf32>
    %78 = arith.mulf %73, %77 : vector<8x8xf32>
    %79 = arith.truncf %78 : vector<8x8xf32> to vector<8x8xbf16>
    %cst_30 = arith.constant dense<0.000000e+00> : vector<8x8xf32>
    %80 = tpu.matmul %79, %65, %cst_30 {dimension_numbers = #tpu.dot_dimension_numbers<[1], [0], [0], [1], [0, 0, 1, 1], [], []>} : vector<8x8xbf16>, vector<8x8xbf16>, vector<8x8xf32> -> vector<8x8xf32>
    %81 = vector.extract_strided_slice %24 {offsets = [0, 24], sizes = [8, 8], strides = [1, 1]} : vector<16x32xbf16> to vector<8x8xbf16>
    %82 = vector.extract_strided_slice %25 {offsets = [0, 24], sizes = [8, 8], strides = [1, 1]} : vector<16x32xbf16> to vector<8x8xbf16>
    %83 = vector.extract_strided_slice %26 {offsets = [0, 24], sizes = [8, 8], strides = [1, 1]} : vector<16x32xbf16> to vector<8x8xbf16>
    %cst_31 = arith.constant dense<0.000000e+00> : vector<8x8xf32>
    %84 = tpu.matmul %81, %82, %cst_31 {dimension_numbers = #tpu.dot_dimension_numbers<[1], [1], [0], [0], [0, 0, 1, 0], [], []>} : vector<8x8xbf16>, vector<8x8xbf16>, vector<8x8xf32> -> vector<8x8xf32>
    %cst_32 = arith.constant 0.353553385 : f32
    %85 = vector.broadcast %cst_32 : f32 to vector<8x8xf32>
    %86 = arith.mulf %84, %85 : vector<8x8xf32>
    %cst_33 = arith.constant dense<0xFF800000> : vector<8xf32>
    %87 = vector.multi_reduction <maximumf>, %86, %cst_33 [1] : vector<8x8xf32> to vector<8xf32>
    %88 = vector.shape_cast %87 : vector<8xf32> to vector<8x1xf32>
    %89 = vector.broadcast %88 : vector<8x1xf32> to vector<8x8xf32>
    %90 = arith.subf %86, %89 : vector<8x8xf32>
    %91 = math.exp %90 : vector<8x8xf32>
    %cst_34 = arith.constant dense<0.000000e+00> : vector<8xf32>
    %92 = vector.multi_reduction <add>, %91, %cst_34 [1] : vector<8x8xf32> to vector<8xf32>
    %93 = vector.shape_cast %92 : vector<8xf32> to vector<8x1xf32>
    %94 = tpu.reciprocal %93 {approx = true} : vector<8x1xf32> -> vector<8x1xf32>
    %95 = vector.broadcast %94 : vector<8x1xf32> to vector<8x8xf32>
    %96 = arith.mulf %91, %95 : vector<8x8xf32>
    %97 = arith.truncf %96 : vector<8x8xf32> to vector<8x8xbf16>
    %cst_35 = arith.constant dense<0.000000e+00> : vector<8x8xf32>
    %98 = tpu.matmul %97, %83, %cst_35 {dimension_numbers = #tpu.dot_dimension_numbers<[1], [0], [0], [1], [0, 0, 1, 1], [], []>} : vector<8x8xbf16>, vector<8x8xbf16>, vector<8x8xf32> -> vector<8x8xf32>
    %99 = tpu.concatenate %42, %60, %78, %96 in 1 : vector<8x8xf32>, vector<8x8xf32>, vector<8x8xf32>, vector<8x8xf32> -> vector<8x32xf32>
    %100 = tpu.concatenate %44, %62, %80, %98 in 1 : vector<8x8xf32>, vector<8x8xf32>, vector<8x8xf32>, vector<8x8xf32> -> vector<8x32xf32>
    %101 = vector.extract_strided_slice %24 {offsets = [8, 0], sizes = [8, 8], strides = [1, 1]} : vector<16x32xbf16> to vector<8x8xbf16>
    %102 = vector.extract_strided_slice %25 {offsets = [8, 0], sizes = [8, 8], strides = [1, 1]} : vector<16x32xbf16> to vector<8x8xbf16>
    %103 = vector.extract_strided_slice %26 {offsets = [8, 0], sizes = [8, 8], strides = [1, 1]} : vector<16x32xbf16> to vector<8x8xbf16>
    %cst_36 = arith.constant dense<0.000000e+00> : vector<8x8xf32>
    %104 = tpu.matmul %101, %102, %cst_36 {dimension_numbers = #tpu.dot_dimension_numbers<[1], [1], [0], [0], [0, 0, 1, 0], [], []>} : vector<8x8xbf16>, vector<8x8xbf16>, vector<8x8xf32> -> vector<8x8xf32>
    %cst_37 = arith.constant 0.353553385 : f32
    %105 = vector.broadcast %cst_37 : f32 to vector<8x8xf32>
    %106 = arith.mulf %104, %105 : vector<8x8xf32>
    %cst_38 = arith.constant dense<0xFF800000> : vector<8xf32>
    %107 = vector.multi_reduction <maximumf>, %106, %cst_38 [1] : vector<8x8xf32> to vector<8xf32>
    %108 = vector.shape_cast %107 : vector<8xf32> to vector<8x1xf32>
    %109 = vector.broadcast %108 : vector<8x1xf32> to vector<8x8xf32>
    %110 = arith.subf %106, %109 : vector<8x8xf32>
    %111 = math.exp %110 : vector<8x8xf32>
    %cst_39 = arith.constant dense<0.000000e+00> : vector<8xf32>
    %112 = vector.multi_reduction <add>, %111, %cst_39 [1] : vector<8x8xf32> to vector<8xf32>
    %113 = vector.shape_cast %112 : vector<8xf32> to vector<8x1xf32>
    %114 = tpu.reciprocal %113 {approx = true} : vector<8x1xf32> -> vector<8x1xf32>
    %115 = vector.broadcast %114 : vector<8x1xf32> to vector<8x8xf32>
    %116 = arith.mulf %111, %115 : vector<8x8xf32>
    %117 = arith.truncf %116 : vector<8x8xf32> to vector<8x8xbf16>
    %cst_40 = arith.constant dense<0.000000e+00> : vector<8x8xf32>
    %118 = tpu.matmul %117, %103, %cst_40 {dimension_numbers = #tpu.dot_dimension_numbers<[1], [0], [0], [1], [0, 0, 1, 1], [], []>} : vector<8x8xbf16>, vector<8x8xbf16>, vector<8x8xf32> -> vector<8x8xf32>
    %119 = vector.extract_strided_slice %24 {offsets = [8, 8], sizes = [8, 8], strides = [1, 1]} : vector<16x32xbf16> to vector<8x8xbf16>
    %120 = vector.extract_strided_slice %25 {offsets = [8, 8], sizes = [8, 8], strides = [1, 1]} : vector<16x32xbf16> to vector<8x8xbf16>
    %121 = vector.extract_strided_slice %26 {offsets = [8, 8], sizes = [8, 8], strides = [1, 1]} : vector<16x32xbf16> to vector<8x8xbf16>
    %cst_41 = arith.constant dense<0.000000e+00> : vector<8x8xf32>
    %122 = tpu.matmul %119, %120, %cst_41 {dimension_numbers = #tpu.dot_dimension_numbers<[1], [1], [0], [0], [0, 0, 1, 0], [], []>} : vector<8x8xbf16>, vector<8x8xbf16>, vector<8x8xf32> -> vector<8x8xf32>
    %cst_42 = arith.constant 0.353553385 : f32
    %123 = vector.broadcast %cst_42 : f32 to vector<8x8xf32>
    %124 = arith.mulf %122, %123 : vector<8x8xf32>
    %cst_43 = arith.constant dense<0xFF800000> : vector<8xf32>
    %125 = vector.multi_reduction <maximumf>, %124, %cst_43 [1] : vector<8x8xf32> to vector<8xf32>
    %126 = vector.shape_cast %125 : vector<8xf32> to vector<8x1xf32>
    %127 = vector.broadcast %126 : vector<8x1xf32> to vector<8x8xf32>
    %128 = arith.subf %124, %127 : vector<8x8xf32>
    %129 = math.exp %128 : vector<8x8xf32>
    %cst_44 = arith.constant dense<0.000000e+00> : vector<8xf32>
    %130 = vector.multi_reduction <add>, %129, %cst_44 [1] : vector<8x8xf32> to vector<8xf32>
    %131 = vector.shape_cast %130 : vector<8xf32> to vector<8x1xf32>
    %132 = tpu.reciprocal %131 {approx = true} : vector<8x1xf32> -> vector<8x1xf32>
    %133 = vector.broadcast %132 : vector<8x1xf32> to vector<8x8xf32>
    %134 = arith.mulf %129, %133 : vector<8x8xf32>
    %135 = arith.truncf %134 : vector<8x8xf32> to vector<8x8xbf16>
    %cst_45 = arith.constant dense<0.000000e+00> : vector<8x8xf32>
    %136 = tpu.matmul %135, %121, %cst_45 {dimension_numbers = #tpu.dot_dimension_numbers<[1], [0], [0], [1], [0, 0, 1, 1], [], []>} : vector<8x8xbf16>, vector<8x8xbf16>, vector<8x8xf32> -> vector<8x8xf32>
    %137 = vector.extract_strided_slice %24 {offsets = [8, 16], sizes = [8, 8], strides = [1, 1]} : vector<16x32xbf16> to vector<8x8xbf16>
    %138 = vector.extract_strided_slice %25 {offsets = [8, 16], sizes = [8, 8], strides = [1, 1]} : vector<16x32xbf16> to vector<8x8xbf16>
    %139 = vector.extract_strided_slice %26 {offsets = [8, 16], sizes = [8, 8], strides = [1, 1]} : vector<16x32xbf16> to vector<8x8xbf16>
    %cst_46 = arith.constant dense<0.000000e+00> : vector<8x8xf32>
    %140 = tpu.matmul %137, %138, %cst_46 {dimension_numbers = #tpu.dot_dimension_numbers<[1], [1], [0], [0], [0, 0, 1, 0], [], []>} : vector<8x8xbf16>, vector<8x8xbf16>, vector<8x8xf32> -> vector<8x8xf32>
    %cst_47 = arith.constant 0.353553385 : f32
    %141 = vector.broadcast %cst_47 : f32 to vector<8x8xf32>
    %142 = arith.mulf %140, %141 : vector<8x8xf32>
    %cst_48 = arith.constant dense<0xFF800000> : vector<8xf32>
    %143 = vector.multi_reduction <maximumf>, %142, %cst_48 [1] : vector<8x8xf32> to vector<8xf32>
    %144 = vector.shape_cast %143 : vector<8xf32> to vector<8x1xf32>
    %145 = vector.broadcast %144 : vector<8x1xf32> to vector<8x8xf32>
    %146 = arith.subf %142, %145 : vector<8x8xf32>
    %147 = math.exp %146 : vector<8x8xf32>
    %cst_49 = arith.constant dense<0.000000e+00> : vector<8xf32>
    %148 = vector.multi_reduction <add>, %147, %cst_49 [1] : vector<8x8xf32> to vector<8xf32>
    %149 = vector.shape_cast %148 : vector<8xf32> to vector<8x1xf32>
    %150 = tpu.reciprocal %149 {approx = true} : vector<8x1xf32> -> vector<8x1xf32>
    %151 = vector.broadcast %150 : vector<8x1xf32> to vector<8x8xf32>
    %152 = arith.mulf %147, %151 : vector<8x8xf32>
    %153 = arith.truncf %152 : vector<8x8xf32> to vector<8x8xbf16>
    %cst_50 = arith.constant dense<0.000000e+00> : vector<8x8xf32>
    %154 = tpu.matmul %153, %139, %cst_50 {dimension_numbers = #tpu.dot_dimension_numbers<[1], [0], [0], [1], [0, 0, 1, 1], [], []>} : vector<8x8xbf16>, vector<8x8xbf16>, vector<8x8xf32> -> vector<8x8xf32>
    %155 = vector.extract_strided_slice %24 {offsets = [8, 24], sizes = [8, 8], strides = [1, 1]} : vector<16x32xbf16> to vector<8x8xbf16>
    %156 = vector.extract_strided_slice %25 {offsets = [8, 24], sizes = [8, 8], strides = [1, 1]} : vector<16x32xbf16> to vector<8x8xbf16>
    %157 = vector.extract_strided_slice %26 {offsets = [8, 24], sizes = [8, 8], strides = [1, 1]} : vector<16x32xbf16> to vector<8x8xbf16>
    %cst_51 = arith.constant dense<0.000000e+00> : vector<8x8xf32>
    %158 = tpu.matmul %155, %156, %cst_51 {dimension_numbers = #tpu.dot_dimension_numbers<[1], [1], [0], [0], [0, 0, 1, 0], [], []>} : vector<8x8xbf16>, vector<8x8xbf16>, vector<8x8xf32> -> vector<8x8xf32>
    %cst_52 = arith.constant 0.353553385 : f32
    %159 = vector.broadcast %cst_52 : f32 to vector<8x8xf32>
    %160 = arith.mulf %158, %159 : vector<8x8xf32>
    %cst_53 = arith.constant dense<0xFF800000> : vector<8xf32>
    %161 = vector.multi_reduction <maximumf>, %160, %cst_53 [1] : vector<8x8xf32> to vector<8xf32>
    %162 = vector.shape_cast %161 : vector<8xf32> to vector<8x1xf32>
    %163 = vector.broadcast %162 : vector<8x1xf32> to vector<8x8xf32>
    %164 = arith.subf %160, %163 : vector<8x8xf32>
    %165 = math.exp %164 : vector<8x8xf32>
    %cst_54 = arith.constant dense<0.000000e+00> : vector<8xf32>
    %166 = vector.multi_reduction <add>, %165, %cst_54 [1] : vector<8x8xf32> to vector<8xf32>
    %167 = vector.shape_cast %166 : vector<8xf32> to vector<8x1xf32>
    %168 = tpu.reciprocal %167 {approx = true} : vector<8x1xf32> -> vector<8x1xf32>
    %169 = vector.broadcast %168 : vector<8x1xf32> to vector<8x8xf32>
    %170 = arith.mulf %165, %169 : vector<8x8xf32>
    %171 = arith.truncf %170 : vector<8x8xf32> to vector<8x8xbf16>
    %cst_55 = arith.constant dense<0.000000e+00> : vector<8x8xf32>
    %172 = tpu.matmul %171, %157, %cst_55 {dimension_numbers = #tpu.dot_dimension_numbers<[1], [0], [0], [1], [0, 0, 1, 1], [], []>} : vector<8x8xbf16>, vector<8x8xbf16>, vector<8x8xf32> -> vector<8x8xf32>
    %173 = tpu.concatenate %116, %134, %152, %170 in 1 : vector<8x8xf32>, vector<8x8xf32>, vector<8x8xf32>, vector<8x8xf32> -> vector<8x32xf32>
    %174 = tpu.concatenate %118, %136, %154, %172 in 1 : vector<8x8xf32>, vector<8x8xf32>, vector<8x8xf32>, vector<8x8xf32> -> vector<8x32xf32>
    %175 = tpu.concatenate %100, %174 in 0 : vector<8x32xf32>, vector<8x32xf32> -> vector<16x32xf32>
    %176 = arith.truncf %175 : vector<16x32xf32> to vector<16x32xbf16>
    %cst_56 = arith.constant dense<0.000000e+00> : vector<16x32xf32>
    %177 = tpu.matmul %176, %4, %cst_56 {dimension_numbers = #tpu.dot_dimension_numbers<[1], [0], [0], [1], [0, 0, 1, 1], [], []>} : vector<16x32xbf16>, vector<32x32xbf16>, vector<16x32xf32> -> vector<16x32xf32>
    %178 = vector.broadcast %12 : vector<1x32xf32> to vector<16x32xf32>
    %179 = arith.addf %177, %178 : vector<16x32xf32>
    %180 = arith.addf %0, %179 : vector<16x32xf32>
    %cst_57 = arith.constant dense<0.000000e+00> : vector<16xf32>
    %181 = vector.multi_reduction <add>, %180, %cst_57 [1] : vector<16x32xf32> to vector<16xf32>
    %182 = vector.shape_cast %181 : vector<16xf32> to vector<16x1xf32>
    %cst_58 = arith.constant 3.200000e+01 : f32
    %183 = vector.broadcast %cst_58 : f32 to vector<16x1xf32>
    %184 = arith.divf %182, %183 : vector<16x1xf32>
    %185 = vector.broadcast %184 : vector<16x1xf32> to vector<16x32xf32>
    %186 = arith.subf %180, %185 : vector<16x32xf32>
    %187 = arith.mulf %186, %186 : vector<16x32xf32>
    %cst_59 = arith.constant dense<0.000000e+00> : vector<16xf32>
    %188 = vector.multi_reduction <add>, %187, %cst_59 [1] : vector<16x32xf32> to vector<16xf32>
    %189 = vector.shape_cast %188 : vector<16xf32> to vector<16x1xf32>
    %cst_60 = arith.constant 3.100000e+01 : f32
    %190 = vector.broadcast %cst_60 : f32 to vector<16x1xf32>
    %191 = arith.divf %189, %190 : vector<16x1xf32>
    %192 = math.sqrt %191 : vector<16x1xf32>
    %cst_61 = arith.constant 9.99999997E-7 : f32
    %193 = vector.broadcast %cst_61 : f32 to vector<16x1xf32>
    %194 = arith.addf %192, %193 : vector<16x1xf32>
    %195 = tpu.reciprocal %194 {approx = true} : vector<16x1xf32> -> vector<16x1xf32>
    %196 = vector.broadcast %195 : vector<16x1xf32> to vector<16x32xf32>
    %197 = arith.mulf %186, %196 : vector<16x32xf32>
    %198 = vector.broadcast %15 : vector<1x32xf32> to vector<16x32xf32>
    %199 = arith.mulf %198, %197 : vector<16x32xf32>
    %200 = vector.broadcast %16 : vector<1x32xf32> to vector<16x32xf32>
    %201 = arith.addf %199, %200 : vector<16x32xf32>
    %202 = arith.truncf %201 : vector<16x32xf32> to vector<16x32xbf16>
    %cst_62 = arith.constant dense<0.000000e+00> : vector<16x64xf32>
    %203 = tpu.matmul %202, %6, %cst_62 {dimension_numbers = #tpu.dot_dimension_numbers<[1], [0], [0], [1], [0, 0, 1, 1], [], []>} : vector<16x32xbf16>, vector<32x64xbf16>, vector<16x64xf32> -> vector<16x64xf32>
    %204 = vector.broadcast %13 : vector<1x64xf32> to vector<16x64xf32>
    %205 = arith.addf %203, %204 : vector<16x64xf32>
    %cst_63 = arith.constant 0.000000e+00 : f32
    %206 = vector.broadcast %cst_63 : f32 to vector<16x64xf32>
    %207 = arith.maximumf %205, %206 : vector<16x64xf32>
    %208 = arith.truncf %207 : vector<16x64xf32> to vector<16x64xbf16>
    %cst_64 = arith.constant dense<0.000000e+00> : vector<16x32xf32>
    %209 = tpu.matmul %208, %8, %cst_64 {dimension_numbers = #tpu.dot_dimension_numbers<[1], [0], [0], [1], [0, 0, 1, 1], [], []>} : vector<16x64xbf16>, vector<64x32xbf16>, vector<16x32xf32> -> vector<16x32xf32>
    %210 = vector.broadcast %14 : vector<1x32xf32> to vector<16x32xf32>
    %211 = arith.addf %209, %210 : vector<16x32xf32>
    %212 = arith.addf %201, %211 : vector<16x32xf32>
    %cst_65 = arith.constant dense<0.000000e+00> : vector<16xf32>
    %213 = vector.multi_reduction <add>, %212, %cst_65 [1] : vector<16x32xf32> to vector<16xf32>
    %214 = vector.shape_cast %213 : vector<16xf32> to vector<16x1xf32>
    %cst_66 = arith.constant 3.200000e+01 : f32
    %215 = vector.broadcast %cst_66 : f32 to vector<16x1xf32>
    %216 = arith.divf %214, %215 : vector<16x1xf32>
    %217 = vector.broadcast %216 : vector<16x1xf32> to vector<16x32xf32>
    %218 = arith.subf %212, %217 : vector<16x32xf32>
    %219 = arith.mulf %218, %218 : vector<16x32xf32>
    %cst_67 = arith.constant dense<0.000000e+00> : vector<16xf32>
    %220 = vector.multi_reduction <add>, %219, %cst_67 [1] : vector<16x32xf32> to vector<16xf32>
    %221 = vector.shape_cast %220 : vector<16xf32> to vector<16x1xf32>
    %cst_68 = arith.constant 3.100000e+01 : f32
    %222 = vector.broadcast %cst_68 : f32 to vector<16x1xf32>
    %223 = arith.divf %221, %222 : vector<16x1xf32>
    %224 = math.sqrt %223 : vector<16x1xf32>
    %cst_69 = arith.constant 9.99999997E-7 : f32
    %225 = vector.broadcast %cst_69 : f32 to vector<16x1xf32>
    %226 = arith.addf %224, %225 : vector<16x1xf32>
    %227 = tpu.reciprocal %226 {approx = true} : vector<16x1xf32> -> vector<16x1xf32>
    %228 = vector.broadcast %227 : vector<16x1xf32> to vector<16x32xf32>
    %229 = arith.mulf %218, %228 : vector<16x32xf32>
    %230 = vector.broadcast %17 : vector<1x32xf32> to vector<16x32xf32>
    %231 = arith.mulf %230, %229 : vector<16x32xf32>
    %232 = vector.broadcast %18 : vector<1x32xf32> to vector<16x32xf32>
    %233 = arith.addf %231, %232 : vector<16x32xf32>
    %c1 = arith.constant 1 : index
    %c0_70 = arith.constant 0 : index
    %c0_71 = arith.constant 0 : index
    %234 = vector.load %arg2[%c1, %c0_70, %c0_71] : memref<2x32x96xbf16, #tpu.memory_space<vmem>>, vector<1x32x96xbf16>
    %235 = vector.shape_cast %234 : vector<1x32x96xbf16> to vector<32x96xbf16>
    %c1_72 = arith.constant 1 : index
    %c0_73 = arith.constant 0 : index
    %c0_74 = arith.constant 0 : index
    %236 = vector.load %arg3[%c1_72, %c0_73, %c0_74] : memref<2x32x32xbf16, #tpu.memory_space<vmem>>, vector<1x32x32xbf16>
    %237 = vector.shape_cast %236 : vector<1x32x32xbf16> to vector<32x32xbf16>
    %c1_75 = arith.constant 1 : index
    %c0_76 = arith.constant 0 : index
    %c0_77 = arith.constant 0 : index
    %238 = vector.load %arg4[%c1_75, %c0_76, %c0_77] : memref<2x32x64xbf16, #tpu.memory_space<vmem>>, vector<1x32x64xbf16>
    %239 = vector.shape_cast %238 : vector<1x32x64xbf16> to vector<32x64xbf16>
    %c1_78 = arith.constant 1 : index
    %c0_79 = arith.constant 0 : index
    %c0_80 = arith.constant 0 : index
    %240 = vector.load %arg5[%c1_78, %c0_79, %c0_80] : memref<2x64x32xbf16, #tpu.memory_space<vmem>>, vector<1x64x32xbf16>
    %241 = vector.shape_cast %240 : vector<1x64x32xbf16> to vector<64x32xbf16>
    %c1_81 = arith.constant 1 : index
    %c0_82 = arith.constant 0 : index
    %c0_83 = arith.constant 0 : index
    %242 = vector.load %arg6[%c1_81, %c0_82, %c0_83] : memref<2x8x96xf32, #tpu.memory_space<vmem>>, vector<1x8x96xf32>
    %243 = vector.shape_cast %242 : vector<1x8x96xf32> to vector<8x96xf32>
    %244 = vector.extract_strided_slice %243 {offsets = [0, 0], sizes = [1, 96], strides = [1, 1]} : vector<8x96xf32> to vector<1x96xf32>
    %245 = vector.extract_strided_slice %243 {offsets = [1, 0], sizes = [1, 32], strides = [1, 1]} : vector<8x96xf32> to vector<1x32xf32>
    %246 = vector.extract_strided_slice %243 {offsets = [2, 0], sizes = [1, 64], strides = [1, 1]} : vector<8x96xf32> to vector<1x64xf32>
    %247 = vector.extract_strided_slice %243 {offsets = [3, 0], sizes = [1, 32], strides = [1, 1]} : vector<8x96xf32> to vector<1x32xf32>
    %248 = vector.extract_strided_slice %243 {offsets = [4, 0], sizes = [1, 32], strides = [1, 1]} : vector<8x96xf32> to vector<1x32xf32>
    %249 = vector.extract_strided_slice %243 {offsets = [5, 0], sizes = [1, 32], strides = [1, 1]} : vector<8x96xf32> to vector<1x32xf32>
    %250 = vector.extract_strided_slice %243 {offsets = [6, 0], sizes = [1, 32], strides = [1, 1]} : vector<8x96xf32> to vector<1x32xf32>
    %251 = vector.extract_strided_slice %243 {offsets = [7, 0], sizes = [1, 32], strides = [1, 1]} : vector<8x96xf32> to vector<1x32xf32>
    %252 = arith.truncf %233 : vector<16x32xf32> to vector<16x32xbf16>
    %cst_84 = arith.constant dense<0.000000e+00> : vector<16x96xf32>
    %253 = tpu.matmul %252, %235, %cst_84 {dimension_numbers = #tpu.dot_dimension_numbers<[1], [0], [0], [1], [0, 0, 1, 1], [], []>} : vector<16x32xbf16>, vector<32x96xbf16>, vector<16x96xf32> -> vector<16x96xf32>
    %254 = vector.broadcast %244 : vector<1x96xf32> to vector<16x96xf32>
    %255 = arith.addf %253, %254 : vector<16x96xf32>
    %256 = arith.truncf %255 : vector<16x96xf32> to vector<16x96xbf16>
    %257 = vector.extract_strided_slice %256 {offsets = [0, 0], sizes = [16, 32], strides = [1, 1]} : vector<16x96xbf16> to vector<16x32xbf16>
    %258 = vector.extract_strided_slice %256 {offsets = [0, 32], sizes = [16, 32], strides = [1, 1]} : vector<16x96xbf16> to vector<16x32xbf16>
    %259 = vector.extract_strided_slice %256 {offsets = [0, 64], sizes = [16, 32], strides = [1, 1]} : vector<16x96xbf16> to vector<16x32xbf16>
    %260 = vector.extract_strided_slice %257 {offsets = [0, 0], sizes = [8, 8], strides = [1, 1]} : vector<16x32xbf16> to vector<8x8xbf16>
    %261 = vector.extract_strided_slice %258 {offsets = [0, 0], sizes = [8, 8], strides = [1, 1]} : vector<16x32xbf16> to vector<8x8xbf16>
    %262 = vector.extract_strided_slice %259 {offsets = [0, 0], sizes = [8, 8], strides = [1, 1]} : vector<16x32xbf16> to vector<8x8xbf16>
    %cst_85 = arith.constant dense<0.000000e+00> : vector<8x8xf32>
    %263 = tpu.matmul %260, %261, %cst_85 {dimension_numbers = #tpu.dot_dimension_numbers<[1], [1], [0], [0], [0, 0, 1, 0], [], []>} : vector<8x8xbf16>, vector<8x8xbf16>, vector<8x8xf32> -> vector<8x8xf32>
    %cst_86 = arith.constant 0.353553385 : f32
    %264 = vector.broadcast %cst_86 : f32 to vector<8x8xf32>
    %265 = arith.mulf %263, %264 : vector<8x8xf32>
    %cst_87 = arith.constant dense<0xFF800000> : vector<8xf32>
    %266 = vector.multi_reduction <maximumf>, %265, %cst_87 [1] : vector<8x8xf32> to vector<8xf32>
    %267 = vector.shape_cast %266 : vector<8xf32> to vector<8x1xf32>
    %268 = vector.broadcast %267 : vector<8x1xf32> to vector<8x8xf32>
    %269 = arith.subf %265, %268 : vector<8x8xf32>
    %270 = math.exp %269 : vector<8x8xf32>
    %cst_88 = arith.constant dense<0.000000e+00> : vector<8xf32>
    %271 = vector.multi_reduction <add>, %270, %cst_88 [1] : vector<8x8xf32> to vector<8xf32>
    %272 = vector.shape_cast %271 : vector<8xf32> to vector<8x1xf32>
    %273 = tpu.reciprocal %272 {approx = true} : vector<8x1xf32> -> vector<8x1xf32>
    %274 = vector.broadcast %273 : vector<8x1xf32> to vector<8x8xf32>
    %275 = arith.mulf %270, %274 : vector<8x8xf32>
    %276 = arith.truncf %275 : vector<8x8xf32> to vector<8x8xbf16>
    %cst_89 = arith.constant dense<0.000000e+00> : vector<8x8xf32>
    %277 = tpu.matmul %276, %262, %cst_89 {dimension_numbers = #tpu.dot_dimension_numbers<[1], [0], [0], [1], [0, 0, 1, 1], [], []>} : vector<8x8xbf16>, vector<8x8xbf16>, vector<8x8xf32> -> vector<8x8xf32>
    %278 = vector.extract_strided_slice %257 {offsets = [0, 8], sizes = [8, 8], strides = [1, 1]} : vector<16x32xbf16> to vector<8x8xbf16>
    %279 = vector.extract_strided_slice %258 {offsets = [0, 8], sizes = [8, 8], strides = [1, 1]} : vector<16x32xbf16> to vector<8x8xbf16>
    %280 = vector.extract_strided_slice %259 {offsets = [0, 8], sizes = [8, 8], strides = [1, 1]} : vector<16x32xbf16> to vector<8x8xbf16>
    %cst_90 = arith.constant dense<0.000000e+00> : vector<8x8xf32>
    %281 = tpu.matmul %278, %279, %cst_90 {dimension_numbers = #tpu.dot_dimension_numbers<[1], [1], [0], [0], [0, 0, 1, 0], [], []>} : vector<8x8xbf16>, vector<8x8xbf16>, vector<8x8xf32> -> vector<8x8xf32>
    %cst_91 = arith.constant 0.353553385 : f32
    %282 = vector.broadcast %cst_91 : f32 to vector<8x8xf32>
    %283 = arith.mulf %281, %282 : vector<8x8xf32>
    %cst_92 = arith.constant dense<0xFF800000> : vector<8xf32>
    %284 = vector.multi_reduction <maximumf>, %283, %cst_92 [1] : vector<8x8xf32> to vector<8xf32>
    %285 = vector.shape_cast %284 : vector<8xf32> to vector<8x1xf32>
    %286 = vector.broadcast %285 : vector<8x1xf32> to vector<8x8xf32>
    %287 = arith.subf %283, %286 : vector<8x8xf32>
    %288 = math.exp %287 : vector<8x8xf32>
    %cst_93 = arith.constant dense<0.000000e+00> : vector<8xf32>
    %289 = vector.multi_reduction <add>, %288, %cst_93 [1] : vector<8x8xf32> to vector<8xf32>
    %290 = vector.shape_cast %289 : vector<8xf32> to vector<8x1xf32>
    %291 = tpu.reciprocal %290 {approx = true} : vector<8x1xf32> -> vector<8x1xf32>
    %292 = vector.broadcast %291 : vector<8x1xf32> to vector<8x8xf32>
    %293 = arith.mulf %288, %292 : vector<8x8xf32>
    %294 = arith.truncf %293 : vector<8x8xf32> to vector<8x8xbf16>
    %cst_94 = arith.constant dense<0.000000e+00> : vector<8x8xf32>
    %295 = tpu.matmul %294, %280, %cst_94 {dimension_numbers = #tpu.dot_dimension_numbers<[1], [0], [0], [1], [0, 0, 1, 1], [], []>} : vector<8x8xbf16>, vector<8x8xbf16>, vector<8x8xf32> -> vector<8x8xf32>
    %296 = vector.extract_strided_slice %257 {offsets = [0, 16], sizes = [8, 8], strides = [1, 1]} : vector<16x32xbf16> to vector<8x8xbf16>
    %297 = vector.extract_strided_slice %258 {offsets = [0, 16], sizes = [8, 8], strides = [1, 1]} : vector<16x32xbf16> to vector<8x8xbf16>
    %298 = vector.extract_strided_slice %259 {offsets = [0, 16], sizes = [8, 8], strides = [1, 1]} : vector<16x32xbf16> to vector<8x8xbf16>
    %cst_95 = arith.constant dense<0.000000e+00> : vector<8x8xf32>
    %299 = tpu.matmul %296, %297, %cst_95 {dimension_numbers = #tpu.dot_dimension_numbers<[1], [1], [0], [0], [0, 0, 1, 0], [], []>} : vector<8x8xbf16>, vector<8x8xbf16>, vector<8x8xf32> -> vector<8x8xf32>
    %cst_96 = arith.constant 0.353553385 : f32
    %300 = vector.broadcast %cst_96 : f32 to vector<8x8xf32>
    %301 = arith.mulf %299, %300 : vector<8x8xf32>
    %cst_97 = arith.constant dense<0xFF800000> : vector<8xf32>
    %302 = vector.multi_reduction <maximumf>, %301, %cst_97 [1] : vector<8x8xf32> to vector<8xf32>
    %303 = vector.shape_cast %302 : vector<8xf32> to vector<8x1xf32>
    %304 = vector.broadcast %303 : vector<8x1xf32> to vector<8x8xf32>
    %305 = arith.subf %301, %304 : vector<8x8xf32>
    %306 = math.exp %305 : vector<8x8xf32>
    %cst_98 = arith.constant dense<0.000000e+00> : vector<8xf32>
    %307 = vector.multi_reduction <add>, %306, %cst_98 [1] : vector<8x8xf32> to vector<8xf32>
    %308 = vector.shape_cast %307 : vector<8xf32> to vector<8x1xf32>
    %309 = tpu.reciprocal %308 {approx = true} : vector<8x1xf32> -> vector<8x1xf32>
    %310 = vector.broadcast %309 : vector<8x1xf32> to vector<8x8xf32>
    %311 = arith.mulf %306, %310 : vector<8x8xf32>
    %312 = arith.truncf %311 : vector<8x8xf32> to vector<8x8xbf16>
    %cst_99 = arith.constant dense<0.000000e+00> : vector<8x8xf32>
    %313 = tpu.matmul %312, %298, %cst_99 {dimension_numbers = #tpu.dot_dimension_numbers<[1], [0], [0], [1], [0, 0, 1, 1], [], []>} : vector<8x8xbf16>, vector<8x8xbf16>, vector<8x8xf32> -> vector<8x8xf32>
    %314 = vector.extract_strided_slice %257 {offsets = [0, 24], sizes = [8, 8], strides = [1, 1]} : vector<16x32xbf16> to vector<8x8xbf16>
    %315 = vector.extract_strided_slice %258 {offsets = [0, 24], sizes = [8, 8], strides = [1, 1]} : vector<16x32xbf16> to vector<8x8xbf16>
    %316 = vector.extract_strided_slice %259 {offsets = [0, 24], sizes = [8, 8], strides = [1, 1]} : vector<16x32xbf16> to vector<8x8xbf16>
    %cst_100 = arith.constant dense<0.000000e+00> : vector<8x8xf32>
    %317 = tpu.matmul %314, %315, %cst_100 {dimension_numbers = #tpu.dot_dimension_numbers<[1], [1], [0], [0], [0, 0, 1, 0], [], []>} : vector<8x8xbf16>, vector<8x8xbf16>, vector<8x8xf32> -> vector<8x8xf32>
    %cst_101 = arith.constant 0.353553385 : f32
    %318 = vector.broadcast %cst_101 : f32 to vector<8x8xf32>
    %319 = arith.mulf %317, %318 : vector<8x8xf32>
    %cst_102 = arith.constant dense<0xFF800000> : vector<8xf32>
    %320 = vector.multi_reduction <maximumf>, %319, %cst_102 [1] : vector<8x8xf32> to vector<8xf32>
    %321 = vector.shape_cast %320 : vector<8xf32> to vector<8x1xf32>
    %322 = vector.broadcast %321 : vector<8x1xf32> to vector<8x8xf32>
    %323 = arith.subf %319, %322 : vector<8x8xf32>
    %324 = math.exp %323 : vector<8x8xf32>
    %cst_103 = arith.constant dense<0.000000e+00> : vector<8xf32>
    %325 = vector.multi_reduction <add>, %324, %cst_103 [1] : vector<8x8xf32> to vector<8xf32>
    %326 = vector.shape_cast %325 : vector<8xf32> to vector<8x1xf32>
    %327 = tpu.reciprocal %326 {approx = true} : vector<8x1xf32> -> vector<8x1xf32>
    %328 = vector.broadcast %327 : vector<8x1xf32> to vector<8x8xf32>
    %329 = arith.mulf %324, %328 : vector<8x8xf32>
    %330 = arith.truncf %329 : vector<8x8xf32> to vector<8x8xbf16>
    %cst_104 = arith.constant dense<0.000000e+00> : vector<8x8xf32>
    %331 = tpu.matmul %330, %316, %cst_104 {dimension_numbers = #tpu.dot_dimension_numbers<[1], [0], [0], [1], [0, 0, 1, 1], [], []>} : vector<8x8xbf16>, vector<8x8xbf16>, vector<8x8xf32> -> vector<8x8xf32>
    %332 = tpu.concatenate %275, %293, %311, %329 in 1 : vector<8x8xf32>, vector<8x8xf32>, vector<8x8xf32>, vector<8x8xf32> -> vector<8x32xf32>
    %333 = tpu.concatenate %277, %295, %313, %331 in 1 : vector<8x8xf32>, vector<8x8xf32>, vector<8x8xf32>, vector<8x8xf32> -> vector<8x32xf32>
    %334 = vector.extract_strided_slice %257 {offsets = [8, 0], sizes = [8, 8], strides = [1, 1]} : vector<16x32xbf16> to vector<8x8xbf16>
    %335 = vector.extract_strided_slice %258 {offsets = [8, 0], sizes = [8, 8], strides = [1, 1]} : vector<16x32xbf16> to vector<8x8xbf16>
    %336 = vector.extract_strided_slice %259 {offsets = [8, 0], sizes = [8, 8], strides = [1, 1]} : vector<16x32xbf16> to vector<8x8xbf16>
    %cst_105 = arith.constant dense<0.000000e+00> : vector<8x8xf32>
    %337 = tpu.matmul %334, %335, %cst_105 {dimension_numbers = #tpu.dot_dimension_numbers<[1], [1], [0], [0], [0, 0, 1, 0], [], []>} : vector<8x8xbf16>, vector<8x8xbf16>, vector<8x8xf32> -> vector<8x8xf32>
    %cst_106 = arith.constant 0.353553385 : f32
    %338 = vector.broadcast %cst_106 : f32 to vector<8x8xf32>
    %339 = arith.mulf %337, %338 : vector<8x8xf32>
    %cst_107 = arith.constant dense<0xFF800000> : vector<8xf32>
    %340 = vector.multi_reduction <maximumf>, %339, %cst_107 [1] : vector<8x8xf32> to vector<8xf32>
    %341 = vector.shape_cast %340 : vector<8xf32> to vector<8x1xf32>
    %342 = vector.broadcast %341 : vector<8x1xf32> to vector<8x8xf32>
    %343 = arith.subf %339, %342 : vector<8x8xf32>
    %344 = math.exp %343 : vector<8x8xf32>
    %cst_108 = arith.constant dense<0.000000e+00> : vector<8xf32>
    %345 = vector.multi_reduction <add>, %344, %cst_108 [1] : vector<8x8xf32> to vector<8xf32>
    %346 = vector.shape_cast %345 : vector<8xf32> to vector<8x1xf32>
    %347 = tpu.reciprocal %346 {approx = true} : vector<8x1xf32> -> vector<8x1xf32>
    %348 = vector.broadcast %347 : vector<8x1xf32> to vector<8x8xf32>
    %349 = arith.mulf %344, %348 : vector<8x8xf32>
    %350 = arith.truncf %349 : vector<8x8xf32> to vector<8x8xbf16>
    %cst_109 = arith.constant dense<0.000000e+00> : vector<8x8xf32>
    %351 = tpu.matmul %350, %336, %cst_109 {dimension_numbers = #tpu.dot_dimension_numbers<[1], [0], [0], [1], [0, 0, 1, 1], [], []>} : vector<8x8xbf16>, vector<8x8xbf16>, vector<8x8xf32> -> vector<8x8xf32>
    %352 = vector.extract_strided_slice %257 {offsets = [8, 8], sizes = [8, 8], strides = [1, 1]} : vector<16x32xbf16> to vector<8x8xbf16>
    %353 = vector.extract_strided_slice %258 {offsets = [8, 8], sizes = [8, 8], strides = [1, 1]} : vector<16x32xbf16> to vector<8x8xbf16>
    %354 = vector.extract_strided_slice %259 {offsets = [8, 8], sizes = [8, 8], strides = [1, 1]} : vector<16x32xbf16> to vector<8x8xbf16>
    %cst_110 = arith.constant dense<0.000000e+00> : vector<8x8xf32>
    %355 = tpu.matmul %352, %353, %cst_110 {dimension_numbers = #tpu.dot_dimension_numbers<[1], [1], [0], [0], [0, 0, 1, 0], [], []>} : vector<8x8xbf16>, vector<8x8xbf16>, vector<8x8xf32> -> vector<8x8xf32>
    %cst_111 = arith.constant 0.353553385 : f32
    %356 = vector.broadcast %cst_111 : f32 to vector<8x8xf32>
    %357 = arith.mulf %355, %356 : vector<8x8xf32>
    %cst_112 = arith.constant dense<0xFF800000> : vector<8xf32>
    %358 = vector.multi_reduction <maximumf>, %357, %cst_112 [1] : vector<8x8xf32> to vector<8xf32>
    %359 = vector.shape_cast %358 : vector<8xf32> to vector<8x1xf32>
    %360 = vector.broadcast %359 : vector<8x1xf32> to vector<8x8xf32>
    %361 = arith.subf %357, %360 : vector<8x8xf32>
    %362 = math.exp %361 : vector<8x8xf32>
    %cst_113 = arith.constant dense<0.000000e+00> : vector<8xf32>
    %363 = vector.multi_reduction <add>, %362, %cst_113 [1] : vector<8x8xf32> to vector<8xf32>
    %364 = vector.shape_cast %363 : vector<8xf32> to vector<8x1xf32>
    %365 = tpu.reciprocal %364 {approx = true} : vector<8x1xf32> -> vector<8x1xf32>
    %366 = vector.broadcast %365 : vector<8x1xf32> to vector<8x8xf32>
    %367 = arith.mulf %362, %366 : vector<8x8xf32>
    %368 = arith.truncf %367 : vector<8x8xf32> to vector<8x8xbf16>
    %cst_114 = arith.constant dense<0.000000e+00> : vector<8x8xf32>
    %369 = tpu.matmul %368, %354, %cst_114 {dimension_numbers = #tpu.dot_dimension_numbers<[1], [0], [0], [1], [0, 0, 1, 1], [], []>} : vector<8x8xbf16>, vector<8x8xbf16>, vector<8x8xf32> -> vector<8x8xf32>
    %370 = vector.extract_strided_slice %257 {offsets = [8, 16], sizes = [8, 8], strides = [1, 1]} : vector<16x32xbf16> to vector<8x8xbf16>
    %371 = vector.extract_strided_slice %258 {offsets = [8, 16], sizes = [8, 8], strides = [1, 1]} : vector<16x32xbf16> to vector<8x8xbf16>
    %372 = vector.extract_strided_slice %259 {offsets = [8, 16], sizes = [8, 8], strides = [1, 1]} : vector<16x32xbf16> to vector<8x8xbf16>
    %cst_115 = arith.constant dense<0.000000e+00> : vector<8x8xf32>
    %373 = tpu.matmul %370, %371, %cst_115 {dimension_numbers = #tpu.dot_dimension_numbers<[1], [1], [0], [0], [0, 0, 1, 0], [], []>} : vector<8x8xbf16>, vector<8x8xbf16>, vector<8x8xf32> -> vector<8x8xf32>
    %cst_116 = arith.constant 0.353553385 : f32
    %374 = vector.broadcast %cst_116 : f32 to vector<8x8xf32>
    %375 = arith.mulf %373, %374 : vector<8x8xf32>
    %cst_117 = arith.constant dense<0xFF800000> : vector<8xf32>
    %376 = vector.multi_reduction <maximumf>, %375, %cst_117 [1] : vector<8x8xf32> to vector<8xf32>
    %377 = vector.shape_cast %376 : vector<8xf32> to vector<8x1xf32>
    %378 = vector.broadcast %377 : vector<8x1xf32> to vector<8x8xf32>
    %379 = arith.subf %375, %378 : vector<8x8xf32>
    %380 = math.exp %379 : vector<8x8xf32>
    %cst_118 = arith.constant dense<0.000000e+00> : vector<8xf32>
    %381 = vector.multi_reduction <add>, %380, %cst_118 [1] : vector<8x8xf32> to vector<8xf32>
    %382 = vector.shape_cast %381 : vector<8xf32> to vector<8x1xf32>
    %383 = tpu.reciprocal %382 {approx = true} : vector<8x1xf32> -> vector<8x1xf32>
    %384 = vector.broadcast %383 : vector<8x1xf32> to vector<8x8xf32>
    %385 = arith.mulf %380, %384 : vector<8x8xf32>
    %386 = arith.truncf %385 : vector<8x8xf32> to vector<8x8xbf16>
    %cst_119 = arith.constant dense<0.000000e+00> : vector<8x8xf32>
    %387 = tpu.matmul %386, %372, %cst_119 {dimension_numbers = #tpu.dot_dimension_numbers<[1], [0], [0], [1], [0, 0, 1, 1], [], []>} : vector<8x8xbf16>, vector<8x8xbf16>, vector<8x8xf32> -> vector<8x8xf32>
    %388 = vector.extract_strided_slice %257 {offsets = [8, 24], sizes = [8, 8], strides = [1, 1]} : vector<16x32xbf16> to vector<8x8xbf16>
    %389 = vector.extract_strided_slice %258 {offsets = [8, 24], sizes = [8, 8], strides = [1, 1]} : vector<16x32xbf16> to vector<8x8xbf16>
    %390 = vector.extract_strided_slice %259 {offsets = [8, 24], sizes = [8, 8], strides = [1, 1]} : vector<16x32xbf16> to vector<8x8xbf16>
    %cst_120 = arith.constant dense<0.000000e+00> : vector<8x8xf32>
    %391 = tpu.matmul %388, %389, %cst_120 {dimension_numbers = #tpu.dot_dimension_numbers<[1], [1], [0], [0], [0, 0, 1, 0], [], []>} : vector<8x8xbf16>, vector<8x8xbf16>, vector<8x8xf32> -> vector<8x8xf32>
    %cst_121 = arith.constant 0.353553385 : f32
    %392 = vector.broadcast %cst_121 : f32 to vector<8x8xf32>
    %393 = arith.mulf %391, %392 : vector<8x8xf32>
    %cst_122 = arith.constant dense<0xFF800000> : vector<8xf32>
    %394 = vector.multi_reduction <maximumf>, %393, %cst_122 [1] : vector<8x8xf32> to vector<8xf32>
    %395 = vector.shape_cast %394 : vector<8xf32> to vector<8x1xf32>
    %396 = vector.broadcast %395 : vector<8x1xf32> to vector<8x8xf32>
    %397 = arith.subf %393, %396 : vector<8x8xf32>
    %398 = math.exp %397 : vector<8x8xf32>
    %cst_123 = arith.constant dense<0.000000e+00> : vector<8xf32>
    %399 = vector.multi_reduction <add>, %398, %cst_123 [1] : vector<8x8xf32> to vector<8xf32>
    %400 = vector.shape_cast %399 : vector<8xf32> to vector<8x1xf32>
    %401 = tpu.reciprocal %400 {approx = true} : vector<8x1xf32> -> vector<8x1xf32>
    %402 = vector.broadcast %401 : vector<8x1xf32> to vector<8x8xf32>
    %403 = arith.mulf %398, %402 : vector<8x8xf32>
    %404 = arith.truncf %403 : vector<8x8xf32> to vector<8x8xbf16>
    %cst_124 = arith.constant dense<0.000000e+00> : vector<8x8xf32>
    %405 = tpu.matmul %404, %390, %cst_124 {dimension_numbers = #tpu.dot_dimension_numbers<[1], [0], [0], [1], [0, 0, 1, 1], [], []>} : vector<8x8xbf16>, vector<8x8xbf16>, vector<8x8xf32> -> vector<8x8xf32>
    %406 = tpu.concatenate %349, %367, %385, %403 in 1 : vector<8x8xf32>, vector<8x8xf32>, vector<8x8xf32>, vector<8x8xf32> -> vector<8x32xf32>
    %407 = tpu.concatenate %351, %369, %387, %405 in 1 : vector<8x8xf32>, vector<8x8xf32>, vector<8x8xf32>, vector<8x8xf32> -> vector<8x32xf32>
    %408 = tpu.concatenate %333, %407 in 0 : vector<8x32xf32>, vector<8x32xf32> -> vector<16x32xf32>
    %409 = arith.truncf %408 : vector<16x32xf32> to vector<16x32xbf16>
    %cst_125 = arith.constant dense<0.000000e+00> : vector<16x32xf32>
    %410 = tpu.matmul %409, %237, %cst_125 {dimension_numbers = #tpu.dot_dimension_numbers<[1], [0], [0], [1], [0, 0, 1, 1], [], []>} : vector<16x32xbf16>, vector<32x32xbf16>, vector<16x32xf32> -> vector<16x32xf32>
    %411 = vector.broadcast %245 : vector<1x32xf32> to vector<16x32xf32>
    %412 = arith.addf %410, %411 : vector<16x32xf32>
    %413 = arith.addf %233, %412 : vector<16x32xf32>
    %cst_126 = arith.constant dense<0.000000e+00> : vector<16xf32>
    %414 = vector.multi_reduction <add>, %413, %cst_126 [1] : vector<16x32xf32> to vector<16xf32>
    %415 = vector.shape_cast %414 : vector<16xf32> to vector<16x1xf32>
    %cst_127 = arith.constant 3.200000e+01 : f32
    %416 = vector.broadcast %cst_127 : f32 to vector<16x1xf32>
    %417 = arith.divf %415, %416 : vector<16x1xf32>
    %418 = vector.broadcast %417 : vector<16x1xf32> to vector<16x32xf32>
    %419 = arith.subf %413, %418 : vector<16x32xf32>
    %420 = arith.mulf %419, %419 : vector<16x32xf32>
    %cst_128 = arith.constant dense<0.000000e+00> : vector<16xf32>
    %421 = vector.multi_reduction <add>, %420, %cst_128 [1] : vector<16x32xf32> to vector<16xf32>
    %422 = vector.shape_cast %421 : vector<16xf32> to vector<16x1xf32>
    %cst_129 = arith.constant 3.100000e+01 : f32
    %423 = vector.broadcast %cst_129 : f32 to vector<16x1xf32>
    %424 = arith.divf %422, %423 : vector<16x1xf32>
    %425 = math.sqrt %424 : vector<16x1xf32>
    %cst_130 = arith.constant 9.99999997E-7 : f32
    %426 = vector.broadcast %cst_130 : f32 to vector<16x1xf32>
    %427 = arith.addf %425, %426 : vector<16x1xf32>
    %428 = tpu.reciprocal %427 {approx = true} : vector<16x1xf32> -> vector<16x1xf32>
    %429 = vector.broadcast %428 : vector<16x1xf32> to vector<16x32xf32>
    %430 = arith.mulf %419, %429 : vector<16x32xf32>
    %431 = vector.broadcast %248 : vector<1x32xf32> to vector<16x32xf32>
    %432 = arith.mulf %431, %430 : vector<16x32xf32>
    %433 = vector.broadcast %249 : vector<1x32xf32> to vector<16x32xf32>
    %434 = arith.addf %432, %433 : vector<16x32xf32>
    %435 = arith.truncf %434 : vector<16x32xf32> to vector<16x32xbf16>
    %cst_131 = arith.constant dense<0.000000e+00> : vector<16x64xf32>
    %436 = tpu.matmul %435, %239, %cst_131 {dimension_numbers = #tpu.dot_dimension_numbers<[1], [0], [0], [1], [0, 0, 1, 1], [], []>} : vector<16x32xbf16>, vector<32x64xbf16>, vector<16x64xf32> -> vector<16x64xf32>
    %437 = vector.broadcast %246 : vector<1x64xf32> to vector<16x64xf32>
    %438 = arith.addf %436, %437 : vector<16x64xf32>
    %cst_132 = arith.constant 0.000000e+00 : f32
    %439 = vector.broadcast %cst_132 : f32 to vector<16x64xf32>
    %440 = arith.maximumf %438, %439 : vector<16x64xf32>
    %441 = arith.truncf %440 : vector<16x64xf32> to vector<16x64xbf16>
    %cst_133 = arith.constant dense<0.000000e+00> : vector<16x32xf32>
    %442 = tpu.matmul %441, %241, %cst_133 {dimension_numbers = #tpu.dot_dimension_numbers<[1], [0], [0], [1], [0, 0, 1, 1], [], []>} : vector<16x64xbf16>, vector<64x32xbf16>, vector<16x32xf32> -> vector<16x32xf32>
    %443 = vector.broadcast %247 : vector<1x32xf32> to vector<16x32xf32>
    %444 = arith.addf %442, %443 : vector<16x32xf32>
    %445 = arith.addf %434, %444 : vector<16x32xf32>
    %cst_134 = arith.constant dense<0.000000e+00> : vector<16xf32>
    %446 = vector.multi_reduction <add>, %445, %cst_134 [1] : vector<16x32xf32> to vector<16xf32>
    %447 = vector.shape_cast %446 : vector<16xf32> to vector<16x1xf32>
    %cst_135 = arith.constant 3.200000e+01 : f32
    %448 = vector.broadcast %cst_135 : f32 to vector<16x1xf32>
    %449 = arith.divf %447, %448 : vector<16x1xf32>
    %450 = vector.broadcast %449 : vector<16x1xf32> to vector<16x32xf32>
    %451 = arith.subf %445, %450 : vector<16x32xf32>
    %452 = arith.mulf %451, %451 : vector<16x32xf32>
    %cst_136 = arith.constant dense<0.000000e+00> : vector<16xf32>
    %453 = vector.multi_reduction <add>, %452, %cst_136 [1] : vector<16x32xf32> to vector<16xf32>
    %454 = vector.shape_cast %453 : vector<16xf32> to vector<16x1xf32>
    %cst_137 = arith.constant 3.100000e+01 : f32
    %455 = vector.broadcast %cst_137 : f32 to vector<16x1xf32>
    %456 = arith.divf %454, %455 : vector<16x1xf32>
    %457 = math.sqrt %456 : vector<16x1xf32>
    %cst_138 = arith.constant 9.99999997E-7 : f32
    %458 = vector.broadcast %cst_138 : f32 to vector<16x1xf32>
    %459 = arith.addf %457, %458 : vector<16x1xf32>
    %460 = tpu.reciprocal %459 {approx = true} : vector<16x1xf32> -> vector<16x1xf32>
    %461 = vector.broadcast %460 : vector<16x1xf32> to vector<16x32xf32>
    %462 = arith.mulf %451, %461 : vector<16x32xf32>
    %463 = vector.broadcast %250 : vector<1x32xf32> to vector<16x32xf32>
    %464 = arith.mulf %463, %462 : vector<16x32xf32>
    %465 = vector.broadcast %251 : vector<1x32xf32> to vector<16x32xf32>
    %466 = arith.addf %464, %465 : vector<16x32xf32>
    %c0_139 = arith.constant 0 : index
    %c0_140 = arith.constant 0 : index
    %467 = vector.load %arg7[%c0_139, %c0_140] : memref<2x32xf32, #tpu.memory_space<vmem>>, vector<1x32xf32>
    %c1_141 = arith.constant 1 : index
    %c0_142 = arith.constant 0 : index
    %468 = vector.load %arg7[%c1_141, %c0_142] : memref<2x32xf32, #tpu.memory_space<vmem>>, vector<1x32xf32>
    %cst_143 = arith.constant dense<0.000000e+00> : vector<16xf32>
    %469 = vector.multi_reduction <add>, %466, %cst_143 [1] : vector<16x32xf32> to vector<16xf32>
    %470 = vector.shape_cast %469 : vector<16xf32> to vector<16x1xf32>
    %cst_144 = arith.constant 3.200000e+01 : f32
    %471 = vector.broadcast %cst_144 : f32 to vector<16x1xf32>
    %472 = arith.divf %470, %471 : vector<16x1xf32>
    %473 = vector.broadcast %472 : vector<16x1xf32> to vector<16x32xf32>
    %474 = arith.subf %466, %473 : vector<16x32xf32>
    %475 = arith.mulf %474, %474 : vector<16x32xf32>
    %cst_145 = arith.constant dense<0.000000e+00> : vector<16xf32>
    %476 = vector.multi_reduction <add>, %475, %cst_145 [1] : vector<16x32xf32> to vector<16xf32>
    %477 = vector.shape_cast %476 : vector<16xf32> to vector<16x1xf32>
    %cst_146 = arith.constant 3.100000e+01 : f32
    %478 = vector.broadcast %cst_146 : f32 to vector<16x1xf32>
    %479 = arith.divf %477, %478 : vector<16x1xf32>
    %480 = math.sqrt %479 : vector<16x1xf32>
    %cst_147 = arith.constant 9.99999997E-7 : f32
    %481 = vector.broadcast %cst_147 : f32 to vector<16x1xf32>
    %482 = arith.addf %480, %481 : vector<16x1xf32>
    %483 = tpu.reciprocal %482 {approx = true} : vector<16x1xf32> -> vector<16x1xf32>
    %484 = vector.broadcast %483 : vector<16x1xf32> to vector<16x32xf32>
    %485 = arith.mulf %474, %484 : vector<16x32xf32>
    %486 = vector.broadcast %467 : vector<1x32xf32> to vector<16x32xf32>
    %487 = arith.mulf %486, %485 : vector<16x32xf32>
    %488 = vector.broadcast %468 : vector<1x32xf32> to vector<16x32xf32>
    %489 = arith.addf %487, %488 : vector<16x32xf32>
    %c0_148 = arith.constant 0 : index
    %c0_149 = arith.constant 0 : index
    %490 = vector.load %arg8[%c0_148, %c0_149] : memref<16x32xf32, #tpu.memory_space<vmem>>, vector<16x32xf32>
    tpu.vector_store %arg8[%c0_148, %c0_149], %489 {strides = array<i32>} : memref<16x32xf32, #tpu.memory_space<vmem>>, vector<16x32xf32>,
    %491 = tpu.concatenate %99, %173, %332, %406 in 1 : vector<8x32xf32>, vector<8x32xf32>, vector<8x32xf32>, vector<8x32xf32> -> vector<8x128xf32>
    %c0_150 = arith.constant 0 : index
    %c0_151 = arith.constant 0 : index
    %492 = vector.load %arg9[%c0_150, %c0_151] : memref<8x128xf32, #tpu.memory_space<vmem>>, vector<8x128xf32>
    tpu.vector_store %arg9[%c0_150, %c0_151], %491 {strides = array<i32>} : memref<8x128xf32, #tpu.memory_space<vmem>>, vector<8x128xf32>,
    return
  }
  func.func @transform_0(%arg0: i32) -> (i32, i32) {
    %c0_i32 = arith.constant 0 : i32
    %c0_i32_0 = arith.constant 0 : i32
    %c0_i32_1 = arith.constant 0 : i32
    return %c0_i32, %c0_i32_0 : i32, i32
  }
  func.func @transform_1(%arg0: i32) -> (i32, i32, i32) {
    %c0_i32 = arith.constant 0 : i32
    %c0_i32_0 = arith.constant 0 : i32
    %c0_i32_1 = arith.constant 0 : i32
    %c0_i32_2 = arith.constant 0 : i32
    return %c0_i32, %c0_i32_0, %c0_i32_1 : i32, i32, i32
  }
  func.func @transform_2(%arg0: i32) -> (i32, i32, i32) {
    %c0_i32 = arith.constant 0 : i32
    %c0_i32_0 = arith.constant 0 : i32
    %c0_i32_1 = arith.constant 0 : i32
    %c0_i32_2 = arith.constant 0 : i32
    return %c0_i32, %c0_i32_0, %c0_i32_1 : i32, i32, i32
  }
  func.func @transform_3(%arg0: i32) -> (i32, i32, i32) {
    %c0_i32 = arith.constant 0 : i32
    %c0_i32_0 = arith.constant 0 : i32
    %c0_i32_1 = arith.constant 0 : i32
    %c0_i32_2 = arith.constant 0 : i32
    return %c0_i32, %c0_i32_0, %c0_i32_1 : i32, i32, i32
  }
  func.func @transform_4(%arg0: i32) -> (i32, i32, i32) {
    %c0_i32 = arith.constant 0 : i32
    %c0_i32_0 = arith.constant 0 : i32
    %c0_i32_1 = arith.constant 0 : i32
    %c0_i32_2 = arith.constant 0 : i32
    return %c0_i32, %c0_i32_0, %c0_i32_1 : i32, i32, i32
  }
  func.func @transform_5(%arg0: i32) -> (i32, i32, i32) {
    %c0_i32 = arith.constant 0 : i32
    %c0_i32_0 = arith.constant 0 : i32
    %c0_i32_1 = arith.constant 0 : i32
    %c0_i32_2 = arith.constant 0 : i32
    return %c0_i32, %c0_i32_0, %c0_i32_1 : i32, i32, i32
  }
  func.func @transform_6(%arg0: i32) -> (i32, i32) {
    %c0_i32 = arith.constant 0 : i32
    %c0_i32_0 = arith.constant 0 : i32
    %c0_i32_1 = arith.constant 0 : i32
    return %c0_i32, %c0_i32_0 : i32, i32
  }
  func.func @transform_7(%arg0: i32) -> (i32, i32) {
    %c0_i32 = arith.constant 0 : i32
    %c0_i32_0 = arith.constant 0 : i32
    %c0_i32_1 = arith.constant 0 : i32
    return %c0_i32, %c0_i32_0 : i32, i32
  }
  func.func @transform_8(%arg0: i32) -> (i32, i32) {
    %c0_i32 = arith.constant 0 : i32
    %c0_i32_0 = arith.constant 0 : i32
    %c0_i32_1 = arith.constant 0 : i32
    return %c0_i32, %c0_i32_0 : i32, i32
  }
}

</mosaic_0001>

<llo_original>
// kernel: tpu_custom_call.1
$region0: #{tpu_custom_call.1}
  #allocation0 [shape = 'u32[]', space=smem, size = 0x4, offset = 0x4, fixed_abs, tag = 'smem constant byte address 0x4 - core index']
  #allocation1 [shape = 'u32[144,128]{1,0:T(1,128)}', space=vmem, size = 0x12000, scoped, tag = 'internal scratch']
  %s0 = inlined_call_operand.hbm [shape: f32[16,32], index: 0, kind: input, shape index: {}]
  %s1 = inlined_call_operand.vmem [shape: bf16[2,32,96], index: 1, kind: input, shape index: {}]
  %s2 = inlined_call_operand.vmem [shape: bf16[2,32,32], index: 2, kind: input, shape index: {}]
  %s3 = inlined_call_operand.vmem [shape: bf16[2,32,64], index: 3, kind: input, shape index: {}]
  %s4 = inlined_call_operand.vmem [shape: bf16[2,64,32], index: 4, kind: input, shape index: {}]
  %s5 = inlined_call_operand.vmem [shape: f32[2,8,96], index: 5, kind: input, shape index: {}]
  %s6 = inlined_call_operand.vmem [shape: f32[2,32], index: 6, kind: input, shape index: {}]
  %s7 = inlined_call_operand.hbm [shape: f32[16,32], index: 7, kind: output, shape index: {0}]
  %s8 = inlined_call_operand.hbm [shape: f32[8,128], index: 8, kind: output, shape index: {1}]
  %9 = xla_tuple %s7, %s8
  %s10 = sld [smem:[#allocation0]]
  $region50: #{tpu_custom_call.1} parent=0
    _
  %s12 = ssub.s32 1, %s10
  %s13 = scalar_select 0, %s12, %s10
  $region1: #{tpu_custom_call.1} parent=0
    #allocation2 [shape = 'u8[8192]{0}', space=vmem, size = 0x2000, scoped, tag = 'input window, operand 0, single buffered']
    #allocation3 [shape = 's32[1]{0}', space=sflag, size = 0x4, scoped, tag = 'scoped memory for tpu_custom_call.1']
    #allocation4 [shape = 's32[1]{0}', space=sflag, size = 0x4, scoped, tag = 'scoped memory for tpu_custom_call.1']
    #allocation5 [shape = 'u8[8192]{0}', space=vmem, size = 0x2000, scoped, tag = 'output window, operand 0, single buffered']
    #allocation6 [shape = 'u8[4096]{0}', space=vmem, size = 0x1000, scoped, tag = 'output window, operand 1, single buffered']
    #allocation7 [shape = 's32[1]{0}', space=sflag, size = 0x4, scoped, tag = 'scoped memory for tpu_custom_call.1']
    %14 = vsyncpa [#allocation3], 0
    %15 = vsyncpa [#allocation4], 0
    %16 = vsyncpa [#allocation7], 0
    // Predicated region
    $region2: #{tpu_custom_call.1} parent=1 // pred_check
      _
    $region3: #{tpu_custom_call.1} parent=1 // pred_check_branch
      %18 = sbr.rel (0) target = $region5
    $region4: #{tpu_custom_call.1} parent=1 // pred_region
      %s20 = ssub.s32 256, 256
      %21 = vsyncadd [#allocation3], %s20
      %s22 = sshll.u32 [#allocation2], 4
      %s23 = int_to_ptr.vmem [resolvable:$true] %s22
      %28 = dma.hbm_to_vmem [thread:$0]  %s0, 256, %s23, [#allocation3], 128, 128, 8
    $region5: #{tpu_custom_call.1} parent=1 // pred_fallthru
      _
    // Predicated region
    $region6: #{tpu_custom_call.1} parent=1 // pred_check
      _
    $region7: #{tpu_custom_call.1} parent=1 // pred_check_branch
      %30 = sbr.rel (0) target = $region9
    $region8: #{tpu_custom_call.1} parent=1 // pred_region
      _
    $region9: #{tpu_custom_call.1} parent=1 // pred_fallthru
      _
    // Predicated region
    $region10: #{tpu_custom_call.1} parent=1 // pred_check
      _
    $region11: #{tpu_custom_call.1} parent=1 // pred_check_branch
      %32 = sbr.rel (0) target = $region13
    $region12: #{tpu_custom_call.1} parent=1 // pred_region
      _
    $region13: #{tpu_custom_call.1} parent=1 // pred_fallthru
      _
    // Predicated region
    $region14: #{tpu_custom_call.1} parent=1 // pred_check
      _
    $region15: #{tpu_custom_call.1} parent=1 // pred_check_branch
      %34 = sbr.rel (0) target = $region17
    $region16: #{tpu_custom_call.1} parent=1 // pred_region
      _
    $region17: #{tpu_custom_call.1} parent=1 // pred_fallthru
      _
    // Predicated region
    $region18: #{tpu_custom_call.1} parent=1 // pred_check
      _
    $region19: #{tpu_custom_call.1} parent=1 // pred_check_branch
      %36 = sbr.rel (0) target = $region21
    $region20: #{tpu_custom_call.1} parent=1 // pred_region
      _
    $region21: #{tpu_custom_call.1} parent=1 // pred_fallthru
      _
    // Predicated region
    $region22: #{tpu_custom_call.1} parent=1 // pred_check
      _
    $region23: #{tpu_custom_call.1} parent=1 // pred_check_branch
      %38 = sbr.rel (0) target = $region25
    $region24: #{tpu_custom_call.1} parent=1 // pred_region
      _
    $region25: #{tpu_custom_call.1} parent=1 // pred_fallthru
      _
    // Predicated region
    $region26: #{tpu_custom_call.1} parent=1 // pred_check
      _
    $region27: #{tpu_custom_call.1} parent=1 // pred_check_branch
      %40 = sbr.rel (0) target = $region29
    $region28: #{tpu_custom_call.1} parent=1 // pred_region
      _
    $region29: #{tpu_custom_call.1} parent=1 // pred_fallthru
      _
    // Predicated region
    $region30: #{tpu_custom_call.1} parent=1 // pred_check
      _
    $region31: #{tpu_custom_call.1} parent=1 // pred_check_branch
      %42 = sbr.rel (0) target = $region33
    $region32: #{tpu_custom_call.1} parent=1 // pred_region
      %43 = dma.done [#allocation3], 256
    $region33: #{tpu_custom_call.1} parent=1 // pred_fallthru
      _
    %v45 = vld [vmem:[#allocation2] sm:$0xff]
    %v46 = vld [vmem:[#allocation2 + $0x8] sm:$0xff]
    %v47 = vld [vmem:[%s1] sm:$0xf]
    %v48 = vld [vmem:[%s1 + $0x4] sm:$0xf]
    %v49 = vld [vmem:[%s1 + $0x8] sm:$0xf]
    %v50 = vld [vmem:[%s1 + $0xc] sm:$0xf]
    %v51 = vld [vmem:[%s2] sm:$0xf]
    %v52 = vld [vmem:[%s2 + $0x4] sm:$0xf]
    %v53 = vld [vmem:[%s2 + $0x8] sm:$0xf]
    %v54 = vld [vmem:[%s2 + $0xc] sm:$0xf]
    %v55 = vld [vmem:[%s3] sm:$0xf]
    %v56 = vld [vmem:[%s3 + $0x4] sm:$0xf]
    %v57 = vld [vmem:[%s3 + $0x8] sm:$0xf]
    %v58 = vld [vmem:[%s3 + $0xc] sm:$0xf]
    %v59 = vld [vmem:[%s4] sm:$0xf]
    %v60 = vld [vmem:[%s4 + $0x4] sm:$0xf]
    %v61 = vld [vmem:[%s4 + $0x8] sm:$0xf]
    %v62 = vld [vmem:[%s4 + $0xc] sm:$0xf]
    %v63 = vld [vmem:[%s4 + $0x10] sm:$0xf]
    %v64 = vld [vmem:[%s4 + $0x14] sm:$0xf]
    %v65 = vld [vmem:[%s4 + $0x18] sm:$0xf]
    %v66 = vld [vmem:[%s4 + $0x1c] sm:$0xf]
    %v67 = vld [vmem:[%s5] sm:$0xff]
    %v68 = vpack.c.bf16 %v46, %v45
    %v69 = vlaneseq
    %v70 = vshrl.u32 %v69, 7
    %v71 = vsub.s32 0, %v70
    %v72 = vrot.slane %v67, %v71
    %v77 = vunpack.c.l.b16 %v47
    %v78 = vunpack.c.l.b16 %v48
    %v79 = vunpack.c.l.b16 %v49
    %v80 = vunpack.c.l.b16 %v50
    %v81 = vpack.c.b16 %v78, %v77
    %v82 = vpack.c.b16 %v80, %v79
    %vm85 = vcmask 261120
    %v87 = vsel %vm85, %v68, 0
    %89 = vmatprep.subr.bf16.mxu0 0
    %90 = vmatpush1.bf16.msra.mxu0 %v81
    %91 = vmatprep.subr.bf16.mxu0 0
    %92 = vmatpush1.bf16.msra.mxu0 %v82
    %93 = vmatprep.subr.bf16.mxu0 0
    %94 = vmatpush1.bf16.msra.mxu0 0
    %95 = vmatprep.subr.bf16.mxu0 0
    %96 = vmatpush1.bf16.msra.mxu0 0
    %97 = vmatprep.subr.bf16.mxu0 0
    %98 = vmatpush1.bf16.msra.mxu0 0
    %99 = vmatprep.subr.bf16.mxu0 0
    %100 = vmatpush1.bf16.msra.mxu0 0
    %101 = vmatprep.subr.bf16.mxu0 0
    %102 = vmatpush1.bf16.msra.mxu0 0
    %103 = vmatprep.subr.bf16.mxu0 0
    %104 = vmatpush1.bf16.msra.mxu0 0
    %105 = vmatprep.subr.bf16.mxu0 0
    %106 = vmatpush1.bf16.msra.mxu0 0
    %107 = vmatprep.subr.bf16.mxu0 0
    %108 = vmatpush1.bf16.msra.mxu0 0
    %109 = vmatprep.subr.bf16.mxu0 0
    %110 = vmatpush1.bf16.msra.mxu0 0
    %111 = vmatprep.subr.bf16.mxu0 0
    %112 = vmatpush1.bf16.msra.mxu0 0
    %113 = vmatprep.subr.bf16.mxu0 0
    %114 = vmatpush1.bf16.msra.mxu0 0
    %115 = vmatprep.subr.bf16.mxu0 0
    %116 = vmatpush1.bf16.msra.mxu0 0
    %117 = vmatprep.subr.bf16.mxu0 0
    %118 = vmatpush1.bf16.msra.mxu0 0
    %119 = vmatprep.subr.bf16.mxu0 0
    %120 = vmatpush1.bf16.msra.mxu0 0
    %121 = vmatprep.mubr.bf16.mxu0 0
    %122 = vmatmul.mubr.bf16.gmra.mrb[0].mxu0 %v87
    %v123 = vpop.f32.mrb[0].mxu0
    %v124 = vadd.f32 %v72, %v123
    %v125 = vpop.f32.mrb[0].mxu0
    %v126 = vpop.f32.mrb[0].mxu0
    %v127 = vadd.f32 %v72, %v126
    %v128 = vpop.f32.mrb[0].mxu0
    %129 = vdwg.mxu0
    %v130 = vpack.c.bf16 %v127, %v124
    %132 = vrot.lane.b32.xlu0 %v130, 96
    %v133 = vpop.permute.xlu0 %132
    %vm134 = vcmask 64512
    %v136 = vsel %vm134, %v130, 0
    %v139 = vsel %vm134, %v133, 0
    %141 = vmatprep.subr.bf16.mxu0 0
    %142 = vmatpush1.bf16.xpose.msra.mxu0 %v139
    %143 = vmatprep.subr.bf16.mxu0 0
    %144 = vmatpush1.bf16.xpose.msra.mxu0 0
    %145 = vmatprep.subr.bf16.mxu0 0
    %146 = vmatpush1.bf16.xpose.msra.mxu0 0
    %147 = vmatprep.subr.bf16.mxu0 0
    %148 = vmatpush1.bf16.xpose.msra.mxu0 0
    %149 = vmatprep.subr.bf16.mxu0 0
    %150 = vmatpush1.bf16.xpose.msra.mxu0 0
    %151 = vmatprep.subr.bf16.mxu0 0
    %152 = vmatpush1.bf16.xpose.msra.mxu0 0
    %153 = vmatprep.subr.bf16.mxu0 0
    %154 = vmatpush1.bf16.xpose.msra.mxu0 0
    %155 = vmatprep.subr.bf16.mxu0 0
    %156 = vmatpush1.bf16.xpose.msra.mxu0 0
    %157 = vmatprep.subr.bf16.mxu0 0
    %158 = vmatpush1.bf16.xpose.msra.mxu0 0
    %159 = vmatprep.subr.bf16.mxu0 0
    %160 = vmatpush1.bf16.xpose.msra.mxu0 0
    %161 = vmatprep.subr.bf16.mxu0 0
    %162 = vmatpush1.bf16.xpose.msra.mxu0 0
    %163 = vmatprep.subr.bf16.mxu0 0
    %164 = vmatpush1.bf16.xpose.msra.mxu0 0
    %165 = vmatprep.subr.bf16.mxu0 0
    %166 = vmatpush1.bf16.xpose.msra.mxu0 0
    %167 = vmatprep.subr.bf16.mxu0 0
    %168 = vmatpush1.bf16.xpose.msra.mxu0 0
    %169 = vmatprep.subr.bf16.mxu0 0
    %170 = vmatpush1.bf16.xpose.msra.mxu0 0
    %171 = vmatprep.subr.bf16.mxu0 0
    %172 = vmatpush1.bf16.xpose.msra.mxu0 0
    %173 = vmatprep.mubr.bf16.mxu0 0
    %174 = vmatmul.mubr.bf16.gmra.mrb[0].mxu0 %v136
    %v175 = vpop.f32.mrb[0].mxu0
    %v176 = vadd.f32 0.0, %v175
    %v177 = vpop.f32.mrb[0].mxu0
    %v178 = vpop.f32.mrb[0].mxu0
    %v179 = vpop.f32.mrb[0].mxu0
    %180 = vdwg.mxu0
    %v181 = vmul.f32 %v176, 0.35355338
    %v182 = vsel %vm134, %v181, -inf
    %183 = vmax.xlane.f32.xlu0 %v182
    %v184 = vpop.xlane.xlu0 %183
    %v185 = vsub.f32 %v181, %v184
    %v186 = vmul.f32 %v185, 1.442695
    %v187 = vpow.pop %v186
    %v188 = vsel %vm134, %v187, 0.0
    %189 = vadd.xlane.f32.xlu0 %v188
    %v190 = vpop.xlane.xlu0 %189
    %v191 = vrcp.pop %v190
    %v192 = vmul.f32 %v187, %v191
    %v193 = vpack.c.bf16 %v192, %v192
    %194 = vrot.lane.b32.xlu0 %v130, 64
    %v195 = vpop.permute.xlu0 %194
    %v197 = vsel %vm134, %v193, 0
    %vm199 = vcmask 1043456
    %v201 = vsel %vm199, %v195, 0
    %203 = vmatprep.subr.bf16.mxu0 0
    %204 = vmatpush1.bf16.msra.mxu0 %v201
    %205 = vmatprep.subr.bf16.mxu0 0
    %206 = vmatpush1.bf16.msra.mxu0 0
    %207 = vmatprep.subr.bf16.mxu0 0
    %208 = vmatpush1.bf16.msra.mxu0 0
    %209 = vmatprep.subr.bf16.mxu0 0
    %210 = vmatpush1.bf16.msra.mxu0 0
    %211 = vmatprep.subr.bf16.mxu0 0
    %212 = vmatpush1.bf16.msra.mxu0 0
    %213 = vmatprep.subr.bf16.mxu0 0
    %214 = vmatpush1.bf16.msra.mxu0 0
    %215 = vmatprep.subr.bf16.mxu0 0
    %216 = vmatpush1.bf16.msra.mxu0 0
    %217 = vmatprep.subr.bf16.mxu0 0
    %218 = vmatpush1.bf16.msra.mxu0 0
    %219 = vmatprep.subr.bf16.mxu0 0
    %220 = vmatpush1.bf16.msra.mxu0 0
    %221 = vmatprep.subr.bf16.mxu0 0
    %222 = vmatpush1.bf16.msra.mxu0 0
    %223 = vmatprep.subr.bf16.mxu0 0
    %224 = vmatpush1.bf16.msra.mxu0 0
    %225 = vmatprep.subr.bf16.mxu0 0
    %226 = vmatpush1.bf16.msra.mxu0 0
    %227 = vmatprep.subr.bf16.mxu0 0
    %228 = vmatpush1.bf16.msra.mxu0 0
    %229 = vmatprep.subr.bf16.mxu0 0
    %230 = vmatpush1.bf16.msra.mxu0 0
    %231 = vmatprep.subr.bf16.mxu0 0
    %232 = vmatpush1.bf16.msra.mxu0 0
    %233 = vmatprep.subr.bf16.mxu0 0
    %234 = vmatpush1.bf16.msra.mxu0 0
    %235 = vmatprep.mubr.bf16.mxu0 0
    %236 = vmatmul.mubr.bf16.gmra.mrb[0].mxu0 %v197
    %v237 = vpop.f32.mrb[0].mxu0
    %v238 = vadd.f32 0.0, %v237
    %v239 = vpop.f32.mrb[0].mxu0
    %v240 = vpop.f32.mrb[0].mxu0
    %v241 = vpop.f32.mrb[0].mxu0
    %242 = vdwg.mxu0
    %243 = vrot.lane.b32.xlu0 %v130, 120
    %v244 = vpop.permute.xlu0 %243
    %245 = vrot.lane.b32.xlu0 %v130, 88
    %v246 = vpop.permute.xlu0 %245
    %v248 = vsel %vm134, %v244, 0
    %v251 = vsel %vm134, %v246, 0
    %253 = vmatprep.subr.bf16.mxu0 0
    %254 = vmatpush1.bf16.xpose.msra.mxu0 %v251
    %255 = vmatprep.subr.bf16.mxu0 0
    %256 = vmatpush1.bf16.xpose.msra.mxu0 0
    %257 = vmatprep.subr.bf16.mxu0 0
    %258 = vmatpush1.bf16.xpose.msra.mxu0 0
    %259 = vmatprep.subr.bf16.mxu0 0
    %260 = vmatpush1.bf16.xpose.msra.mxu0 0
    %261 = vmatprep.subr.bf16.mxu0 0
    %262 = vmatpush1.bf16.xpose.msra.mxu0 0
    %263 = vmatprep.subr.bf16.mxu0 0
    %264 = vmatpush1.bf16.xpose.msra.mxu0 0
    %265 = vmatprep.subr.bf16.mxu0 0
    %266 = vmatpush1.bf16.xpose.msra.mxu0 0
    %267 = vmatprep.subr.bf16.mxu0 0
    %268 = vmatpush1.bf16.xpose.msra.mxu0 0
    %269 = vmatprep.subr.bf16.mxu0 0
    %270 = vmatpush1.bf16.xpose.msra.mxu0 0
    %271 = vmatprep.subr.bf16.mxu0 0
    %272 = vmatpush1.bf16.xpose.msra.mxu0 0
    %273 = vmatprep.subr.bf16.mxu0 0
    %274 = vmatpush1.bf16.xpose.msra.mxu0 0
    %275 = vmatprep.subr.bf16.mxu0 0
    %276 = vmatpush1.bf16.xpose.msra.mxu0 0
    %277 = vmatprep.subr.bf16.mxu0 0
    %278 = vmatpush1.bf16.xpose.msra.mxu0 0
    %279 = vmatprep.subr.bf16.mxu0 0
    %280 = vmatpush1.bf16.xpose.msra.mxu0 0
    %281 = vmatprep.subr.bf16.mxu0 0
    %282 = vmatpush1.bf16.xpose.msra.mxu0 0
    %283 = vmatprep.subr.bf16.mxu0 0
    %284 = vmatpush1.bf16.xpose.msra.mxu0 0
    %285 = vmatprep.mubr.bf16.mxu0 0
    %286 = vmatmul.mubr.bf16.gmra.mrb[0].mxu0 %v248
    %v287 = vpop.f32.mrb[0].mxu0
    %v288 = vadd.f32 0.0, %v287
    %v289 = vpop.f32.mrb[0].mxu0
    %v290 = vpop.f32.mrb[0].mxu0
    %v291 = vpop.f32.mrb[0].mxu0
    %292 = vdwg.mxu0
    %v293 = vmul.f32 %v288, 0.35355338
    %v294 = vsel %vm134, %v293, -inf
    %295 = vmax.xlane.f32.xlu0 %v294
    %v296 = vpop.xlane.xlu0 %295
    %v297 = vsub.f32 %v293, %v296
    %v298 = vmul.f32 %v297, 1.442695
    %v299 = vpow.pop %v298
    %v300 = vsel %vm134, %v299, 0.0
    %301 = vadd.xlane.f32.xlu0 %v300
    %v302 = vpop.xlane.xlu0 %301
    %v303 = vrcp.pop %v302
    %v304 = vmul.f32 %v299, %v303
    %v305 = vpack.c.bf16 %v304, %v304
    %306 = vrot.lane.b32.xlu0 %v130, 56
    %v307 = vpop.permute.xlu0 %306
    %v309 = vsel %vm134, %v305, 0
    %v312 = vsel %vm199, %v307, 0
    %314 = vmatprep.subr.bf16.mxu0 0
    %315 = vmatpush1.bf16.msra.mxu0 %v312
    %316 = vmatprep.subr.bf16.mxu0 0
    %317 = vmatpush1.bf16.msra.mxu0 0
    %318 = vmatprep.subr.bf16.mxu0 0
    %319 = vmatpush1.bf16.msra.mxu0 0
    %320 = vmatprep.subr.bf16.mxu0 0
    %321 = vmatpush1.bf16.msra.mxu0 0
    %322 = vmatprep.subr.bf16.mxu0 0
    %323 = vmatpush1.bf16.msra.mxu0 0
    %324 = vmatprep.subr.bf16.mxu0 0
    %325 = vmatpush1.bf16.msra.mxu0 0
    %326 = vmatprep.subr.bf16.mxu0 0
    %327 = vmatpush1.bf16.msra.mxu0 0
    %328 = vmatprep.subr.bf16.mxu0 0
    %329 = vmatpush1.bf16.msra.mxu0 0
    %330 = vmatprep.subr.bf16.mxu0 0
    %331 = vmatpush1.bf16.msra.mxu0 0
    %332 = vmatprep.subr.bf16.mxu0 0
    %333 = vmatpush1.bf16.msra.mxu0 0
    %334 = vmatprep.subr.bf16.mxu0 0
    %335 = vmatpush1.bf16.msra.mxu0 0
    %336 = vmatprep.subr.bf16.mxu0 0
    %337 = vmatpush1.bf16.msra.mxu0 0
    %338 = vmatprep.subr.bf16.mxu0 0
    %339 = vmatpush1.bf16.msra.mxu0 0
    %340 = vmatprep.subr.bf16.mxu0 0
    %341 = vmatpush1.bf16.msra.mxu0 0
    %342 = vmatprep.subr.bf16.mxu0 0
    %343 = vmatpush1.bf16.msra.mxu0 0
    %344 = vmatprep.subr.bf16.mxu0 0
    %345 = vmatpush1.bf16.msra.mxu0 0
    %346 = vmatprep.mubr.bf16.mxu0 0
    %347 = vmatmul.mubr.bf16.gmra.mrb[0].mxu0 %v309
    %v348 = vpop.f32.mrb[0].mxu0
    %v349 = vadd.f32 0.0, %v348
    %v350 = vpop.f32.mrb[0].mxu0
    %v351 = vpop.f32.mrb[0].mxu0
    %v352 = vpop.f32.mrb[0].mxu0
    %353 = vdwg.mxu0
    %354 = vrot.lane.b32.xlu0 %v130, 112
    %v355 = vpop.permute.xlu0 %354
    %356 = vrot.lane.b32.xlu0 %v130, 80
    %v357 = vpop.permute.xlu0 %356
    %v359 = vsel %vm134, %v355, 0
    %v362 = vsel %vm134, %v357, 0
    %364 = vmatprep.subr.bf16.mxu0 0
    %365 = vmatpush1.bf16.xpose.msra.mxu0 %v362
    %366 = vmatprep.subr.bf16.mxu0 0
    %367 = vmatpush1.bf16.xpose.msra.mxu0 0
    %368 = vmatprep.subr.bf16.mxu0 0
    %369 = vmatpush1.bf16.xpose.msra.mxu0 0
    %370 = vmatprep.subr.bf16.mxu0 0
    %371 = vmatpush1.bf16.xpose.msra.mxu0 0
    %372 = vmatprep.subr.bf16.mxu0 0
    %373 = vmatpush1.bf16.xpose.msra.mxu0 0
    %374 = vmatprep.subr.bf16.mxu0 0
    %375 = vmatpush1.bf16.xpose.msra.mxu0 0
    %376 = vmatprep.subr.bf16.mxu0 0
    %377 = vmatpush1.bf16.xpose.msra.mxu0 0
    %378 = vmatprep.subr.bf16.mxu0 0
    %379 = vmatpush1.bf16.xpose.msra.mxu0 0
    %380 = vmatprep.subr.bf16.mxu0 0
    %381 = vmatpush1.bf16.xpose.msra.mxu0 0
    %382 = vmatprep.subr.bf16.mxu0 0
    %383 = vmatpush1.bf16.xpose.msra.mxu0 0
    %384 = vmatprep.subr.bf16.mxu0 0
    %385 = vmatpush1.bf16.xpose.msra.mxu0 0
    %386 = vmatprep.subr.bf16.mxu0 0
    %387 = vmatpush1.bf16.xpose.msra.mxu0 0
    %388 = vmatprep.subr.bf16.mxu0 0
    %389 = vmatpush1.bf16.xpose.msra.mxu0 0
    %390 = vmatprep.subr.bf16.mxu0 0
    %391 = vmatpush1.bf16.xpose.msra.mxu0 0
    %392 = vmatprep.subr.bf16.mxu0 0
    %393 = vmatpush1.bf16.xpose.msra.mxu0 0
    %394 = vmatprep.subr.bf16.mxu0 0
    %395 = vmatpush1.bf16.xpose.msra.mxu0 0
    %396 = vmatprep.mubr.bf16.mxu0 0
    %397 = vmatmul.mubr.bf16.gmra.mrb[0].mxu0 %v359
    %v398 = vpop.f32.mrb[0].mxu0
    %v399 = vadd.f32 0.0, %v398
    %v400 = vpop.f32.mrb[0].mxu0
    %v401 = vpop.f32.mrb[0].mxu0
    %v402 = vpop.f32.mrb[0].mxu0
    %403 = vdwg.mxu0
    %v404 = vmul.f32 %v399, 0.35355338
    %v405 = vsel %vm134, %v404, -inf
    %406 = vmax.xlane.f32.xlu0 %v405
    %v407 = vpop.xlane.xlu0 %406
    %v408 = vsub.f32 %v404, %v407
    %v409 = vmul.f32 %v408, 1.442695
    %v410 = vpow.pop %v409
    %v411 = vsel %vm134, %v410, 0.0
    %412 = vadd.xlane.f32.xlu0 %v411
    %v413 = vpop.xlane.xlu0 %412
    %v414 = vrcp.pop %v413
    %v415 = vmul.f32 %v410, %v414
    %v416 = vpack.c.bf16 %v415, %v415
    %417 = vrot.lane.b32.xlu0 %v130, 48
    %v418 = vpop.permute.xlu0 %417
    %v420 = vsel %vm134, %v416, 0
    %v423 = vsel %vm199, %v418, 0
    %425 = vmatprep.subr.bf16.mxu0 0
    %426 = vmatpush1.bf16.msra.mxu0 %v423
    %427 = vmatprep.subr.bf16.mxu0 0
    %428 = vmatpush1.bf16.msra.mxu0 0
    %429 = vmatprep.subr.bf16.mxu0 0
    %430 = vmatpush1.bf16.msra.mxu0 0
    %431 = vmatprep.subr.bf16.mxu0 0
    %432 = vmatpush1.bf16.msra.mxu0 0
    %433 = vmatprep.subr.bf16.mxu0 0
    %434 = vmatpush1.bf16.msra.mxu0 0
    %435 = vmatprep.subr.bf16.mxu0 0
    %436 = vmatpush1.bf16.msra.mxu0 0
    %437 = vmatprep.subr.bf16.mxu0 0
    %438 = vmatpush1.bf16.msra.mxu0 0
    %439 = vmatprep.subr.bf16.mxu0 0
    %440 = vmatpush1.bf16.msra.mxu0 0
    %441 = vmatprep.subr.bf16.mxu0 0
    %442 = vmatpush1.bf16.msra.mxu0 0
    %443 = vmatprep.subr.bf16.mxu0 0
    %444 = vmatpush1.bf16.msra.mxu0 0
    %445 = vmatprep.subr.bf16.mxu0 0
    %446 = vmatpush1.bf16.msra.mxu0 0
    %447 = vmatprep.subr.bf16.mxu0 0
    %448 = vmatpush1.bf16.msra.mxu0 0
    %449 = vmatprep.subr.bf16.mxu0 0
    %450 = vmatpush1.bf16.msra.mxu0 0
    %451 = vmatprep.subr.bf16.mxu0 0
    %452 = vmatpush1.bf16.msra.mxu0 0
    %453 = vmatprep.subr.bf16.mxu0 0
    %454 = vmatpush1.bf16.msra.mxu0 0
    %455 = vmatprep.subr.bf16.mxu0 0
    %456 = vmatpush1.bf16.msra.mxu0 0
    %457 = vmatprep.mubr.bf16.mxu0 0
    %458 = vmatmul.mubr.bf16.gmra.mrb[0].mxu0 %v420
    %v459 = vpop.f32.mrb[0].mxu0
    %v460 = vadd.f32 0.0, %v459
    %v461 = vpop.f32.mrb[0].mxu0
    %v462 = vpop.f32.mrb[0].mxu0
    %v463 = vpop.f32.mrb[0].mxu0
    %464 = vdwg.mxu0
    %465 = vrot.lane.b32.xlu0 %v130, 104
    %v466 = vpop.permute.xlu0 %465
    %467 = vrot.lane.b32.xlu0 %v130, 72
    %v468 = vpop.permute.xlu0 %467
    %v470 = vsel %vm134, %v466, 0
    %v473 = vsel %vm134, %v468, 0
    %475 = vmatprep.subr.bf16.mxu0 0
    %476 = vmatpush1.bf16.xpose.msra.mxu0 %v473
    %477 = vmatprep.subr.bf16.mxu0 0
    %478 = vmatpush1.bf16.xpose.msra.mxu0 0
    %479 = vmatprep.subr.bf16.mxu0 0
    %480 = vmatpush1.bf16.xpose.msra.mxu0 0
    %481 = vmatprep.subr.bf16.mxu0 0
    %482 = vmatpush1.bf16.xpose.msra.mxu0 0
    %483 = vmatprep.subr.bf16.mxu0 0
    %484 = vmatpush1.bf16.xpose.msra.mxu0 0
    %485 = vmatprep.subr.bf16.mxu0 0
    %486 = vmatpush1.bf16.xpose.msra.mxu0 0
    %487 = vmatprep.subr.bf16.mxu0 0
    %488 = vmatpush1.bf16.xpose.msra.mxu0 0
    %489 = vmatprep.subr.bf16.mxu0 0
    %490 = vmatpush1.bf16.xpose.msra.mxu0 0
    %491 = vmatprep.subr.bf16.mxu0 0
    %492 = vmatpush1.bf16.xpose.msra.mxu0 0
    %493 = vmatprep.subr.bf16.mxu0 0
    %494 = vmatpush1.bf16.xpose.msra.mxu0 0
    %495 = vmatprep.subr.bf16.mxu0 0
    %496 = vmatpush1.bf16.xpose.msra.mxu0 0
    %497 = vmatprep.subr.bf16.mxu0 0
    %498 = vmatpush1.bf16.xpose.msra.mxu0 0
    %499 = vmatprep.subr.bf16.mxu0 0
    %500 = vmatpush1.bf16.xpose.msra.mxu0 0
    %501 = vmatprep.subr.bf16.mxu0 0
    %502 = vmatpush1.bf16.xpose.msra.mxu0 0
    %503 = vmatprep.subr.bf16.mxu0 0
    %504 = vmatpush1.bf16.xpose.msra.mxu0 0
    %505 = vmatprep.subr.bf16.mxu0 0
    %506 = vmatpush1.bf16.xpose.msra.mxu0 0
    %507 = vmatprep.mubr.bf16.mxu0 0
    %508 = vmatmul.mubr.bf16.gmra.mrb[0].mxu0 %v470
    %v509 = vpop.f32.mrb[0].mxu0
    %v510 = vadd.f32 0.0, %v509
    %v511 = vpop.f32.mrb[0].mxu0
    %v512 = vpop.f32.mrb[0].mxu0
    %v513 = vpop.f32.mrb[0].mxu0
    %514 = vdwg.mxu0
    %v515 = vmul.f32 %v510, 0.35355338
    %v516 = vsel %vm134, %v515, -inf
    %517 = vmax.xlane.f32.xlu0 %v516
    %v518 = vpop.xlane.xlu0 %517
    %v519 = vsub.f32 %v515, %v518
    %v520 = vmul.f32 %v519, 1.442695
    %v521 = vpow.pop %v520
    %v522 = vsel %vm134, %v521, 0.0
    %523 = vadd.xlane.f32.xlu0 %v522
    %v524 = vpop.xlane.xlu0 %523
    %v525 = vrcp.pop %v524
    %v526 = vmul.f32 %v521, %v525
    %v527 = vpack.c.bf16 %v526, %v526
    %528 = vrot.lane.b32.xlu0 %v130, 40
    %v529 = vpop.permute.xlu0 %528
    %v531 = vsel %vm134, %v527, 0
    %v534 = vsel %vm199, %v529, 0
    %536 = vmatprep.subr.bf16.mxu0 0
    %537 = vmatpush1.bf16.msra.mxu0 %v534
    %538 = vmatprep.subr.bf16.mxu0 0
    %539 = vmatpush1.bf16.msra.mxu0 0
    %540 = vmatprep.subr.bf16.mxu0 0
    %541 = vmatpush1.bf16.msra.mxu0 0
    %542 = vmatprep.subr.bf16.mxu0 0
    %543 = vmatpush1.bf16.msra.mxu0 0
    %544 = vmatprep.subr.bf16.mxu0 0
    %545 = vmatpush1.bf16.msra.mxu0 0
    %546 = vmatprep.subr.bf16.mxu0 0
    %547 = vmatpush1.bf16.msra.mxu0 0
    %548 = vmatprep.subr.bf16.mxu0 0
    %549 = vmatpush1.bf16.msra.mxu0 0
    %550 = vmatprep.subr.bf16.mxu0 0
    %551 = vmatpush1.bf16.msra.mxu0 0
    %552 = vmatprep.subr.bf16.mxu0 0
    %553 = vmatpush1.bf16.msra.mxu0 0
    %554 = vmatprep.subr.bf16.mxu0 0
    %555 = vmatpush1.bf16.msra.mxu0 0
    %556 = vmatprep.subr.bf16.mxu0 0
    %557 = vmatpush1.bf16.msra.mxu0 0
    %558 = vmatprep.subr.bf16.mxu0 0
    %559 = vmatpush1.bf16.msra.mxu0 0
    %560 = vmatprep.subr.bf16.mxu0 0
    %561 = vmatpush1.bf16.msra.mxu0 0
    %562 = vmatprep.subr.bf16.mxu0 0
    %563 = vmatpush1.bf16.msra.mxu0 0
    %564 = vmatprep.subr.bf16.mxu0 0
    %565 = vmatpush1.bf16.msra.mxu0 0
    %566 = vmatprep.subr.bf16.mxu0 0
    %567 = vmatpush1.bf16.msra.mxu0 0
    %568 = vmatprep.mubr.bf16.mxu0 0
    %569 = vmatmul.mubr.bf16.gmra.mrb[0].mxu0 %v531
    %v570 = vpop.f32.mrb[0].mxu0
    %v571 = vadd.f32 0.0, %v570
    %v572 = vpop.f32.mrb[0].mxu0
    %v573 = vpop.f32.mrb[0].mxu0
    %v574 = vpop.f32.mrb[0].mxu0
    %575 = vdwg.mxu0
    %577 = vrot.lane.b32.xlu0 %v304, 8
    %v578 = vpop.permute.xlu0 %577
    %581 = vrot.lane.b32.xlu0 %v415, 16
    %v582 = vpop.permute.xlu0 %581
    %585 = vrot.lane.b32.xlu0 %v526, 24
    %v586 = vpop.permute.xlu0 %585
    %v588 = vsel %vm134, %v192, %v578
    %vm589 = vcmask 130048
    %v590 = vsel %vm589, %v588, %v582
    %vm591 = vcmask 195584
    %v592 = vsel %vm591, %v590, %v586
    %594 = vrot.lane.b32.xlu0 %v349, 8
    %v595 = vpop.permute.xlu0 %594
    %598 = vrot.lane.b32.xlu0 %v460, 16
    %v599 = vpop.permute.xlu0 %598
    %602 = vrot.lane.b32.xlu0 %v571, 24
    %v603 = vpop.permute.xlu0 %602
    %v605 = vsel %vm134, %v238, %v595
    %v606 = vsel %vm589, %v605, %v599
    %v607 = vsel %vm591, %v606, %v603
    %v608 = vrot.slane %v130, 4
    %609 = vrot.lane.b32.xlu0 %v608, 96
    %v610 = vpop.permute.xlu0 %609
    %v612 = vsel %vm134, %v608, 0
    %v615 = vsel %vm134, %v610, 0
    %617 = vmatprep.subr.bf16.mxu0 0
    %618 = vmatpush1.bf16.xpose.msra.mxu0 %v615
    %619 = vmatprep.subr.bf16.mxu0 0
    %620 = vmatpush1.bf16.xpose.msra.mxu0 0
    %621 = vmatprep.subr.bf16.mxu0 0
    %622 = vmatpush1.bf16.xpose.msra.mxu0 0
    %623 = vmatprep.subr.bf16.mxu0 0
    %624 = vmatpush1.bf16.xpose.msra.mxu0 0
    %625 = vmatprep.subr.bf16.mxu0 0
    %626 = vmatpush1.bf16.xpose.msra.mxu0 0
    %627 = vmatprep.subr.bf16.mxu0 0
    %628 = vmatpush1.bf16.xpose.msra.mxu0 0
    %629 = vmatprep.subr.bf16.mxu0 0
    %630 = vmatpush1.bf16.xpose.msra.mxu0 0
    %631 = vmatprep.subr.bf16.mxu0 0
    %632 = vmatpush1.bf16.xpose.msra.mxu0 0
    %633 = vmatprep.subr.bf16.mxu0 0
    %634 = vmatpush1.bf16.xpose.msra.mxu0 0
    %635 = vmatprep.subr.bf16.mxu0 0
    %636 = vmatpush1.bf16.xpose.msra.mxu0 0
    %637 = vmatprep.subr.bf16.mxu0 0
    %638 = vmatpush1.bf16.xpose.msra.mxu0 0
    %639 = vmatprep.subr.bf16.mxu0 0
    %640 = vmatpush1.bf16.xpose.msra.mxu0 0
    %641 = vmatprep.subr.bf16.mxu0 0
    %642 = vmatpush1.bf16.xpose.msra.mxu0 0
    %643 = vmatprep.subr.bf16.mxu0 0
    %644 = vmatpush1.bf16.xpose.msra.mxu0 0
    %645 = vmatprep.subr.bf16.mxu0 0
    %646 = vmatpush1.bf16.xpose.msra.mxu0 0
    %647 = vmatprep.subr.bf16.mxu0 0
    %648 = vmatpush1.bf16.xpose.msra.mxu0 0
    %649 = vmatprep.mubr.bf16.mxu0 0
    %650 = vmatmul.mubr.bf16.gmra.mrb[0].mxu0 %v612
    %v651 = vpop.f32.mrb[0].mxu0
    %v652 = vadd.f32 0.0, %v651
    %v653 = vpop.f32.mrb[0].mxu0
    %v654 = vpop.f32.mrb[0].mxu0
    %v655 = vpop.f32.mrb[0].mxu0
    %656 = vdwg.mxu0
    %v657 = vmul.f32 %v652, 0.35355338
    %v658 = vsel %vm134, %v657, -inf
    %659 = vmax.xlane.f32.xlu0 %v658
    %v660 = vpop.xlane.xlu0 %659
    %v661 = vsub.f32 %v657, %v660
    %v662 = vmul.f32 %v661, 1.442695
    %v663 = vpow.pop %v662
    %v664 = vsel %vm134, %v663, 0.0
    %665 = vadd.xlane.f32.xlu0 %v664
    %v666 = vpop.xlane.xlu0 %665
    %v667 = vrcp.pop %v666
    %v668 = vmul.f32 %v663, %v667
    %v669 = vpack.c.bf16 %v668, %v668
    %670 = vrot.lane.b32.xlu0 %v608, 64
    %v671 = vpop.permute.xlu0 %670
    %v673 = vsel %vm134, %v669, 0
    %v676 = vsel %vm199, %v671, 0
    %678 = vmatprep.subr.bf16.mxu0 0
    %679 = vmatpush1.bf16.msra.mxu0 %v676
    %680 = vmatprep.subr.bf16.mxu0 0
    %681 = vmatpush1.bf16.msra.mxu0 0
    %682 = vmatprep.subr.bf16.mxu0 0
    %683 = vmatpush1.bf16.msra.mxu0 0
    %684 = vmatprep.subr.bf16.mxu0 0
    %685 = vmatpush1.bf16.msra.mxu0 0
    %686 = vmatprep.subr.bf16.mxu0 0
    %687 = vmatpush1.bf16.msra.mxu0 0
    %688 = vmatprep.subr.bf16.mxu0 0
    %689 = vmatpush1.bf16.msra.mxu0 0
    %690 = vmatprep.subr.bf16.mxu0 0
    %691 = vmatpush1.bf16.msra.mxu0 0
    %692 = vmatprep.subr.bf16.mxu0 0
    %693 = vmatpush1.bf16.msra.mxu0 0
    %694 = vmatprep.subr.bf16.mxu0 0
    %695 = vmatpush1.bf16.msra.mxu0 0
    %696 = vmatprep.subr.bf16.mxu0 0
    %697 = vmatpush1.bf16.msra.mxu0 0
    %698 = vmatprep.subr.bf16.mxu0 0
    %699 = vmatpush1.bf16.msra.mxu0 0
    %700 = vmatprep.subr.bf16.mxu0 0
    %701 = vmatpush1.bf16.msra.mxu0 0
    %702 = vmatprep.subr.bf16.mxu0 0
    %703 = vmatpush1.bf16.msra.mxu0 0
    %704 = vmatprep.subr.bf16.mxu0 0
    %705 = vmatpush1.bf16.msra.mxu0 0
    %706 = vmatprep.subr.bf16.mxu0 0
    %707 = vmatpush1.bf16.msra.mxu0 0
    %708 = vmatprep.subr.bf16.mxu0 0
    %709 = vmatpush1.bf16.msra.mxu0 0
    %710 = vmatprep.mubr.bf16.mxu0 0
    %711 = vmatmul.mubr.bf16.gmra.mrb[0].mxu0 %v673
    %v712 = vpop.f32.mrb[0].mxu0
    %v713 = vadd.f32 0.0, %v712
    %v714 = vpop.f32.mrb[0].mxu0
    %v715 = vpop.f32.mrb[0].mxu0
    %v716 = vpop.f32.mrb[0].mxu0
    %717 = vdwg.mxu0
    %718 = vrot.lane.b32.xlu0 %v608, 120
    %v719 = vpop.permute.xlu0 %718
    %720 = vrot.lane.b32.xlu0 %v608, 88
    %v721 = vpop.permute.xlu0 %720
    %v723 = vsel %vm134, %v719, 0
    %v726 = vsel %vm134, %v721, 0
    %728 = vmatprep.subr.bf16.mxu0 0
    %729 = vmatpush1.bf16.xpose.msra.mxu0 %v726
    %730 = vmatprep.subr.bf16.mxu0 0
    %731 = vmatpush1.bf16.xpose.msra.mxu0 0
    %732 = vmatprep.subr.bf16.mxu0 0
    %733 = vmatpush1.bf16.xpose.msra.mxu0 0
    %734 = vmatprep.subr.bf16.mxu0 0
    %735 = vmatpush1.bf16.xpose.msra.mxu0 0
    %736 = vmatprep.subr.bf16.mxu0 0
    %737 = vmatpush1.bf16.xpose.msra.mxu0 0
    %738 = vmatprep.subr.bf16.mxu0 0
    %739 = vmatpush1.bf16.xpose.msra.mxu0 0
    %740 = vmatprep.subr.bf16.mxu0 0
    %741 = vmatpush1.bf16.xpose.msra.mxu0 0
    %742 = vmatprep.subr.bf16.mxu0 0
    %743 = vmatpush1.bf16.xpose.msra.mxu0 0
    %744 = vmatprep.subr.bf16.mxu0 0
    %745 = vmatpush1.bf16.xpose.msra.mxu0 0
    %746 = vmatprep.subr.bf16.mxu0 0
    %747 = vmatpush1.bf16.xpose.msra.mxu0 0
    %748 = vmatprep.subr.bf16.mxu0 0
    %749 = vmatpush1.bf16.xpose.msra.mxu0 0
    %750 = vmatprep.subr.bf16.mxu0 0
    %751 = vmatpush1.bf16.xpose.msra.mxu0 0
    %752 = vmatprep.subr.bf16.mxu0 0
    %753 = vmatpush1.bf16.xpose.msra.mxu0 0
    %754 = vmatprep.subr.bf16.mxu0 0
    %755 = vmatpush1.bf16.xpose.msra.mxu0 0
    %756 = vmatprep.subr.bf16.mxu0 0
    %757 = vmatpush1.bf16.xpose.msra.mxu0 0
    %758 = vmatprep.subr.bf16.mxu0 0
    %759 = vmatpush1.bf16.xpose.msra.mxu0 0
    %760 = vmatprep.mubr.bf16.mxu0 0
    %761 = vmatmul.mubr.bf16.gmra.mrb[0].mxu0 %v723
    %v762 = vpop.f32.mrb[0].mxu0
    %v763 = vadd.f32 0.0, %v762
    %v764 = vpop.f32.mrb[0].mxu0
    %v765 = vpop.f32.mrb[0].mxu0
    %v766 = vpop.f32.mrb[0].mxu0
    %767 = vdwg.mxu0
    %v768 = vmul.f32 %v763, 0.35355338
    %v769 = vsel %vm134, %v768, -inf
    %770 = vmax.xlane.f32.xlu0 %v769
    %v771 = vpop.xlane.xlu0 %770
    %v772 = vsub.f32 %v768, %v771
    %v773 = vmul.f32 %v772, 1.442695
    %v774 = vpow.pop %v773
    %v775 = vsel %vm134, %v774, 0.0
    %776 = vadd.xlane.f32.xlu0 %v775
    %v777 = vpop.xlane.xlu0 %776
    %v778 = vrcp.pop %v777
    %v779 = vmul.f32 %v774, %v778
    %v780 = vpack.c.bf16 %v779, %v779
    %781 = vrot.lane.b32.xlu0 %v608, 56
    %v782 = vpop.permute.xlu0 %781
    %v784 = vsel %vm134, %v780, 0
    %v787 = vsel %vm199, %v782, 0
    %789 = vmatprep.subr.bf16.mxu0 0
    %790 = vmatpush1.bf16.msra.mxu0 %v787
    %791 = vmatprep.subr.bf16.mxu0 0
    %792 = vmatpush1.bf16.msra.mxu0 0
    %793 = vmatprep.subr.bf16.mxu0 0
    %794 = vmatpush1.bf16.msra.mxu0 0
    %795 = vmatprep.subr.bf16.mxu0 0
    %796 = vmatpush1.bf16.msra.mxu0 0
    %797 = vmatprep.subr.bf16.mxu0 0
    %798 = vmatpush1.bf16.msra.mxu0 0
    %799 = vmatprep.subr.bf16.mxu0 0
    %800 = vmatpush1.bf16.msra.mxu0 0
    %801 = vmatprep.subr.bf16.mxu0 0
    %802 = vmatpush1.bf16.msra.mxu0 0
    %803 = vmatprep.subr.bf16.mxu0 0
    %804 = vmatpush1.bf16.msra.mxu0 0
    %805 = vmatprep.subr.bf16.mxu0 0
    %806 = vmatpush1.bf16.msra.mxu0 0
    %807 = vmatprep.subr.bf16.mxu0 0
    %808 = vmatpush1.bf16.msra.mxu0 0
    %809 = vmatprep.subr.bf16.mxu0 0
    %810 = vmatpush1.bf16.msra.mxu0 0
    %811 = vmatprep.subr.bf16.mxu0 0
    %812 = vmatpush1.bf16.msra.mxu0 0
    %813 = vmatprep.subr.bf16.mxu0 0
    %814 = vmatpush1.bf16.msra.mxu0 0
    %815 = vmatprep.subr.bf16.mxu0 0
    %816 = vmatpush1.bf16.msra.mxu0 0
    %817 = vmatprep.subr.bf16.mxu0 0
    %818 = vmatpush1.bf16.msra.mxu0 0
    %819 = vmatprep.subr.bf16.mxu0 0
    %820 = vmatpush1.bf16.msra.mxu0 0
    %821 = vmatprep.mubr.bf16.mxu0 0
    %822 = vmatmul.mubr.bf16.gmra.mrb[0].mxu0 %v784
    %v823 = vpop.f32.mrb[0].mxu0
    %v824 = vadd.f32 0.0, %v823
    %v825 = vpop.f32.mrb[0].mxu0
    %v826 = vpop.f32.mrb[0].mxu0
    %v827 = vpop.f32.mrb[0].mxu0
    %828 = vdwg.mxu0
    %829 = vrot.lane.b32.xlu0 %v608, 112
    %v830 = vpop.permute.xlu0 %829
    %831 = vrot.lane.b32.xlu0 %v608, 80
    %v832 = vpop.permute.xlu0 %831
    %v834 = vsel %vm134, %v830, 0
    %v837 = vsel %vm134, %v832, 0
    %839 = vmatprep.subr.bf16.mxu0 0
    %840 = vmatpush1.bf16.xpose.msra.mxu0 %v837
    %841 = vmatprep.subr.bf16.mxu0 0
    %842 = vmatpush1.bf16.xpose.msra.mxu0 0
    %843 = vmatprep.subr.bf16.mxu0 0
    %844 = vmatpush1.bf16.xpose.msra.mxu0 0
    %845 = vmatprep.subr.bf16.mxu0 0
    %846 = vmatpush1.bf16.xpose.msra.mxu0 0
    %847 = vmatprep.subr.bf16.mxu0 0
    %848 = vmatpush1.bf16.xpose.msra.mxu0 0
    %849 = vmatprep.subr.bf16.mxu0 0
    %850 = vmatpush1.bf16.xpose.msra.mxu0 0
    %851 = vmatprep.subr.bf16.mxu0 0
    %852 = vmatpush1.bf16.xpose.msra.mxu0 0
    %853 = vmatprep.subr.bf16.mxu0 0
    %854 = vmatpush1.bf16.xpose.msra.mxu0 0
    %855 = vmatprep.subr.bf16.mxu0 0
    %856 = vmatpush1.bf16.xpose.msra.mxu0 0
    %857 = vmatprep.subr.bf16.mxu0 0
    %858 = vmatpush1.bf16.xpose.msra.mxu0 0
    %859 = vmatprep.subr.bf16.mxu0 0
    %860 = vmatpush1.bf16.xpose.msra.mxu0 0
    %861 = vmatprep.subr.bf16.mxu0 0
    %862 = vmatpush1.bf16.xpose.msra.mxu0 0
    %863 = vmatprep.subr.bf16.mxu0 0
    %864 = vmatpush1.bf16.xpose.msra.mxu0 0
    %865 = vmatprep.subr.bf16.mxu0 0
    %866 = vmatpush1.bf16.xpose.msra.mxu0 0
    %867 = vmatprep.subr.bf16.mxu0 0
    %868 = vmatpush1.bf16.xpose.msra.mxu0 0
    %869 = vmatprep.subr.bf16.mxu0 0
    %870 = vmatpush1.bf16.xpose.msra.mxu0 0
    %871 = vmatprep.mubr.bf16.mxu0 0
    %872 = vmatmul.mubr.bf16.gmra.mrb[0].mxu0 %v834
    %v873 = vpop.f32.mrb[0].mxu0
    %v874 = vadd.f32 0.0, %v873
    %v875 = vpop.f32.mrb[0].mxu0
    %v876 = vpop.f32.mrb[0].mxu0
    %v877 = vpop.f32.mrb[0].mxu0
    %878 = vdwg.mxu0
    %v879 = vmul.f32 %v874, 0.35355338
    %v880 = vsel %vm134, %v879, -inf
    %881 = vmax.xlane.f32.xlu0 %v880
    %v882 = vpop.xlane.xlu0 %881
    %v883 = vsub.f32 %v879, %v882
    %v884 = vmul.f32 %v883, 1.442695
    %v885 = vpow.pop %v884
    %v886 = vsel %vm134, %v885, 0.0
    %887 = vadd.xlane.f32.xlu0 %v886
    %v888 = vpop.xlane.xlu0 %887
    %v889 = vrcp.pop %v888
    %v890 = vmul.f32 %v885, %v889
    %v891 = vpack.c.bf16 %v890, %v890
    %892 = vrot.lane.b32.xlu0 %v608, 48
    %v893 = vpop.permute.xlu0 %892
    %v895 = vsel %vm134, %v891, 0
    %v898 = vsel %vm199, %v893, 0
    %900 = vmatprep.subr.bf16.mxu0 0
    %901 = vmatpush1.bf16.msra.mxu0 %v898
    %902 = vmatprep.subr.bf16.mxu0 0
    %903 = vmatpush1.bf16.msra.mxu0 0
    %904 = vmatprep.subr.bf16.mxu0 0
    %905 = vmatpush1.bf16.msra.mxu0 0
    %906 = vmatprep.subr.bf16.mxu0 0
    %907 = vmatpush1.bf16.msra.mxu0 0
    %908 = vmatprep.subr.bf16.mxu0 0
    %909 = vmatpush1.bf16.msra.mxu0 0
    %910 = vmatprep.subr.bf16.mxu0 0
    %911 = vmatpush1.bf16.msra.mxu0 0
    %912 = vmatprep.subr.bf16.mxu0 0
    %913 = vmatpush1.bf16.msra.mxu0 0
    %914 = vmatprep.subr.bf16.mxu0 0
    %915 = vmatpush1.bf16.msra.mxu0 0
    %916 = vmatprep.subr.bf16.mxu0 0
    %917 = vmatpush1.bf16.msra.mxu0 0
    %918 = vmatprep.subr.bf16.mxu0 0
    %919 = vmatpush1.bf16.msra.mxu0 0
    %920 = vmatprep.subr.bf16.mxu0 0
    %921 = vmatpush1.bf16.msra.mxu0 0
    %922 = vmatprep.subr.bf16.mxu0 0
    %923 = vmatpush1.bf16.msra.mxu0 0
    %924 = vmatprep.subr.bf16.mxu0 0
    %925 = vmatpush1.bf16.msra.mxu0 0
    %926 = vmatprep.subr.bf16.mxu0 0
    %927 = vmatpush1.bf16.msra.mxu0 0
    %928 = vmatprep.subr.bf16.mxu0 0
    %929 = vmatpush1.bf16.msra.mxu0 0
    %930 = vmatprep.subr.bf16.mxu0 0
    %931 = vmatpush1.bf16.msra.mxu0 0
    %932 = vmatprep.mubr.bf16.mxu0 0
    %933 = vmatmul.mubr.bf16.gmra.mrb[0].mxu0 %v895
    %v934 = vpop.f32.mrb[0].mxu0
    %v935 = vadd.f32 0.0, %v934
    %v936 = vpop.f32.mrb[0].mxu0
    %v937 = vpop.f32.mrb[0].mxu0
    %v938 = vpop.f32.mrb[0].mxu0
    %939 = vdwg.mxu0
    %940 = vrot.lane.b32.xlu0 %v608, 104
    %v941 = vpop.permute.xlu0 %940
    %942 = vrot.lane.b32.xlu0 %v608, 72
    %v943 = vpop.permute.xlu0 %942
    %v945 = vsel %vm134, %v941, 0
    %v948 = vsel %vm134, %v943, 0
    %950 = vmatprep.subr.bf16.mxu0 0
    %951 = vmatpush1.bf16.xpose.msra.mxu0 %v948
    %952 = vmatprep.subr.bf16.mxu0 0
    %953 = vmatpush1.bf16.xpose.msra.mxu0 0
    %954 = vmatprep.subr.bf16.mxu0 0
    %955 = vmatpush1.bf16.xpose.msra.mxu0 0
    %956 = vmatprep.subr.bf16.mxu0 0
    %957 = vmatpush1.bf16.xpose.msra.mxu0 0
    %958 = vmatprep.subr.bf16.mxu0 0
    %959 = vmatpush1.bf16.xpose.msra.mxu0 0
    %960 = vmatprep.subr.bf16.mxu0 0
    %961 = vmatpush1.bf16.xpose.msra.mxu0 0
    %962 = vmatprep.subr.bf16.mxu0 0
    %963 = vmatpush1.bf16.xpose.msra.mxu0 0
    %964 = vmatprep.subr.bf16.mxu0 0
    %965 = vmatpush1.bf16.xpose.msra.mxu0 0
    %966 = vmatprep.subr.bf16.mxu0 0
    %967 = vmatpush1.bf16.xpose.msra.mxu0 0
    %968 = vmatprep.subr.bf16.mxu0 0
    %969 = vmatpush1.bf16.xpose.msra.mxu0 0
    %970 = vmatprep.subr.bf16.mxu0 0
    %971 = vmatpush1.bf16.xpose.msra.mxu0 0
    %972 = vmatprep.subr.bf16.mxu0 0
    %973 = vmatpush1.bf16.xpose.msra.mxu0 0
    %974 = vmatprep.subr.bf16.mxu0 0
    %975 = vmatpush1.bf16.xpose.msra.mxu0 0
    %976 = vmatprep.subr.bf16.mxu0 0
    %977 = vmatpush1.bf16.xpose.msra.mxu0 0
    %978 = vmatprep.subr.bf16.mxu0 0
    %979 = vmatpush1.bf16.xpose.msra.mxu0 0
    %980 = vmatprep.subr.bf16.mxu0 0
    %981 = vmatpush1.bf16.xpose.msra.mxu0 0
    %982 = vmatprep.mubr.bf16.mxu0 0
    %983 = vmatmul.mubr.bf16.gmra.mrb[0].mxu0 %v945
    %v984 = vpop.f32.mrb[0].mxu0
    %v985 = vadd.f32 0.0, %v984
    %v986 = vpop.f32.mrb[0].mxu0
    %v987 = vpop.f32.mrb[0].mxu0
    %v988 = vpop.f32.mrb[0].mxu0
    %989 = vdwg.mxu0
    %v990 = vmul.f32 %v985, 0.35355338
    %v991 = vsel %vm134, %v990, -inf
    %992 = vmax.xlane.f32.xlu0 %v991
    %v993 = vpop.xlane.xlu0 %992
    %v994 = vsub.f32 %v990, %v993
    %v995 = vmul.f32 %v994, 1.442695
    %v996 = vpow.pop %v995
    %v997 = vsel %vm134, %v996, 0.0
    %998 = vadd.xlane.f32.xlu0 %v997
    %v999 = vpop.xlane.xlu0 %998
    %v1000 = vrcp.pop %v999
    %v1001 = vmul.f32 %v996, %v1000
    %v1002 = vpack.c.bf16 %v1001, %v1001
    %1003 = vrot.lane.b32.xlu0 %v608, 40
    %v1004 = vpop.permute.xlu0 %1003
    %v1006 = vsel %vm134, %v1002, 0
    %v1009 = vsel %vm199, %v1004, 0
    %1011 = vmatprep.subr.bf16.mxu0 0
    %1012 = vmatpush1.bf16.msra.mxu0 %v1009
    %1013 = vmatprep.subr.bf16.mxu0 0
    %1014 = vmatpush1.bf16.msra.mxu0 0
    %1015 = vmatprep.subr.bf16.mxu0 0
    %1016 = vmatpush1.bf16.msra.mxu0 0
    %1017 = vmatprep.subr.bf16.mxu0 0
    %1018 = vmatpush1.bf16.msra.mxu0 0
    %1019 = vmatprep.subr.bf16.mxu0 0
    %1020 = vmatpush1.bf16.msra.mxu0 0
    %1021 = vmatprep.subr.bf16.mxu0 0
    %1022 = vmatpush1.bf16.msra.mxu0 0
    %1023 = vmatprep.subr.bf16.mxu0 0
    %1024 = vmatpush1.bf16.msra.mxu0 0
    %1025 = vmatprep.subr.bf16.mxu0 0
    %1026 = vmatpush1.bf16.msra.mxu0 0
    %1027 = vmatprep.subr.bf16.mxu0 0
    %1028 = vmatpush1.bf16.msra.mxu0 0
    %1029 = vmatprep.subr.bf16.mxu0 0
    %1030 = vmatpush1.bf16.msra.mxu0 0
    %1031 = vmatprep.subr.bf16.mxu0 0
    %1032 = vmatpush1.bf16.msra.mxu0 0
    %1033 = vmatprep.subr.bf16.mxu0 0
    %1034 = vmatpush1.bf16.msra.mxu0 0
    %1035 = vmatprep.subr.bf16.mxu0 0
    %1036 = vmatpush1.bf16.msra.mxu0 0
    %1037 = vmatprep.subr.bf16.mxu0 0
    %1038 = vmatpush1.bf16.msra.mxu0 0
    %1039 = vmatprep.subr.bf16.mxu0 0
    %1040 = vmatpush1.bf16.msra.mxu0 0
    %1041 = vmatprep.subr.bf16.mxu0 0
    %1042 = vmatpush1.bf16.msra.mxu0 0
    %1043 = vmatprep.mubr.bf16.mxu0 0
    %1044 = vmatmul.mubr.bf16.gmra.mrb[0].mxu0 %v1006
    %v1045 = vpop.f32.mrb[0].mxu0
    %v1046 = vadd.f32 0.0, %v1045
    %v1047 = vpop.f32.mrb[0].mxu0
    %v1048 = vpop.f32.mrb[0].mxu0
    %v1049 = vpop.f32.mrb[0].mxu0
    %1050 = vdwg.mxu0
    %1052 = vrot.lane.b32.xlu0 %v779, 8
    %v1053 = vpop.permute.xlu0 %1052
    %1056 = vrot.lane.b32.xlu0 %v890, 16
    %v1057 = vpop.permute.xlu0 %1056
    %1060 = vrot.lane.b32.xlu0 %v1001, 24
    %v1061 = vpop.permute.xlu0 %1060
    %v1063 = vsel %vm134, %v668, %v1053
    %v1064 = vsel %vm589, %v1063, %v1057
    %v1065 = vsel %vm591, %v1064, %v1061
    %1067 = vrot.lane.b32.xlu0 %v824, 8
    %v1068 = vpop.permute.xlu0 %1067
    %1071 = vrot.lane.b32.xlu0 %v935, 16
    %v1072 = vpop.permute.xlu0 %1071
    %1075 = vrot.lane.b32.xlu0 %v1046, 24
    %v1076 = vpop.permute.xlu0 %1075
    %v1078 = vsel %vm134, %v713, %v1068
    %v1079 = vsel %vm589, %v1078, %v1072
    %v1080 = vsel %vm591, %v1079, %v1076
    %v1081 = vpack.c.bf16 %v1080, %v607
    %v1082 = vlaneseq
    %v1083 = vshrl.u32 %v1082, 7
    %v1084 = vsub.s32 1, %v1083
    %v1085 = vrot.slane %v67, %v1084
    %v1090 = vunpack.c.l.b16 %v51
    %v1091 = vunpack.c.l.b16 %v52
    %v1092 = vunpack.c.l.b16 %v53
    %v1093 = vunpack.c.l.b16 %v54
    %v1094 = vpack.c.b16 %v1091, %v1090
    %v1095 = vpack.c.b16 %v1093, %v1092
    %v1099 = vsel %vm85, %v1081, 0
    %1101 = vmatprep.subr.bf16.mxu0 0
    %1102 = vmatpush1.bf16.msra.mxu0 %v1094
    %1103 = vmatprep.subr.bf16.mxu0 0
    %1104 = vmatpush1.bf16.msra.mxu0 %v1095
    %1105 = vmatprep.subr.bf16.mxu0 0
    %1106 = vmatpush1.bf16.msra.mxu0 0
    %1107 = vmatprep.subr.bf16.mxu0 0
    %1108 = vmatpush1.bf16.msra.mxu0 0
    %1109 = vmatprep.subr.bf16.mxu0 0
    %1110 = vmatpush1.bf16.msra.mxu0 0
    %1111 = vmatprep.subr.bf16.mxu0 0
    %1112 = vmatpush1.bf16.msra.mxu0 0
    %1113 = vmatprep.subr.bf16.mxu0 0
    %1114 = vmatpush1.bf16.msra.mxu0 0
    %1115 = vmatprep.subr.bf16.mxu0 0
    %1116 = vmatpush1.bf16.msra.mxu0 0
    %1117 = vmatprep.subr.bf16.mxu0 0
    %1118 = vmatpush1.bf16.msra.mxu0 0
    %1119 = vmatprep.subr.bf16.mxu0 0
    %1120 = vmatpush1.bf16.msra.mxu0 0
    %1121 = vmatprep.subr.bf16.mxu0 0
    %1122 = vmatpush1.bf16.msra.mxu0 0
    %1123 = vmatprep.subr.bf16.mxu0 0
    %1124 = vmatpush1.bf16.msra.mxu0 0
    %1125 = vmatprep.subr.bf16.mxu0 0
    %1126 = vmatpush1.bf16.msra.mxu0 0
    %1127 = vmatprep.subr.bf16.mxu0 0
    %1128 = vmatpush1.bf16.msra.mxu0 0
    %1129 = vmatprep.subr.bf16.mxu0 0
    %1130 = vmatpush1.bf16.msra.mxu0 0
    %1131 = vmatprep.subr.bf16.mxu0 0
    %1132 = vmatpush1.bf16.msra.mxu0 0
    %1133 = vmatprep.mubr.bf16.mxu0 0
    %1134 = vmatmul.mubr.bf16.gmra.mrb[0].mxu0 %v1099
    %v1135 = vpop.f32.mrb[0].mxu0
    %v1136 = vadd.f32 %v1085, %v1135
    %v1137 = vpop.f32.mrb[0].mxu0
    %v1138 = vpop.f32.mrb[0].mxu0
    %v1139 = vadd.f32 %v1085, %v1138
    %v1140 = vpop.f32.mrb[0].mxu0
    %1141 = vdwg.mxu0
    %v1142 = vadd.f32 %v45, %v1136
    %v1143 = vadd.f32 %v46, %v1139
    %v1144 = vsel %vm85, %v1142, 0.0
    %1145 = vadd.xlane.f32.xlu0 %v1144
    %v1146 = vpop.xlane.xlu0 %1145
    %v1147 = vsel %vm85, %v1143, 0.0
    %1148 = vadd.xlane.f32.xlu0 %v1147
    %v1149 = vpop.xlane.xlu0 %1148
    %v1150 = vrcp.pop 32.0
    %v1151 = vmul.f32 %v1146, %v1150
    %v1152 = vmul.f32 %v1149, %v1150
    %v1153 = vsub.f32 %v1142, %v1151
    %v1154 = vsub.f32 %v1143, %v1152
    %v1155 = vmul.f32 %v1153, %v1153
    %v1156 = vmul.f32 %v1154, %v1154
    %v1157 = vsel %vm85, %v1155, 0.0
    %1158 = vadd.xlane.f32.xlu0 %v1157
    %v1159 = vpop.xlane.xlu0 %1158
    %v1160 = vsel %vm85, %v1156, 0.0
    %1161 = vadd.xlane.f32.xlu0 %v1160
    %v1162 = vpop.xlane.xlu0 %1161
    %v1163 = vrcp.pop 31.0
    %v1164 = vmul.f32 %v1159, %v1163
    %v1165 = vmul.f32 %v1162, %v1163
    %v1166 = vrsqrt.pop %v1164
    %v1167 = vmul.f32 %v1164, %v1166
    %vm1168 = vcmp.eq.f32.partialorder %v1164, inf
    %v1169 = vsel %vm1168, %v1164, %v1167
    %vm1170 = vcmp.eq.f32.partialorder %v1164, 0.0
    %v1171 = vand.u32 %v1164, 2147483648
    %v1172 = vsel %vm1170, %v1171, %v1169
    %v1173 = vrsqrt.pop %v1165
    %v1174 = vmul.f32 %v1165, %v1173
    %vm1175 = vcmp.eq.f32.partialorder %v1165, inf
    %v1176 = vsel %vm1175, %v1165, %v1174
    %vm1177 = vcmp.eq.f32.partialorder %v1165, 0.0
    %v1178 = vand.u32 %v1165, 2147483648
    %v1179 = vsel %vm1177, %v1178, %v1176
    %v1180 = vadd.f32 %v1172, 1e-06
    %v1181 = vadd.f32 %v1179, 1e-06
    %v1182 = vrcp.pop %v1180
    %v1183 = vrcp.pop %v1181
    %v1184 = vmul.f32 %v1153, %v1182
    %v1185 = vmul.f32 %v1154, %v1183
    %v1186 = vlaneseq
    %v1187 = vshrl.u32 %v1186, 7
    %v1188 = vsub.s32 4, %v1187
    %v1189 = vrot.slane %v67, %v1188
    %v1190 = vmul.f32 %v1189, %v1184
    %v1191 = vmul.f32 %v1189, %v1185
    %v1192 = vlaneseq
    %v1193 = vshrl.u32 %v1192, 7
    %v1194 = vsub.s32 5, %v1193
    %v1195 = vrot.slane %v67, %v1194
    %v1196 = vadd.f32 %v1190, %v1195
    %v1197 = vadd.f32 %v1191, %v1195
    %v1198 = vpack.c.bf16 %v1197, %v1196
    %v1199 = vlaneseq
    %v1200 = vshrl.u32 %v1199, 7
    %v1201 = vsub.s32 2, %v1200
    %v1202 = vrot.slane %v67, %v1201
    %v1207 = vunpack.c.l.b16 %v55
    %v1208 = vunpack.c.l.b16 %v56
    %v1209 = vunpack.c.l.b16 %v57
    %v1210 = vunpack.c.l.b16 %v58
    %v1211 = vpack.c.b16 %v1208, %v1207
    %v1212 = vpack.c.b16 %v1210, %v1209
    %v1216 = vsel %vm85, %v1198, 0
    %1218 = vmatprep.subr.bf16.mxu0 0
    %1219 = vmatpush1.bf16.msra.mxu0 %v1211
    %1220 = vmatprep.subr.bf16.mxu0 0
    %1221 = vmatpush1.bf16.msra.mxu0 %v1212
    %1222 = vmatprep.subr.bf16.mxu0 0
    %1223 = vmatpush1.bf16.msra.mxu0 0
    %1224 = vmatprep.subr.bf16.mxu0 0
    %1225 = vmatpush1.bf16.msra.mxu0 0
    %1226 = vmatprep.subr.bf16.mxu0 0
    %1227 = vmatpush1.bf16.msra.mxu0 0
    %1228 = vmatprep.subr.bf16.mxu0 0
    %1229 = vmatpush1.bf16.msra.mxu0 0
    %1230 = vmatprep.subr.bf16.mxu0 0
    %1231 = vmatpush1.bf16.msra.mxu0 0
    %1232 = vmatprep.subr.bf16.mxu0 0
    %1233 = vmatpush1.bf16.msra.mxu0 0
    %1234 = vmatprep.subr.bf16.mxu0 0
    %1235 = vmatpush1.bf16.msra.mxu0 0
    %1236 = vmatprep.subr.bf16.mxu0 0
    %1237 = vmatpush1.bf16.msra.mxu0 0
    %1238 = vmatprep.subr.bf16.mxu0 0
    %1239 = vmatpush1.bf16.msra.mxu0 0
    %1240 = vmatprep.subr.bf16.mxu0 0
    %1241 = vmatpush1.bf16.msra.mxu0 0
    %1242 = vmatprep.subr.bf16.mxu0 0
    %1243 = vmatpush1.bf16.msra.mxu0 0
    %1244 = vmatprep.subr.bf16.mxu0 0
    %1245 = vmatpush1.bf16.msra.mxu0 0
    %1246 = vmatprep.subr.bf16.mxu0 0
    %1247 = vmatpush1.bf16.msra.mxu0 0
    %1248 = vmatprep.subr.bf16.mxu0 0
    %1249 = vmatpush1.bf16.msra.mxu0 0
    %1250 = vmatprep.mubr.bf16.mxu0 0
    %1251 = vmatmul.mubr.bf16.gmra.mrb[0].mxu0 %v1216
    %v1252 = vpop.f32.mrb[0].mxu0
    %v1253 = vadd.f32 %v1202, %v1252
    %v1254 = vpop.f32.mrb[0].mxu0
    %v1255 = vpop.f32.mrb[0].mxu0
    %v1256 = vadd.f32 %v1202, %v1255
    %v1257 = vpop.f32.mrb[0].mxu0
    %1258 = vdwg.mxu0
    %v1259 = vmax.f32 %v1253, 0.0
    %v1260 = vmax.f32 %v1256, 0.0
    %v1261 = vpack.c.bf16 %v1260, %v1259
    %v1262 = vlaneseq
    %v1263 = vshrl.u32 %v1262, 7
    %v1264 = vsub.s32 3, %v1263
    %v1265 = vrot.slane %v67, %v1264
    %v1274 = vunpack.c.l.b16 %v59
    %v1275 = vunpack.c.l.b16 %v60
    %v1276 = vunpack.c.l.b16 %v61
    %v1277 = vunpack.c.l.b16 %v62
    %v1278 = vunpack.c.l.b16 %v63
    %v1279 = vunpack.c.l.b16 %v64
    %v1280 = vunpack.c.l.b16 %v65
    %v1281 = vunpack.c.l.b16 %v66
    %v1282 = vpack.c.b16 %v1275, %v1274
    %v1283 = vpack.c.b16 %v1277, %v1276
    %v1284 = vpack.c.b16 %v1279, %v1278
    %v1285 = vpack.c.b16 %v1281, %v1280
    %vm1290 = vcmask 523264
    %v1292 = vsel %vm1290, %v1261, 0
    %1294 = vmatprep.subr.bf16.mxu0 0
    %1295 = vmatpush1.bf16.msra.mxu0 %v1282
    %1296 = vmatprep.subr.bf16.mxu0 0
    %1297 = vmatpush1.bf16.msra.mxu0 %v1283
    %1298 = vmatprep.subr.bf16.mxu0 0
    %1299 = vmatpush1.bf16.msra.mxu0 %v1284
    %1300 = vmatprep.subr.bf16.mxu0 0
    %1301 = vmatpush1.bf16.msra.mxu0 %v1285
    %1302 = vmatprep.subr.bf16.mxu0 0
    %1303 = vmatpush1.bf16.msra.mxu0 0
    %1304 = vmatprep.subr.bf16.mxu0 0
    %1305 = vmatpush1.bf16.msra.mxu0 0
    %1306 = vmatprep.subr.bf16.mxu0 0
    %1307 = vmatpush1.bf16.msra.mxu0 0
    %1308 = vmatprep.subr.bf16.mxu0 0
    %1309 = vmatpush1.bf16.msra.mxu0 0
    %1310 = vmatprep.subr.bf16.mxu0 0
    %1311 = vmatpush1.bf16.msra.mxu0 0
    %1312 = vmatprep.subr.bf16.mxu0 0
    %1313 = vmatpush1.bf16.msra.mxu0 0
    %1314 = vmatprep.subr.bf16.mxu0 0
    %1315 = vmatpush1.bf16.msra.mxu0 0
    %1316 = vmatprep.subr.bf16.mxu0 0
    %1317 = vmatpush1.bf16.msra.mxu0 0
    %1318 = vmatprep.subr.bf16.mxu0 0
    %1319 = vmatpush1.bf16.msra.mxu0 0
    %1320 = vmatprep.subr.bf16.mxu0 0
    %1321 = vmatpush1.bf16.msra.mxu0 0
    %1322 = vmatprep.subr.bf16.mxu0 0
    %1323 = vmatpush1.bf16.msra.mxu0 0
    %1324 = vmatprep.subr.bf16.mxu0 0
    %1325 = vmatpush1.bf16.msra.mxu0 0
    %1326 = vmatprep.mubr.bf16.mxu0 0
    %1327 = vmatmul.mubr.bf16.gmra.mrb[0].mxu0 %v1292
    %v1328 = vpop.f32.mrb[0].mxu0
    %v1329 = vadd.f32 %v1265, %v1328
    %v1330 = vpop.f32.mrb[0].mxu0
    %v1331 = vpop.f32.mrb[0].mxu0
    %v1332 = vadd.f32 %v1265, %v1331
    %v1333 = vpop.f32.mrb[0].mxu0
    %1334 = vdwg.mxu0
    %v1335 = vadd.f32 %v1196, %v1329
    %v1336 = vadd.f32 %v1197, %v1332
    %v1337 = vsel %vm85, %v1335, 0.0
    %1338 = vadd.xlane.f32.xlu0 %v1337
    %v1339 = vpop.xlane.xlu0 %1338
    %v1340 = vsel %vm85, %v1336, 0.0
    %1341 = vadd.xlane.f32.xlu0 %v1340
    %v1342 = vpop.xlane.xlu0 %1341
    %v1343 = vmul.f32 %v1339, %v1150
    %v1344 = vmul.f32 %v1342, %v1150
    %v1345 = vsub.f32 %v1335, %v1343
    %v1346 = vsub.f32 %v1336, %v1344
    %v1347 = vmul.f32 %v1345, %v1345
    %v1348 = vmul.f32 %v1346, %v1346
    %v1349 = vsel %vm85, %v1347, 0.0
    %1350 = vadd.xlane.f32.xlu0 %v1349
    %v1351 = vpop.xlane.xlu0 %1350
    %v1352 = vsel %vm85, %v1348, 0.0
    %1353 = vadd.xlane.f32.xlu0 %v1352
    %v1354 = vpop.xlane.xlu0 %1353
    %v1355 = vmul.f32 %v1351, %v1163
    %v1356 = vmul.f32 %v1354, %v1163
    %v1357 = vrsqrt.pop %v1355
    %v1358 = vmul.f32 %v1355, %v1357
    %vm1359 = vcmp.eq.f32.partialorder %v1355, inf
    %v1360 = vsel %vm1359, %v1355, %v1358
    %vm1361 = vcmp.eq.f32.partialorder %v1355, 0.0
    %v1362 = vand.u32 %v1355, 2147483648
    %v1363 = vsel %vm1361, %v1362, %v1360
    %v1364 = vrsqrt.pop %v1356
    %v1365 = vmul.f32 %v1356, %v1364
    %vm1366 = vcmp.eq.f32.partialorder %v1356, inf
    %v1367 = vsel %vm1366, %v1356, %v1365
    %vm1368 = vcmp.eq.f32.partialorder %v1356, 0.0
    %v1369 = vand.u32 %v1356, 2147483648
    %v1370 = vsel %vm1368, %v1369, %v1367
    %v1371 = vadd.f32 %v1363, 1e-06
    %v1372 = vadd.f32 %v1370, 1e-06
    %v1373 = vrcp.pop %v1371
    %v1374 = vrcp.pop %v1372
    %v1375 = vmul.f32 %v1345, %v1373
    %v1376 = vmul.f32 %v1346, %v1374
    %v1377 = vlaneseq
    %v1378 = vshrl.u32 %v1377, 7
    %v1379 = vsub.s32 6, %v1378
    %v1380 = vrot.slane %v67, %v1379
    %v1381 = vmul.f32 %v1380, %v1375
    %v1382 = vmul.f32 %v1380, %v1376
    %v1383 = vlaneseq
    %v1384 = vshrl.u32 %v1383, 7
    %v1385 = vsub.s32 7, %v1384
    %v1386 = vrot.slane %v67, %v1385
    %v1387 = vadd.f32 %v1381, %v1386
    %v1388 = vadd.f32 %v1382, %v1386
    %s1389 = scalar_lea.vmem %s1, 16
    %v1390 = vld [vmem:[%s1389] sm:$0xf]
    %v1391 = vld [vmem:[%s1389 + $0x4] sm:$0xf]
    %v1392 = vld [vmem:[%s1389 + $0x8] sm:$0xf]
    %v1393 = vld [vmem:[%s1389 + $0xc] sm:$0xf]
    %s1394 = scalar_lea.vmem %s2, 16
    %v1395 = vld [vmem:[%s1394] sm:$0xf]
    %v1396 = vld [vmem:[%s1394 + $0x4] sm:$0xf]
    %v1397 = vld [vmem:[%s1394 + $0x8] sm:$0xf]
    %v1398 = vld [vmem:[%s1394 + $0xc] sm:$0xf]
    %s1399 = scalar_lea.vmem %s3, 16
    %v1400 = vld [vmem:[%s1399] sm:$0xf]
    %v1401 = vld [vmem:[%s1399 + $0x4] sm:$0xf]
    %v1402 = vld [vmem:[%s1399 + $0x8] sm:$0xf]
    %v1403 = vld [vmem:[%s1399 + $0xc] sm:$0xf]
    %s1404 = scalar_lea.vmem %s4, 32
    %v1405 = vld [vmem:[%s1404] sm:$0xf]
    %v1406 = vld [vmem:[%s1404 + $0x4] sm:$0xf]
    %v1407 = vld [vmem:[%s1404 + $0x8] sm:$0xf]
    %v1408 = vld [vmem:[%s1404 + $0xc] sm:$0xf]
    %v1409 = vld [vmem:[%s1404 + $0x10] sm:$0xf]
    %v1410 = vld [vmem:[%s1404 + $0x14] sm:$0xf]
    %v1411 = vld [vmem:[%s1404 + $0x18] sm:$0xf]
    %v1412 = vld [vmem:[%s1404 + $0x1c] sm:$0xf]
    %s1413 = scalar_lea.vmem %s5, 8
    %v1414 = vld [vmem:[%s1413] sm:$0xff]
    %v1415 = vpack.c.bf16 %v1388, %v1387
    %v1416 = vlaneseq
    %v1417 = vshrl.u32 %v1416, 7
    %v1418 = vsub.s32 0, %v1417
    %v1419 = vrot.slane %v1414, %v1418
    %v1424 = vunpack.c.l.b16 %v1390
    %v1425 = vunpack.c.l.b16 %v1391
    %v1426 = vunpack.c.l.b16 %v1392
    %v1427 = vunpack.c.l.b16 %v1393
    %v1428 = vpack.c.b16 %v1425, %v1424
    %v1429 = vpack.c.b16 %v1427, %v1426
    %v1433 = vsel %vm85, %v1415, 0
    %1435 = vmatprep.subr.bf16.mxu0 0
    %1436 = vmatpush1.bf16.msra.mxu0 %v1428
    %1437 = vmatprep.subr.bf16.mxu0 0
    %1438 = vmatpush1.bf16.msra.mxu0 %v1429
    %1439 = vmatprep.subr.bf16.mxu0 0
    %1440 = vmatpush1.bf16.msra.mxu0 0
    %1441 = vmatprep.subr.bf16.mxu0 0
    %1442 = vmatpush1.bf16.msra.mxu0 0
    %1443 = vmatprep.subr.bf16.mxu0 0
    %1444 = vmatpush1.bf16.msra.mxu0 0
    %1445 = vmatprep.subr.bf16.mxu0 0
    %1446 = vmatpush1.bf16.msra.mxu0 0
    %1447 = vmatprep.subr.bf16.mxu0 0
    %1448 = vmatpush1.bf16.msra.mxu0 0
    %1449 = vmatprep.subr.bf16.mxu0 0
    %1450 = vmatpush1.bf16.msra.mxu0 0
    %1451 = vmatprep.subr.bf16.mxu0 0
    %1452 = vmatpush1.bf16.msra.mxu0 0
    %1453 = vmatprep.subr.bf16.mxu0 0
    %1454 = vmatpush1.bf16.msra.mxu0 0
    %1455 = vmatprep.subr.bf16.mxu0 0
    %1456 = vmatpush1.bf16.msra.mxu0 0
    %1457 = vmatprep.subr.bf16.mxu0 0
    %1458 = vmatpush1.bf16.msra.mxu0 0
    %1459 = vmatprep.subr.bf16.mxu0 0
    %1460 = vmatpush1.bf16.msra.mxu0 0
    %1461 = vmatprep.subr.bf16.mxu0 0
    %1462 = vmatpush1.bf16.msra.mxu0 0
    %1463 = vmatprep.subr.bf16.mxu0 0
    %1464 = vmatpush1.bf16.msra.mxu0 0
    %1465 = vmatprep.subr.bf16.mxu0 0
    %1466 = vmatpush1.bf16.msra.mxu0 0
    %1467 = vmatprep.mubr.bf16.mxu0 0
    %1468 = vmatmul.mubr.bf16.gmra.mrb[0].mxu0 %v1433
    %v1469 = vpop.f32.mrb[0].mxu0
    %v1470 = vadd.f32 %v1419, %v1469
    %v1471 = vpop.f32.mrb[0].mxu0
    %v1472 = vpop.f32.mrb[0].mxu0
    %v1473 = vadd.f32 %v1419, %v1472
    %v1474 = vpop.f32.mrb[0].mxu0
    %1475 = vdwg.mxu0
    %v1476 = vpack.c.bf16 %v1473, %v1470
    %1478 = vrot.lane.b32.xlu0 %v1476, 96
    %v1479 = vpop.permute.xlu0 %1478
    %v1481 = vsel %vm134, %v1476, 0
    %v1484 = vsel %vm134, %v1479, 0
    %1486 = vmatprep.subr.bf16.mxu0 0
    %1487 = vmatpush1.bf16.xpose.msra.mxu0 %v1484
    %1488 = vmatprep.subr.bf16.mxu0 0
    %1489 = vmatpush1.bf16.xpose.msra.mxu0 0
    %1490 = vmatprep.subr.bf16.mxu0 0
    %1491 = vmatpush1.bf16.xpose.msra.mxu0 0
    %1492 = vmatprep.subr.bf16.mxu0 0
    %1493 = vmatpush1.bf16.xpose.msra.mxu0 0
    %1494 = vmatprep.subr.bf16.mxu0 0
    %1495 = vmatpush1.bf16.xpose.msra.mxu0 0
    %1496 = vmatprep.subr.bf16.mxu0 0
    %1497 = vmatpush1.bf16.xpose.msra.mxu0 0
    %1498 = vmatprep.subr.bf16.mxu0 0
    %1499 = vmatpush1.bf16.xpose.msra.mxu0 0
    %1500 = vmatprep.subr.bf16.mxu0 0
    %1501 = vmatpush1.bf16.xpose.msra.mxu0 0
    %1502 = vmatprep.subr.bf16.mxu0 0
    %1503 = vmatpush1.bf16.xpose.msra.mxu0 0
    %1504 = vmatprep.subr.bf16.mxu0 0
    %1505 = vmatpush1.bf16.xpose.msra.mxu0 0
    %1506 = vmatprep.subr.bf16.mxu0 0
    %1507 = vmatpush1.bf16.xpose.msra.mxu0 0
    %1508 = vmatprep.subr.bf16.mxu0 0
    %1509 = vmatpush1.bf16.xpose.msra.mxu0 0
    %1510 = vmatprep.subr.bf16.mxu0 0
    %1511 = vmatpush1.bf16.xpose.msra.mxu0 0
    %1512 = vmatprep.subr.bf16.mxu0 0
    %1513 = vmatpush1.bf16.xpose.msra.mxu0 0
    %1514 = vmatprep.subr.bf16.mxu0 0
    %1515 = vmatpush1.bf16.xpose.msra.mxu0 0
    %1516 = vmatprep.subr.bf16.mxu0 0
    %1517 = vmatpush1.bf16.xpose.msra.mxu0 0
    %1518 = vmatprep.mubr.bf16.mxu0 0
    %1519 = vmatmul.mubr.bf16.gmra.mrb[0].mxu0 %v1481
    %v1520 = vpop.f32.mrb[0].mxu0
    %v1521 = vadd.f32 0.0, %v1520
    %v1522 = vpop.f32.mrb[0].mxu0
    %v1523 = vpop.f32.mrb[0].mxu0
    %v1524 = vpop.f32.mrb[0].mxu0
    %1525 = vdwg.mxu0
    %v1526 = vmul.f32 %v1521, 0.35355338
    %v1527 = vsel %vm134, %v1526, -inf
    %1528 = vmax.xlane.f32.xlu0 %v1527
    %v1529 = vpop.xlane.xlu0 %1528
    %v1530 = vsub.f32 %v1526, %v1529
    %v1531 = vmul.f32 %v1530, 1.442695
    %v1532 = vpow.pop %v1531
    %v1533 = vsel %vm134, %v1532, 0.0
    %1534 = vadd.xlane.f32.xlu0 %v1533
    %v1535 = vpop.xlane.xlu0 %1534
    %v1536 = vrcp.pop %v1535
    %v1537 = vmul.f32 %v1532, %v1536
    %v1538 = vpack.c.bf16 %v1537, %v1537
    %1539 = vrot.lane.b32.xlu0 %v1476, 64
    %v1540 = vpop.permute.xlu0 %1539
    %v1542 = vsel %vm134, %v1538, 0
    %v1545 = vsel %vm199, %v1540, 0
    %1547 = vmatprep.subr.bf16.mxu0 0
    %1548 = vmatpush1.bf16.msra.mxu0 %v1545
    %1549 = vmatprep.subr.bf16.mxu0 0
    %1550 = vmatpush1.bf16.msra.mxu0 0
    %1551 = vmatprep.subr.bf16.mxu0 0
    %1552 = vmatpush1.bf16.msra.mxu0 0
    %1553 = vmatprep.subr.bf16.mxu0 0
    %1554 = vmatpush1.bf16.msra.mxu0 0
    %1555 = vmatprep.subr.bf16.mxu0 0
    %1556 = vmatpush1.bf16.msra.mxu0 0
    %1557 = vmatprep.subr.bf16.mxu0 0
    %1558 = vmatpush1.bf16.msra.mxu0 0
    %1559 = vmatprep.subr.bf16.mxu0 0
    %1560 = vmatpush1.bf16.msra.mxu0 0
    %1561 = vmatprep.subr.bf16.mxu0 0
    %1562 = vmatpush1.bf16.msra.mxu0 0
    %1563 = vmatprep.subr.bf16.mxu0 0
    %1564 = vmatpush1.bf16.msra.mxu0 0
    %1565 = vmatprep.subr.bf16.mxu0 0
    %1566 = vmatpush1.bf16.msra.mxu0 0
    %1567 = vmatprep.subr.bf16.mxu0 0
    %1568 = vmatpush1.bf16.msra.mxu0 0
    %1569 = vmatprep.subr.bf16.mxu0 0
    %1570 = vmatpush1.bf16.msra.mxu0 0
    %1571 = vmatprep.subr.bf16.mxu0 0
    %1572 = vmatpush1.bf16.msra.mxu0 0
    %1573 = vmatprep.subr.bf16.mxu0 0
    %1574 = vmatpush1.bf16.msra.mxu0 0
    %1575 = vmatprep.subr.bf16.mxu0 0
    %1576 = vmatpush1.bf16.msra.mxu0 0
    %1577 = vmatprep.subr.bf16.mxu0 0
    %1578 = vmatpush1.bf16.msra.mxu0 0
    %1579 = vmatprep.mubr.bf16.mxu0 0
    %1580 = vmatmul.mubr.bf16.gmra.mrb[0].mxu0 %v1542
    %v1581 = vpop.f32.mrb[0].mxu0
    %v1582 = vadd.f32 0.0, %v1581
    %v1583 = vpop.f32.mrb[0].mxu0
    %v1584 = vpop.f32.mrb[0].mxu0
    %v1585 = vpop.f32.mrb[0].mxu0
    %1586 = vdwg.mxu0
    %1587 = vrot.lane.b32.xlu0 %v1476, 120
    %v1588 = vpop.permute.xlu0 %1587
    %1589 = vrot.lane.b32.xlu0 %v1476, 88
    %v1590 = vpop.permute.xlu0 %1589
    %v1592 = vsel %vm134, %v1588, 0
    %v1595 = vsel %vm134, %v1590, 0
    %1597 = vmatprep.subr.bf16.mxu0 0
    %1598 = vmatpush1.bf16.xpose.msra.mxu0 %v1595
    %1599 = vmatprep.subr.bf16.mxu0 0
    %1600 = vmatpush1.bf16.xpose.msra.mxu0 0
    %1601 = vmatprep.subr.bf16.mxu0 0
    %1602 = vmatpush1.bf16.xpose.msra.mxu0 0
    %1603 = vmatprep.subr.bf16.mxu0 0
    %1604 = vmatpush1.bf16.xpose.msra.mxu0 0
    %1605 = vmatprep.subr.bf16.mxu0 0
    %1606 = vmatpush1.bf16.xpose.msra.mxu0 0
    %1607 = vmatprep.subr.bf16.mxu0 0
    %1608 = vmatpush1.bf16.xpose.msra.mxu0 0
    %1609 = vmatprep.subr.bf16.mxu0 0
    %1610 = vmatpush1.bf16.xpose.msra.mxu0 0
    %1611 = vmatprep.subr.bf16.mxu0 0
    %1612 = vmatpush1.bf16.xpose.msra.mxu0 0
    %1613 = vmatprep.subr.bf16.mxu0 0
    %1614 = vmatpush1.bf16.xpose.msra.mxu0 0
    %1615 = vmatprep.subr.bf16.mxu0 0
    %1616 = vmatpush1.bf16.xpose.msra.mxu0 0
    %1617 = vmatprep.subr.bf16.mxu0 0
    %1618 = vmatpush1.bf16.xpose.msra.mxu0 0
    %1619 = vmatprep.subr.bf16.mxu0 0
    %1620 = vmatpush1.bf16.xpose.msra.mxu0 0
    %1621 = vmatprep.subr.bf16.mxu0 0
    %1622 = vmatpush1.bf16.xpose.msra.mxu0 0
    %1623 = vmatprep.subr.bf16.mxu0 0
    %1624 = vmatpush1.bf16.xpose.msra.mxu0 0
    %1625 = vmatprep.subr.bf16.mxu0 0
    %1626 = vmatpush1.bf16.xpose.msra.mxu0 0
    %1627 = vmatprep.subr.bf16.mxu0 0
    %1628 = vmatpush1.bf16.xpose.msra.mxu0 0
    %1629 = vmatprep.mubr.bf16.mxu0 0
    %1630 = vmatmul.mubr.bf16.gmra.mrb[0].mxu0 %v1592
    %v1631 = vpop.f32.mrb[0].mxu0
    %v1632 = vadd.f32 0.0, %v1631
    %v1633 = vpop.f32.mrb[0].mxu0
    %v1634 = vpop.f32.mrb[0].mxu0
    %v1635 = vpop.f32.mrb[0].mxu0
    %1636 = vdwg.mxu0
    %v1637 = vmul.f32 %v1632, 0.35355338
    %v1638 = vsel %vm134, %v1637, -inf
    %1639 = vmax.xlane.f32.xlu0 %v1638
    %v1640 = vpop.xlane.xlu0 %1639
    %v1641 = vsub.f32 %v1637, %v1640
    %v1642 = vmul.f32 %v1641, 1.442695
    %v1643 = vpow.pop %v1642
    %v1644 = vsel %vm134, %v1643, 0.0
    %1645 = vadd.xlane.f32.xlu0 %v1644
    %v1646 = vpop.xlane.xlu0 %1645
    %v1647 = vrcp.pop %v1646
    %v1648 = vmul.f32 %v1643, %v1647
    %v1649 = vpack.c.bf16 %v1648, %v1648
    %1650 = vrot.lane.b32.xlu0 %v1476, 56
    %v1651 = vpop.permute.xlu0 %1650
    %v1653 = vsel %vm134, %v1649, 0
    %v1656 = vsel %vm199, %v1651, 0
    %1658 = vmatprep.subr.bf16.mxu0 0
    %1659 = vmatpush1.bf16.msra.mxu0 %v1656
    %1660 = vmatprep.subr.bf16.mxu0 0
    %1661 = vmatpush1.bf16.msra.mxu0 0
    %1662 = vmatprep.subr.bf16.mxu0 0
    %1663 = vmatpush1.bf16.msra.mxu0 0
    %1664 = vmatprep.subr.bf16.mxu0 0
    %1665 = vmatpush1.bf16.msra.mxu0 0
    %1666 = vmatprep.subr.bf16.mxu0 0
    %1667 = vmatpush1.bf16.msra.mxu0 0
    %1668 = vmatprep.subr.bf16.mxu0 0
    %1669 = vmatpush1.bf16.msra.mxu0 0
    %1670 = vmatprep.subr.bf16.mxu0 0
    %1671 = vmatpush1.bf16.msra.mxu0 0
    %1672 = vmatprep.subr.bf16.mxu0 0
    %1673 = vmatpush1.bf16.msra.mxu0 0
    %1674 = vmatprep.subr.bf16.mxu0 0
    %1675 = vmatpush1.bf16.msra.mxu0 0
    %1676 = vmatprep.subr.bf16.mxu0 0
    %1677 = vmatpush1.bf16.msra.mxu0 0
    %1678 = vmatprep.subr.bf16.mxu0 0
    %1679 = vmatpush1.bf16.msra.mxu0 0
    %1680 = vmatprep.subr.bf16.mxu0 0
    %1681 = vmatpush1.bf16.msra.mxu0 0
    %1682 = vmatprep.subr.bf16.mxu0 0
    %1683 = vmatpush1.bf16.msra.mxu0 0
    %1684 = vmatprep.subr.bf16.mxu0 0
    %1685 = vmatpush1.bf16.msra.mxu0 0
    %1686 = vmatprep.subr.bf16.mxu0 0
    %1687 = vmatpush1.bf16.msra.mxu0 0
    %1688 = vmatprep.subr.bf16.mxu0 0
    %1689 = vmatpush1.bf16.msra.mxu0 0
    %1690 = vmatprep.mubr.bf16.mxu0 0
    %1691 = vmatmul.mubr.bf16.gmra.mrb[0].mxu0 %v1653
    %v1692 = vpop.f32.mrb[0].mxu0
    %v1693 = vadd.f32 0.0, %v1692
    %v1694 = vpop.f32.mrb[0].mxu0
    %v1695 = vpop.f32.mrb[0].mxu0
    %v1696 = vpop.f32.mrb[0].mxu0
    %1697 = vdwg.mxu0
    %1698 = vrot.lane.b32.xlu0 %v1476, 112
    %v1699 = vpop.permute.xlu0 %1698
    %1700 = vrot.lane.b32.xlu0 %v1476, 80
    %v1701 = vpop.permute.xlu0 %1700
    %v1703 = vsel %vm134, %v1699, 0
    %v1706 = vsel %vm134, %v1701, 0
    %1708 = vmatprep.subr.bf16.mxu0 0
    %1709 = vmatpush1.bf16.xpose.msra.mxu0 %v1706
    %1710 = vmatprep.subr.bf16.mxu0 0
    %1711 = vmatpush1.bf16.xpose.msra.mxu0 0
    %1712 = vmatprep.subr.bf16.mxu0 0
    %1713 = vmatpush1.bf16.xpose.msra.mxu0 0
    %1714 = vmatprep.subr.bf16.mxu0 0
    %1715 = vmatpush1.bf16.xpose.msra.mxu0 0
    %1716 = vmatprep.subr.bf16.mxu0 0
    %1717 = vmatpush1.bf16.xpose.msra.mxu0 0
    %1718 = vmatprep.subr.bf16.mxu0 0
    %1719 = vmatpush1.bf16.xpose.msra.mxu0 0
    %1720 = vmatprep.subr.bf16.mxu0 0
    %1721 = vmatpush1.bf16.xpose.msra.mxu0 0
    %1722 = vmatprep.subr.bf16.mxu0 0
    %1723 = vmatpush1.bf16.xpose.msra.mxu0 0
    %1724 = vmatprep.subr.bf16.mxu0 0
    %1725 = vmatpush1.bf16.xpose.msra.mxu0 0
    %1726 = vmatprep.subr.bf16.mxu0 0
    %1727 = vmatpush1.bf16.xpose.msra.mxu0 0
    %1728 = vmatprep.subr.bf16.mxu0 0
    %1729 = vmatpush1.bf16.xpose.msra.mxu0 0
    %1730 = vmatprep.subr.bf16.mxu0 0
    %1731 = vmatpush1.bf16.xpose.msra.mxu0 0
    %1732 = vmatprep.subr.bf16.mxu0 0
    %1733 = vmatpush1.bf16.xpose.msra.mxu0 0
    %1734 = vmatprep.subr.bf16.mxu0 0
    %1735 = vmatpush1.bf16.xpose.msra.mxu0 0
    %1736 = vmatprep.subr.bf16.mxu0 0
    %1737 = vmatpush1.bf16.xpose.msra.mxu0 0
    %1738 = vmatprep.subr.bf16.mxu0 0
    %1739 = vmatpush1.bf16.xpose.msra.mxu0 0
    %1740 = vmatprep.mubr.bf16.mxu0 0
    %1741 = vmatmul.mubr.bf16.gmra.mrb[0].mxu0 %v1703
    %v1742 = vpop.f32.mrb[0].mxu0
    %v1743 = vadd.f32 0.0, %v1742
    %v1744 = vpop.f32.mrb[0].mxu0
    %v1745 = vpop.f32.mrb[0].mxu0
    %v1746 = vpop.f32.mrb[0].mxu0
    %1747 = vdwg.mxu0
    %v1748 = vmul.f32 %v1743, 0.35355338
    %v1749 = vsel %vm134, %v1748, -inf
    %1750 = vmax.xlane.f32.xlu0 %v1749
    %v1751 = vpop.xlane.xlu0 %1750
    %v1752 = vsub.f32 %v1748, %v1751
    %v1753 = vmul.f32 %v1752, 1.442695
    %v1754 = vpow.pop %v1753
    %v1755 = vsel %vm134, %v1754, 0.0
    %1756 = vadd.xlane.f32.xlu0 %v1755
    %v1757 = vpop.xlane.xlu0 %1756
    %v1758 = vrcp.pop %v1757
    %v1759 = vmul.f32 %v1754, %v1758
    %v1760 = vpack.c.bf16 %v1759, %v1759
    %1761 = vrot.lane.b32.xlu0 %v1476, 48
    %v1762 = vpop.permute.xlu0 %1761
    %v1764 = vsel %vm134, %v1760, 0
    %v1767 = vsel %vm199, %v1762, 0
    %1769 = vmatprep.subr.bf16.mxu0 0
    %1770 = vmatpush1.bf16.msra.mxu0 %v1767
    %1771 = vmatprep.subr.bf16.mxu0 0
    %1772 = vmatpush1.bf16.msra.mxu0 0
    %1773 = vmatprep.subr.bf16.mxu0 0
    %1774 = vmatpush1.bf16.msra.mxu0 0
    %1775 = vmatprep.subr.bf16.mxu0 0
    %1776 = vmatpush1.bf16.msra.mxu0 0
    %1777 = vmatprep.subr.bf16.mxu0 0
    %1778 = vmatpush1.bf16.msra.mxu0 0
    %1779 = vmatprep.subr.bf16.mxu0 0
    %1780 = vmatpush1.bf16.msra.mxu0 0
    %1781 = vmatprep.subr.bf16.mxu0 0
    %1782 = vmatpush1.bf16.msra.mxu0 0
    %1783 = vmatprep.subr.bf16.mxu0 0
    %1784 = vmatpush1.bf16.msra.mxu0 0
    %1785 = vmatprep.subr.bf16.mxu0 0
    %1786 = vmatpush1.bf16.msra.mxu0 0
    %1787 = vmatprep.subr.bf16.mxu0 0
    %1788 = vmatpush1.bf16.msra.mxu0 0
    %1789 = vmatprep.subr.bf16.mxu0 0
    %1790 = vmatpush1.bf16.msra.mxu0 0
    %1791 = vmatprep.subr.bf16.mxu0 0
    %1792 = vmatpush1.bf16.msra.mxu0 0
    %1793 = vmatprep.subr.bf16.mxu0 0
    %1794 = vmatpush1.bf16.msra.mxu0 0
    %1795 = vmatprep.subr.bf16.mxu0 0
    %1796 = vmatpush1.bf16.msra.mxu0 0
    %1797 = vmatprep.subr.bf16.mxu0 0
    %1798 = vmatpush1.bf16.msra.mxu0 0
    %1799 = vmatprep.subr.bf16.mxu0 0
    %1800 = vmatpush1.bf16.msra.mxu0 0
    %1801 = vmatprep.mubr.bf16.mxu0 0
    %1802 = vmatmul.mubr.bf16.gmra.mrb[0].mxu0 %v1764
    %v1803 = vpop.f32.mrb[0].mxu0
    %v1804 = vadd.f32 0.0, %v1803
    %v1805 = vpop.f32.mrb[0].mxu0
    %v1806 = vpop.f32.mrb[0].mxu0
    %v1807 = vpop.f32.mrb[0].mxu0
    %1808 = vdwg.mxu0
    %1809 = vrot.lane.b32.xlu0 %v1476, 104
    %v1810 = vpop.permute.xlu0 %1809
    %1811 = vrot.lane.b32.xlu0 %v1476, 72
    %v1812 = vpop.permute.xlu0 %1811
    %v1814 = vsel %vm134, %v1810, 0
    %v1817 = vsel %vm134, %v1812, 0
    %1819 = vmatprep.subr.bf16.mxu0 0
    %1820 = vmatpush1.bf16.xpose.msra.mxu0 %v1817
    %1821 = vmatprep.subr.bf16.mxu0 0
    %1822 = vmatpush1.bf16.xpose.msra.mxu0 0
    %1823 = vmatprep.subr.bf16.mxu0 0
    %1824 = vmatpush1.bf16.xpose.msra.mxu0 0
    %1825 = vmatprep.subr.bf16.mxu0 0
    %1826 = vmatpush1.bf16.xpose.msra.mxu0 0
    %1827 = vmatprep.subr.bf16.mxu0 0
    %1828 = vmatpush1.bf16.xpose.msra.mxu0 0
    %1829 = vmatprep.subr.bf16.mxu0 0
    %1830 = vmatpush1.bf16.xpose.msra.mxu0 0
    %1831 = vmatprep.subr.bf16.mxu0 0
    %1832 = vmatpush1.bf16.xpose.msra.mxu0 0
    %1833 = vmatprep.subr.bf16.mxu0 0
    %1834 = vmatpush1.bf16.xpose.msra.mxu0 0
    %1835 = vmatprep.subr.bf16.mxu0 0
    %1836 = vmatpush1.bf16.xpose.msra.mxu0 0
    %1837 = vmatprep.subr.bf16.mxu0 0
    %1838 = vmatpush1.bf16.xpose.msra.mxu0 0
    %1839 = vmatprep.subr.bf16.mxu0 0
    %1840 = vmatpush1.bf16.xpose.msra.mxu0 0
    %1841 = vmatprep.subr.bf16.mxu0 0
    %1842 = vmatpush1.bf16.xpose.msra.mxu0 0
    %1843 = vmatprep.subr.bf16.mxu0 0
    %1844 = vmatpush1.bf16.xpose.msra.mxu0 0
    %1845 = vmatprep.subr.bf16.mxu0 0
    %1846 = vmatpush1.bf16.xpose.msra.mxu0 0
    %1847 = vmatprep.subr.bf16.mxu0 0
    %1848 = vmatpush1.bf16.xpose.msra.mxu0 0
    %1849 = vmatprep.subr.bf16.mxu0 0
    %1850 = vmatpush1.bf16.xpose.msra.mxu0 0
    %1851 = vmatprep.mubr.bf16.mxu0 0
    %1852 = vmatmul.mubr.bf16.gmra.mrb[0].mxu0 %v1814
    %v1853 = vpop.f32.mrb[0].mxu0
    %v1854 = vadd.f32 0.0, %v1853
    %v1855 = vpop.f32.mrb[0].mxu0
    %v1856 = vpop.f32.mrb[0].mxu0
    %v1857 = vpop.f32.mrb[0].mxu0
    %1858 = vdwg.mxu0
    %v1859 = vmul.f32 %v1854, 0.35355338
    %v1860 = vsel %vm134, %v1859, -inf
    %1861 = vmax.xlane.f32.xlu0 %v1860
    %v1862 = vpop.xlane.xlu0 %1861
    %v1863 = vsub.f32 %v1859, %v1862
    %v1864 = vmul.f32 %v1863, 1.442695
    %v1865 = vpow.pop %v1864
    %v1866 = vsel %vm134, %v1865, 0.0
    %1867 = vadd.xlane.f32.xlu0 %v1866
    %v1868 = vpop.xlane.xlu0 %1867
    %v1869 = vrcp.pop %v1868
    %v1870 = vmul.f32 %v1865, %v1869
    %v1871 = vpack.c.bf16 %v1870, %v1870
    %1872 = vrot.lane.b32.xlu0 %v1476, 40
    %v1873 = vpop.permute.xlu0 %1872
    %v1875 = vsel %vm134, %v1871, 0
    %v1878 = vsel %vm199, %v1873, 0
    %1880 = vmatprep.subr.bf16.mxu0 0
    %1881 = vmatpush1.bf16.msra.mxu0 %v1878
    %1882 = vmatprep.subr.bf16.mxu0 0
    %1883 = vmatpush1.bf16.msra.mxu0 0
    %1884 = vmatprep.subr.bf16.mxu0 0
    %1885 = vmatpush1.bf16.msra.mxu0 0
    %1886 = vmatprep.subr.bf16.mxu0 0
    %1887 = vmatpush1.bf16.msra.mxu0 0
    %1888 = vmatprep.subr.bf16.mxu0 0
    %1889 = vmatpush1.bf16.msra.mxu0 0
    %1890 = vmatprep.subr.bf16.mxu0 0
    %1891 = vmatpush1.bf16.msra.mxu0 0
    %1892 = vmatprep.subr.bf16.mxu0 0
    %1893 = vmatpush1.bf16.msra.mxu0 0
    %1894 = vmatprep.subr.bf16.mxu0 0
    %1895 = vmatpush1.bf16.msra.mxu0 0
    %1896 = vmatprep.subr.bf16.mxu0 0
    %1897 = vmatpush1.bf16.msra.mxu0 0
    %1898 = vmatprep.subr.bf16.mxu0 0
    %1899 = vmatpush1.bf16.msra.mxu0 0
    %1900 = vmatprep.subr.bf16.mxu0 0
    %1901 = vmatpush1.bf16.msra.mxu0 0
    %1902 = vmatprep.subr.bf16.mxu0 0
    %1903 = vmatpush1.bf16.msra.mxu0 0
    %1904 = vmatprep.subr.bf16.mxu0 0
    %1905 = vmatpush1.bf16.msra.mxu0 0
    %1906 = vmatprep.subr.bf16.mxu0 0
    %1907 = vmatpush1.bf16.msra.mxu0 0
    %1908 = vmatprep.subr.bf16.mxu0 0
    %1909 = vmatpush1.bf16.msra.mxu0 0
    %1910 = vmatprep.subr.bf16.mxu0 0
    %1911 = vmatpush1.bf16.msra.mxu0 0
    %1912 = vmatprep.mubr.bf16.mxu0 0
    %1913 = vmatmul.mubr.bf16.gmra.mrb[0].mxu0 %v1875
    %v1914 = vpop.f32.mrb[0].mxu0
    %v1915 = vadd.f32 0.0, %v1914
    %v1916 = vpop.f32.mrb[0].mxu0
    %v1917 = vpop.f32.mrb[0].mxu0
    %v1918 = vpop.f32.mrb[0].mxu0
    %1919 = vdwg.mxu0
    %1921 = vrot.lane.b32.xlu0 %v1648, 8
    %v1922 = vpop.permute.xlu0 %1921
    %1925 = vrot.lane.b32.xlu0 %v1759, 16
    %v1926 = vpop.permute.xlu0 %1925
    %1929 = vrot.lane.b32.xlu0 %v1870, 24
    %v1930 = vpop.permute.xlu0 %1929
    %v1932 = vsel %vm134, %v1537, %v1922
    %v1933 = vsel %vm589, %v1932, %v1926
    %v1934 = vsel %vm591, %v1933, %v1930
    %1936 = vrot.lane.b32.xlu0 %v1693, 8
    %v1937 = vpop.permute.xlu0 %1936
    %1940 = vrot.lane.b32.xlu0 %v1804, 16
    %v1941 = vpop.permute.xlu0 %1940
    %1944 = vrot.lane.b32.xlu0 %v1915, 24
    %v1945 = vpop.permute.xlu0 %1944
    %v1947 = vsel %vm134, %v1582, %v1937
    %v1948 = vsel %vm589, %v1947, %v1941
    %v1949 = vsel %vm591, %v1948, %v1945
    %v1950 = vrot.slane %v1476, 4
    %1951 = vrot.lane.b32.xlu0 %v1950, 96
    %v1952 = vpop.permute.xlu0 %1951
    %v1954 = vsel %vm134, %v1950, 0
    %v1957 = vsel %vm134, %v1952, 0
    %1959 = vmatprep.subr.bf16.mxu0 0
    %1960 = vmatpush1.bf16.xpose.msra.mxu0 %v1957
    %1961 = vmatprep.subr.bf16.mxu0 0
    %1962 = vmatpush1.bf16.xpose.msra.mxu0 0
    %1963 = vmatprep.subr.bf16.mxu0 0
    %1964 = vmatpush1.bf16.xpose.msra.mxu0 0
    %1965 = vmatprep.subr.bf16.mxu0 0
    %1966 = vmatpush1.bf16.xpose.msra.mxu0 0
    %1967 = vmatprep.subr.bf16.mxu0 0
    %1968 = vmatpush1.bf16.xpose.msra.mxu0 0
    %1969 = vmatprep.subr.bf16.mxu0 0
    %1970 = vmatpush1.bf16.xpose.msra.mxu0 0
    %1971 = vmatprep.subr.bf16.mxu0 0
    %1972 = vmatpush1.bf16.xpose.msra.mxu0 0
    %1973 = vmatprep.subr.bf16.mxu0 0
    %1974 = vmatpush1.bf16.xpose.msra.mxu0 0
    %1975 = vmatprep.subr.bf16.mxu0 0
    %1976 = vmatpush1.bf16.xpose.msra.mxu0 0
    %1977 = vmatprep.subr.bf16.mxu0 0
    %1978 = vmatpush1.bf16.xpose.msra.mxu0 0
    %1979 = vmatprep.subr.bf16.mxu0 0
    %1980 = vmatpush1.bf16.xpose.msra.mxu0 0
    %1981 = vmatprep.subr.bf16.mxu0 0
    %1982 = vmatpush1.bf16.xpose.msra.mxu0 0
    %1983 = vmatprep.subr.bf16.mxu0 0
    %1984 = vmatpush1.bf16.xpose.msra.mxu0 0
    %1985 = vmatprep.subr.bf16.mxu0 0
    %1986 = vmatpush1.bf16.xpose.msra.mxu0 0
    %1987 = vmatprep.subr.bf16.mxu0 0
    %1988 = vmatpush1.bf16.xpose.msra.mxu0 0
    %1989 = vmatprep.subr.bf16.mxu0 0
    %1990 = vmatpush1.bf16.xpose.msra.mxu0 0
    %1991 = vmatprep.mubr.bf16.mxu0 0
    %1992 = vmatmul.mubr.bf16.gmra.mrb[0].mxu0 %v1954
    %v1993 = vpop.f32.mrb[0].mxu0
    %v1994 = vadd.f32 0.0, %v1993
    %v1995 = vpop.f32.mrb[0].mxu0
    %v1996 = vpop.f32.mrb[0].mxu0
    %v1997 = vpop.f32.mrb[0].mxu0
    %1998 = vdwg.mxu0
    %v1999 = vmul.f32 %v1994, 0.35355338
    %v2000 = vsel %vm134, %v1999, -inf
    %2001 = vmax.xlane.f32.xlu0 %v2000
    %v2002 = vpop.xlane.xlu0 %2001
    %v2003 = vsub.f32 %v1999, %v2002
    %v2004 = vmul.f32 %v2003, 1.442695
    %v2005 = vpow.pop %v2004
    %v2006 = vsel %vm134, %v2005, 0.0
    %2007 = vadd.xlane.f32.xlu0 %v2006
    %v2008 = vpop.xlane.xlu0 %2007
    %v2009 = vrcp.pop %v2008
    %v2010 = vmul.f32 %v2005, %v2009
    %v2011 = vpack.c.bf16 %v2010, %v2010
    %2012 = vrot.lane.b32.xlu0 %v1950, 64
    %v2013 = vpop.permute.xlu0 %2012
    %v2015 = vsel %vm134, %v2011, 0
    %v2018 = vsel %vm199, %v2013, 0
    %2020 = vmatprep.subr.bf16.mxu0 0
    %2021 = vmatpush1.bf16.msra.mxu0 %v2018
    %2022 = vmatprep.subr.bf16.mxu0 0
    %2023 = vmatpush1.bf16.msra.mxu0 0
    %2024 = vmatprep.subr.bf16.mxu0 0
    %2025 = vmatpush1.bf16.msra.mxu0 0
    %2026 = vmatprep.subr.bf16.mxu0 0
    %2027 = vmatpush1.bf16.msra.mxu0 0
    %2028 = vmatprep.subr.bf16.mxu0 0
    %2029 = vmatpush1.bf16.msra.mxu0 0
    %2030 = vmatprep.subr.bf16.mxu0 0
    %2031 = vmatpush1.bf16.msra.mxu0 0
    %2032 = vmatprep.subr.bf16.mxu0 0
    %2033 = vmatpush1.bf16.msra.mxu0 0
    %2034 = vmatprep.subr.bf16.mxu0 0
    %2035 = vmatpush1.bf16.msra.mxu0 0
    %2036 = vmatprep.subr.bf16.mxu0 0
    %2037 = vmatpush1.bf16.msra.mxu0 0
    %2038 = vmatprep.subr.bf16.mxu0 0
    %2039 = vmatpush1.bf16.msra.mxu0 0
    %2040 = vmatprep.subr.bf16.mxu0 0
    %2041 = vmatpush1.bf16.msra.mxu0 0
    %2042 = vmatprep.subr.bf16.mxu0 0
    %2043 = vmatpush1.bf16.msra.mxu0 0
    %2044 = vmatprep.subr.bf16.mxu0 0
    %2045 = vmatpush1.bf16.msra.mxu0 0
    %2046 = vmatprep.subr.bf16.mxu0 0
    %2047 = vmatpush1.bf16.msra.mxu0 0
    %2048 = vmatprep.subr.bf16.mxu0 0
    %2049 = vmatpush1.bf16.msra.mxu0 0
    %2050 = vmatprep.subr.bf16.mxu0 0
    %2051 = vmatpush1.bf16.msra.mxu0 0
    %2052 = vmatprep.mubr.bf16.mxu0 0
    %2053 = vmatmul.mubr.bf16.gmra.mrb[0].mxu0 %v2015
    %v2054 = vpop.f32.mrb[0].mxu0
    %v2055 = vadd.f32 0.0, %v2054
    %v2056 = vpop.f32.mrb[0].mxu0
    %v2057 = vpop.f32.mrb[0].mxu0
    %v2058 = vpop.f32.mrb[0].mxu0
    %2059 = vdwg.mxu0
    %2060 = vrot.lane.b32.xlu0 %v1950, 120
    %v2061 = vpop.permute.xlu0 %2060
    %2062 = vrot.lane.b32.xlu0 %v1950, 88
    %v2063 = vpop.permute.xlu0 %2062
    %v2065 = vsel %vm134, %v2061, 0
    %v2068 = vsel %vm134, %v2063, 0
    %2070 = vmatprep.subr.bf16.mxu0 0
    %2071 = vmatpush1.bf16.xpose.msra.mxu0 %v2068
    %2072 = vmatprep.subr.bf16.mxu0 0
    %2073 = vmatpush1.bf16.xpose.msra.mxu0 0
    %2074 = vmatprep.subr.bf16.mxu0 0
    %2075 = vmatpush1.bf16.xpose.msra.mxu0 0
    %2076 = vmatprep.subr.bf16.mxu0 0
    %2077 = vmatpush1.bf16.xpose.msra.mxu0 0
    %2078 = vmatprep.subr.bf16.mxu0 0
    %2079 = vmatpush1.bf16.xpose.msra.mxu0 0
    %2080 = vmatprep.subr.bf16.mxu0 0
    %2081 = vmatpush1.bf16.xpose.msra.mxu0 0
    %2082 = vmatprep.subr.bf16.mxu0 0
    %2083 = vmatpush1.bf16.xpose.msra.mxu0 0
    %2084 = vmatprep.subr.bf16.mxu0 0
    %2085 = vmatpush1.bf16.xpose.msra.mxu0 0
    %2086 = vmatprep.subr.bf16.mxu0 0
    %2087 = vmatpush1.bf16.xpose.msra.mxu0 0
    %2088 = vmatprep.subr.bf16.mxu0 0
    %2089 = vmatpush1.bf16.xpose.msra.mxu0 0
    %2090 = vmatprep.subr.bf16.mxu0 0
    %2091 = vmatpush1.bf16.xpose.msra.mxu0 0
    %2092 = vmatprep.subr.bf16.mxu0 0
    %2093 = vmatpush1.bf16.xpose.msra.mxu0 0
    %2094 = vmatprep.subr.bf16.mxu0 0
    %2095 = vmatpush1.bf16.xpose.msra.mxu0 0
    %2096 = vmatprep.subr.bf16.mxu0 0
    %2097 = vmatpush1.bf16.xpose.msra.mxu0 0
    %2098 = vmatprep.subr.bf16.mxu0 0
    %2099 = vmatpush1.bf16.xpose.msra.mxu0 0
    %2100 = vmatprep.subr.bf16.mxu0 0
    %2101 = vmatpush1.bf16.xpose.msra.mxu0 0
    %2102 = vmatprep.mubr.bf16.mxu0 0
    %2103 = vmatmul.mubr.bf16.gmra.mrb[0].mxu0 %v2065
    %v2104 = vpop.f32.mrb[0].mxu0
    %v2105 = vadd.f32 0.0, %v2104
    %v2106 = vpop.f32.mrb[0].mxu0
    %v2107 = vpop.f32.mrb[0].mxu0
    %v2108 = vpop.f32.mrb[0].mxu0
    %2109 = vdwg.mxu0
    %v2110 = vmul.f32 %v2105, 0.35355338
    %v2111 = vsel %vm134, %v2110, -inf
    %2112 = vmax.xlane.f32.xlu0 %v2111
    %v2113 = vpop.xlane.xlu0 %2112
    %v2114 = vsub.f32 %v2110, %v2113
    %v2115 = vmul.f32 %v2114, 1.442695
    %v2116 = vpow.pop %v2115
    %v2117 = vsel %vm134, %v2116, 0.0
    %2118 = vadd.xlane.f32.xlu0 %v2117
    %v2119 = vpop.xlane.xlu0 %2118
    %v2120 = vrcp.pop %v2119
    %v2121 = vmul.f32 %v2116, %v2120
    %v2122 = vpack.c.bf16 %v2121, %v2121
    %2123 = vrot.lane.b32.xlu0 %v1950, 56
    %v2124 = vpop.permute.xlu0 %2123
    %v2126 = vsel %vm134, %v2122, 0
    %v2129 = vsel %vm199, %v2124, 0
    %2131 = vmatprep.subr.bf16.mxu0 0
    %2132 = vmatpush1.bf16.msra.mxu0 %v2129
    %2133 = vmatprep.subr.bf16.mxu0 0
    %2134 = vmatpush1.bf16.msra.mxu0 0
    %2135 = vmatprep.subr.bf16.mxu0 0
    %2136 = vmatpush1.bf16.msra.mxu0 0
    %2137 = vmatprep.subr.bf16.mxu0 0
    %2138 = vmatpush1.bf16.msra.mxu0 0
    %2139 = vmatprep.subr.bf16.mxu0 0
    %2140 = vmatpush1.bf16.msra.mxu0 0
    %2141 = vmatprep.subr.bf16.mxu0 0
    %2142 = vmatpush1.bf16.msra.mxu0 0
    %2143 = vmatprep.subr.bf16.mxu0 0
    %2144 = vmatpush1.bf16.msra.mxu0 0
    %2145 = vmatprep.subr.bf16.mxu0 0
    %2146 = vmatpush1.bf16.msra.mxu0 0
    %2147 = vmatprep.subr.bf16.mxu0 0
    %2148 = vmatpush1.bf16.msra.mxu0 0
    %2149 = vmatprep.subr.bf16.mxu0 0
    %2150 = vmatpush1.bf16.msra.mxu0 0
    %2151 = vmatprep.subr.bf16.mxu0 0
    %2152 = vmatpush1.bf16.msra.mxu0 0
    %2153 = vmatprep.subr.bf16.mxu0 0
    %2154 = vmatpush1.bf16.msra.mxu0 0
    %2155 = vmatprep.subr.bf16.mxu0 0
    %2156 = vmatpush1.bf16.msra.mxu0 0
    %2157 = vmatprep.subr.bf16.mxu0 0
    %2158 = vmatpush1.bf16.msra.mxu0 0
    %2159 = vmatprep.subr.bf16.mxu0 0
    %2160 = vmatpush1.bf16.msra.mxu0 0
    %2161 = vmatprep.subr.bf16.mxu0 0
    %2162 = vmatpush1.bf16.msra.mxu0 0
    %2163 = vmatprep.mubr.bf16.mxu0 0
    %2164 = vmatmul.mubr.bf16.gmra.mrb[0].mxu0 %v2126
    %v2165 = vpop.f32.mrb[0].mxu0
    %v2166 = vadd.f32 0.0, %v2165
    %v2167 = vpop.f32.mrb[0].mxu0
    %v2168 = vpop.f32.mrb[0].mxu0
    %v2169 = vpop.f32.mrb[0].mxu0
    %2170 = vdwg.mxu0
    %2171 = vrot.lane.b32.xlu0 %v1950, 112
    %v2172 = vpop.permute.xlu0 %2171
    %2173 = vrot.lane.b32.xlu0 %v1950, 80
    %v2174 = vpop.permute.xlu0 %2173
    %v2176 = vsel %vm134, %v2172, 0
    %v2179 = vsel %vm134, %v2174, 0
    %2181 = vmatprep.subr.bf16.mxu0 0
    %2182 = vmatpush1.bf16.xpose.msra.mxu0 %v2179
    %2183 = vmatprep.subr.bf16.mxu0 0
    %2184 = vmatpush1.bf16.xpose.msra.mxu0 0
    %2185 = vmatprep.subr.bf16.mxu0 0
    %2186 = vmatpush1.bf16.xpose.msra.mxu0 0
    %2187 = vmatprep.subr.bf16.mxu0 0
    %2188 = vmatpush1.bf16.xpose.msra.mxu0 0
    %2189 = vmatprep.subr.bf16.mxu0 0
    %2190 = vmatpush1.bf16.xpose.msra.mxu0 0
    %2191 = vmatprep.subr.bf16.mxu0 0
    %2192 = vmatpush1.bf16.xpose.msra.mxu0 0
    %2193 = vmatprep.subr.bf16.mxu0 0
    %2194 = vmatpush1.bf16.xpose.msra.mxu0 0
    %2195 = vmatprep.subr.bf16.mxu0 0
    %2196 = vmatpush1.bf16.xpose.msra.mxu0 0
    %2197 = vmatprep.subr.bf16.mxu0 0
    %2198 = vmatpush1.bf16.xpose.msra.mxu0 0
    %2199 = vmatprep.subr.bf16.mxu0 0
    %2200 = vmatpush1.bf16.xpose.msra.mxu0 0
    %2201 = vmatprep.subr.bf16.mxu0 0
    %2202 = vmatpush1.bf16.xpose.msra.mxu0 0
    %2203 = vmatprep.subr.bf16.mxu0 0
    %2204 = vmatpush1.bf16.xpose.msra.mxu0 0
    %2205 = vmatprep.subr.bf16.mxu0 0
    %2206 = vmatpush1.bf16.xpose.msra.mxu0 0
    %2207 = vmatprep.subr.bf16.mxu0 0
    %2208 = vmatpush1.bf16.xpose.msra.mxu0 0
    %2209 = vmatprep.subr.bf16.mxu0 0
    %2210 = vmatpush1.bf16.xpose.msra.mxu0 0
    %2211 = vmatprep.subr.bf16.mxu0 0
    %2212 = vmatpush1.bf16.xpose.msra.mxu0 0
    %2213 = vmatprep.mubr.bf16.mxu0 0
    %2214 = vmatmul.mubr.bf16.gmra.mrb[0].mxu0 %v2176
    %v2215 = vpop.f32.mrb[0].mxu0
    %v2216 = vadd.f32 0.0, %v2215
    %v2217 = vpop.f32.mrb[0].mxu0
    %v2218 = vpop.f32.mrb[0].mxu0
    %v2219 = vpop.f32.mrb[0].mxu0
    %2220 = vdwg.mxu0
    %v2221 = vmul.f32 %v2216, 0.35355338
    %v2222 = vsel %vm134, %v2221, -inf
    %2223 = vmax.xlane.f32.xlu0 %v2222
    %v2224 = vpop.xlane.xlu0 %2223
    %v2225 = vsub.f32 %v2221, %v2224
    %v2226 = vmul.f32 %v2225, 1.442695
    %v2227 = vpow.pop %v2226
    %v2228 = vsel %vm134, %v2227, 0.0
    %2229 = vadd.xlane.f32.xlu0 %v2228
    %v2230 = vpop.xlane.xlu0 %2229
    %v2231 = vrcp.pop %v2230
    %v2232 = vmul.f32 %v2227, %v2231
    %v2233 = vpack.c.bf16 %v2232, %v2232
    %2234 = vrot.lane.b32.xlu0 %v1950, 48
    %v2235 = vpop.permute.xlu0 %2234
    %v2237 = vsel %vm134, %v2233, 0
    %v2240 = vsel %vm199, %v2235, 0
    %2242 = vmatprep.subr.bf16.mxu0 0
    %2243 = vmatpush1.bf16.msra.mxu0 %v2240
    %2244 = vmatprep.subr.bf16.mxu0 0
    %2245 = vmatpush1.bf16.msra.mxu0 0
    %2246 = vmatprep.subr.bf16.mxu0 0
    %2247 = vmatpush1.bf16.msra.mxu0 0
    %2248 = vmatprep.subr.bf16.mxu0 0
    %2249 = vmatpush1.bf16.msra.mxu0 0
    %2250 = vmatprep.subr.bf16.mxu0 0
    %2251 = vmatpush1.bf16.msra.mxu0 0
    %2252 = vmatprep.subr.bf16.mxu0 0
    %2253 = vmatpush1.bf16.msra.mxu0 0
    %2254 = vmatprep.subr.bf16.mxu0 0
    %2255 = vmatpush1.bf16.msra.mxu0 0
    %2256 = vmatprep.subr.bf16.mxu0 0
    %2257 = vmatpush1.bf16.msra.mxu0 0
    %2258 = vmatprep.subr.bf16.mxu0 0
    %2259 = vmatpush1.bf16.msra.mxu0 0
    %2260 = vmatprep.subr.bf16.mxu0 0
    %2261 = vmatpush1.bf16.msra.mxu0 0
    %2262 = vmatprep.subr.bf16.mxu0 0
    %2263 = vmatpush1.bf16.msra.mxu0 0
    %2264 = vmatprep.subr.bf16.mxu0 0
    %2265 = vmatpush1.bf16.msra.mxu0 0
    %2266 = vmatprep.subr.bf16.mxu0 0
    %2267 = vmatpush1.bf16.msra.mxu0 0
    %2268 = vmatprep.subr.bf16.mxu0 0
    %2269 = vmatpush1.bf16.msra.mxu0 0
    %2270 = vmatprep.subr.bf16.mxu0 0
    %2271 = vmatpush1.bf16.msra.mxu0 0
    %2272 = vmatprep.subr.bf16.mxu0 0
    %2273 = vmatpush1.bf16.msra.mxu0 0
    %2274 = vmatprep.mubr.bf16.mxu0 0
    %2275 = vmatmul.mubr.bf16.gmra.mrb[0].mxu0 %v2237
    %v2276 = vpop.f32.mrb[0].mxu0
    %v2277 = vadd.f32 0.0, %v2276
    %v2278 = vpop.f32.mrb[0].mxu0
    %v2279 = vpop.f32.mrb[0].mxu0
    %v2280 = vpop.f32.mrb[0].mxu0
    %2281 = vdwg.mxu0
    %2282 = vrot.lane.b32.xlu0 %v1950, 104
    %v2283 = vpop.permute.xlu0 %2282
    %2284 = vrot.lane.b32.xlu0 %v1950, 72
    %v2285 = vpop.permute.xlu0 %2284
    %v2287 = vsel %vm134, %v2283, 0
    %v2290 = vsel %vm134, %v2285, 0
    %2292 = vmatprep.subr.bf16.mxu0 0
    %2293 = vmatpush1.bf16.xpose.msra.mxu0 %v2290
    %2294 = vmatprep.subr.bf16.mxu0 0
    %2295 = vmatpush1.bf16.xpose.msra.mxu0 0
    %2296 = vmatprep.subr.bf16.mxu0 0
    %2297 = vmatpush1.bf16.xpose.msra.mxu0 0
    %2298 = vmatprep.subr.bf16.mxu0 0
    %2299 = vmatpush1.bf16.xpose.msra.mxu0 0
    %2300 = vmatprep.subr.bf16.mxu0 0
    %2301 = vmatpush1.bf16.xpose.msra.mxu0 0
    %2302 = vmatprep.subr.bf16.mxu0 0
    %2303 = vmatpush1.bf16.xpose.msra.mxu0 0
    %2304 = vmatprep.subr.bf16.mxu0 0
    %2305 = vmatpush1.bf16.xpose.msra.mxu0 0
    %2306 = vmatprep.subr.bf16.mxu0 0
    %2307 = vmatpush1.bf16.xpose.msra.mxu0 0
    %2308 = vmatprep.subr.bf16.mxu0 0
    %2309 = vmatpush1.bf16.xpose.msra.mxu0 0
    %2310 = vmatprep.subr.bf16.mxu0 0
    %2311 = vmatpush1.bf16.xpose.msra.mxu0 0
    %2312 = vmatprep.subr.bf16.mxu0 0
    %2313 = vmatpush1.bf16.xpose.msra.mxu0 0
    %2314 = vmatprep.subr.bf16.mxu0 0
    %2315 = vmatpush1.bf16.xpose.msra.mxu0 0
    %2316 = vmatprep.subr.bf16.mxu0 0
    %2317 = vmatpush1.bf16.xpose.msra.mxu0 0
    %2318 = vmatprep.subr.bf16.mxu0 0
    %2319 = vmatpush1.bf16.xpose.msra.mxu0 0
    %2320 = vmatprep.subr.bf16.mxu0 0
    %2321 = vmatpush1.bf16.xpose.msra.mxu0 0
    %2322 = vmatprep.subr.bf16.mxu0 0
    %2323 = vmatpush1.bf16.xpose.msra.mxu0 0
    %2324 = vmatprep.mubr.bf16.mxu0 0
    %2325 = vmatmul.mubr.bf16.gmra.mrb[0].mxu0 %v2287
    %v2326 = vpop.f32.mrb[0].mxu0
    %v2327 = vadd.f32 0.0, %v2326
    %v2328 = vpop.f32.mrb[0].mxu0
    %v2329 = vpop.f32.mrb[0].mxu0
    %v2330 = vpop.f32.mrb[0].mxu0
    %2331 = vdwg.mxu0
    %v2332 = vmul.f32 %v2327, 0.35355338
    %v2333 = vsel %vm134, %v2332, -inf
    %2334 = vmax.xlane.f32.xlu0 %v2333
    %v2335 = vpop.xlane.xlu0 %2334
    %v2336 = vsub.f32 %v2332, %v2335
    %v2337 = vmul.f32 %v2336, 1.442695
    %v2338 = vpow.pop %v2337
    %v2339 = vsel %vm134, %v2338, 0.0
    %2340 = vadd.xlane.f32.xlu0 %v2339
    %v2341 = vpop.xlane.xlu0 %2340
    %v2342 = vrcp.pop %v2341
    %v2343 = vmul.f32 %v2338, %v2342
    %v2344 = vpack.c.bf16 %v2343, %v2343
    %2345 = vrot.lane.b32.xlu0 %v1950, 40
    %v2346 = vpop.permute.xlu0 %2345
    %v2348 = vsel %vm134, %v2344, 0
    %v2351 = vsel %vm199, %v2346, 0
    %2353 = vmatprep.subr.bf16.mxu0 0
    %2354 = vmatpush1.bf16.msra.mxu0 %v2351
    %2355 = vmatprep.subr.bf16.mxu0 0
    %2356 = vmatpush1.bf16.msra.mxu0 0
    %2357 = vmatprep.subr.bf16.mxu0 0
    %2358 = vmatpush1.bf16.msra.mxu0 0
    %2359 = vmatprep.subr.bf16.mxu0 0
    %2360 = vmatpush1.bf16.msra.mxu0 0
    %2361 = vmatprep.subr.bf16.mxu0 0
    %2362 = vmatpush1.bf16.msra.mxu0 0
    %2363 = vmatprep.subr.bf16.mxu0 0
    %2364 = vmatpush1.bf16.msra.mxu0 0
    %2365 = vmatprep.subr.bf16.mxu0 0
    %2366 = vmatpush1.bf16.msra.mxu0 0
    %2367 = vmatprep.subr.bf16.mxu0 0
    %2368 = vmatpush1.bf16.msra.mxu0 0
    %2369 = vmatprep.subr.bf16.mxu0 0
    %2370 = vmatpush1.bf16.msra.mxu0 0
    %2371 = vmatprep.subr.bf16.mxu0 0
    %2372 = vmatpush1.bf16.msra.mxu0 0
    %2373 = vmatprep.subr.bf16.mxu0 0
    %2374 = vmatpush1.bf16.msra.mxu0 0
    %2375 = vmatprep.subr.bf16.mxu0 0
    %2376 = vmatpush1.bf16.msra.mxu0 0
    %2377 = vmatprep.subr.bf16.mxu0 0
    %2378 = vmatpush1.bf16.msra.mxu0 0
    %2379 = vmatprep.subr.bf16.mxu0 0
    %2380 = vmatpush1.bf16.msra.mxu0 0
    %2381 = vmatprep.subr.bf16.mxu0 0
    %2382 = vmatpush1.bf16.msra.mxu0 0
    %2383 = vmatprep.subr.bf16.mxu0 0
    %2384 = vmatpush1.bf16.msra.mxu0 0
    %2385 = vmatprep.mubr.bf16.mxu0 0
    %2386 = vmatmul.mubr.bf16.gmra.mrb[0].mxu0 %v2348
    %v2387 = vpop.f32.mrb[0].mxu0
    %v2388 = vadd.f32 0.0, %v2387
    %v2389 = vpop.f32.mrb[0].mxu0
    %v2390 = vpop.f32.mrb[0].mxu0
    %v2391 = vpop.f32.mrb[0].mxu0
    %2392 = vdwg.mxu0
    %2394 = vrot.lane.b32.xlu0 %v2121, 8
    %v2395 = vpop.permute.xlu0 %2394
    %2398 = vrot.lane.b32.xlu0 %v2232, 16
    %v2399 = vpop.permute.xlu0 %2398
    %2402 = vrot.lane.b32.xlu0 %v2343, 24
    %v2403 = vpop.permute.xlu0 %2402
    %v2405 = vsel %vm134, %v2010, %v2395
    %v2406 = vsel %vm589, %v2405, %v2399
    %v2407 = vsel %vm591, %v2406, %v2403
    %2409 = vrot.lane.b32.xlu0 %v2166, 8
    %v2410 = vpop.permute.xlu0 %2409
    %2413 = vrot.lane.b32.xlu0 %v2277, 16
    %v2414 = vpop.permute.xlu0 %2413
    %2417 = vrot.lane.b32.xlu0 %v2388, 24
    %v2418 = vpop.permute.xlu0 %2417
    %v2420 = vsel %vm134, %v2055, %v2410
    %v2421 = vsel %vm589, %v2420, %v2414
    %v2422 = vsel %vm591, %v2421, %v2418
    %v2423 = vpack.c.bf16 %v2422, %v1949
    %v2424 = vlaneseq
    %v2425 = vshrl.u32 %v2424, 7
    %v2426 = vsub.s32 1, %v2425
    %v2427 = vrot.slane %v1414, %v2426
    %v2432 = vunpack.c.l.b16 %v1395
    %v2433 = vunpack.c.l.b16 %v1396
    %v2434 = vunpack.c.l.b16 %v1397
    %v2435 = vunpack.c.l.b16 %v1398
    %v2436 = vpack.c.b16 %v2433, %v2432
    %v2437 = vpack.c.b16 %v2435, %v2434
    %v2441 = vsel %vm85, %v2423, 0
    %2443 = vmatprep.subr.bf16.mxu0 0
    %2444 = vmatpush1.bf16.msra.mxu0 %v2436
    %2445 = vmatprep.subr.bf16.mxu0 0
    %2446 = vmatpush1.bf16.msra.mxu0 %v2437
    %2447 = vmatprep.subr.bf16.mxu0 0
    %2448 = vmatpush1.bf16.msra.mxu0 0
    %2449 = vmatprep.subr.bf16.mxu0 0
    %2450 = vmatpush1.bf16.msra.mxu0 0
    %2451 = vmatprep.subr.bf16.mxu0 0
    %2452 = vmatpush1.bf16.msra.mxu0 0
    %2453 = vmatprep.subr.bf16.mxu0 0
    %2454 = vmatpush1.bf16.msra.mxu0 0
    %2455 = vmatprep.subr.bf16.mxu0 0
    %2456 = vmatpush1.bf16.msra.mxu0 0
    %2457 = vmatprep.subr.bf16.mxu0 0
    %2458 = vmatpush1.bf16.msra.mxu0 0
    %2459 = vmatprep.subr.bf16.mxu0 0
    %2460 = vmatpush1.bf16.msra.mxu0 0
    %2461 = vmatprep.subr.bf16.mxu0 0
    %2462 = vmatpush1.bf16.msra.mxu0 0
    %2463 = vmatprep.subr.bf16.mxu0 0
    %2464 = vmatpush1.bf16.msra.mxu0 0
    %2465 = vmatprep.subr.bf16.mxu0 0
    %2466 = vmatpush1.bf16.msra.mxu0 0
    %2467 = vmatprep.subr.bf16.mxu0 0
    %2468 = vmatpush1.bf16.msra.mxu0 0
    %2469 = vmatprep.subr.bf16.mxu0 0
    %2470 = vmatpush1.bf16.msra.mxu0 0
    %2471 = vmatprep.subr.bf16.mxu0 0
    %2472 = vmatpush1.bf16.msra.mxu0 0
    %2473 = vmatprep.subr.bf16.mxu0 0
    %2474 = vmatpush1.bf16.msra.mxu0 0
    %2475 = vmatprep.mubr.bf16.mxu0 0
    %2476 = vmatmul.mubr.bf16.gmra.mrb[0].mxu0 %v2441
    %v2477 = vpop.f32.mrb[0].mxu0
    %v2478 = vadd.f32 %v2427, %v2477
    %v2479 = vpop.f32.mrb[0].mxu0
    %v2480 = vpop.f32.mrb[0].mxu0
    %v2481 = vadd.f32 %v2427, %v2480
    %v2482 = vpop.f32.mrb[0].mxu0
    %2483 = vdwg.mxu0
    %v2484 = vadd.f32 %v1387, %v2478
    %v2485 = vadd.f32 %v1388, %v2481
    %v2486 = vsel %vm85, %v2484, 0.0
    %2487 = vadd.xlane.f32.xlu0 %v2486
    %v2488 = vpop.xlane.xlu0 %2487
    %v2489 = vsel %vm85, %v2485, 0.0
    %2490 = vadd.xlane.f32.xlu0 %v2489
    %v2491 = vpop.xlane.xlu0 %2490
    %v2492 = vmul.f32 %v2488, %v1150
    %v2493 = vmul.f32 %v2491, %v1150
    %v2494 = vsub.f32 %v2484, %v2492
    %v2495 = vsub.f32 %v2485, %v2493
    %v2496 = vmul.f32 %v2494, %v2494
    %v2497 = vmul.f32 %v2495, %v2495
    %v2498 = vsel %vm85, %v2496, 0.0
    %2499 = vadd.xlane.f32.xlu0 %v2498
    %v2500 = vpop.xlane.xlu0 %2499
    %v2501 = vsel %vm85, %v2497, 0.0
    %2502 = vadd.xlane.f32.xlu0 %v2501
    %v2503 = vpop.xlane.xlu0 %2502
    %v2504 = vmul.f32 %v2500, %v1163
    %v2505 = vmul.f32 %v2503, %v1163
    %v2506 = vrsqrt.pop %v2504
    %v2507 = vmul.f32 %v2504, %v2506
    %vm2508 = vcmp.eq.f32.partialorder %v2504, inf
    %v2509 = vsel %vm2508, %v2504, %v2507
    %vm2510 = vcmp.eq.f32.partialorder %v2504, 0.0
    %v2511 = vand.u32 %v2504, 2147483648
    %v2512 = vsel %vm2510, %v2511, %v2509
    %v2513 = vrsqrt.pop %v2505
    %v2514 = vmul.f32 %v2505, %v2513
    %vm2515 = vcmp.eq.f32.partialorder %v2505, inf
    %v2516 = vsel %vm2515, %v2505, %v2514
    %vm2517 = vcmp.eq.f32.partialorder %v2505, 0.0
    %v2518 = vand.u32 %v2505, 2147483648
    %v2519 = vsel %vm2517, %v2518, %v2516
    %v2520 = vadd.f32 %v2512, 1e-06
    %v2521 = vadd.f32 %v2519, 1e-06
    %v2522 = vrcp.pop %v2520
    %v2523 = vrcp.pop %v2521
    %v2524 = vmul.f32 %v2494, %v2522
    %v2525 = vmul.f32 %v2495, %v2523
    %v2526 = vlaneseq
    %v2527 = vshrl.u32 %v2526, 7
    %v2528 = vsub.s32 4, %v2527
    %v2529 = vrot.slane %v1414, %v2528
    %v2530 = vmul.f32 %v2529, %v2524
    %v2531 = vmul.f32 %v2529, %v2525
    %v2532 = vlaneseq
    %v2533 = vshrl.u32 %v2532, 7
    %v2534 = vsub.s32 5, %v2533
    %v2535 = vrot.slane %v1414, %v2534
    %v2536 = vadd.f32 %v2530, %v2535
    %v2537 = vadd.f32 %v2531, %v2535
    %v2538 = vpack.c.bf16 %v2537, %v2536
    %v2539 = vlaneseq
    %v2540 = vshrl.u32 %v2539, 7
    %v2541 = vsub.s32 2, %v2540
    %v2542 = vrot.slane %v1414, %v2541
    %v2547 = vunpack.c.l.b16 %v1400
    %v2548 = vunpack.c.l.b16 %v1401
    %v2549 = vunpack.c.l.b16 %v1402
    %v2550 = vunpack.c.l.b16 %v1403
    %v2551 = vpack.c.b16 %v2548, %v2547
    %v2552 = vpack.c.b16 %v2550, %v2549
    %v2556 = vsel %vm85, %v2538, 0
    %2558 = vmatprep.subr.bf16.mxu0 0
    %2559 = vmatpush1.bf16.msra.mxu0 %v2551
    %2560 = vmatprep.subr.bf16.mxu0 0
    %2561 = vmatpush1.bf16.msra.mxu0 %v2552
    %2562 = vmatprep.subr.bf16.mxu0 0
    %2563 = vmatpush1.bf16.msra.mxu0 0
    %2564 = vmatprep.subr.bf16.mxu0 0
    %2565 = vmatpush1.bf16.msra.mxu0 0
    %2566 = vmatprep.subr.bf16.mxu0 0
    %2567 = vmatpush1.bf16.msra.mxu0 0
    %2568 = vmatprep.subr.bf16.mxu0 0
    %2569 = vmatpush1.bf16.msra.mxu0 0
    %2570 = vmatprep.subr.bf16.mxu0 0
    %2571 = vmatpush1.bf16.msra.mxu0 0
    %2572 = vmatprep.subr.bf16.mxu0 0
    %2573 = vmatpush1.bf16.msra.mxu0 0
    %2574 = vmatprep.subr.bf16.mxu0 0
    %2575 = vmatpush1.bf16.msra.mxu0 0
    %2576 = vmatprep.subr.bf16.mxu0 0
    %2577 = vmatpush1.bf16.msra.mxu0 0
    %2578 = vmatprep.subr.bf16.mxu0 0
    %2579 = vmatpush1.bf16.msra.mxu0 0
    %2580 = vmatprep.subr.bf16.mxu0 0
    %2581 = vmatpush1.bf16.msra.mxu0 0
    %2582 = vmatprep.subr.bf16.mxu0 0
    %2583 = vmatpush1.bf16.msra.mxu0 0
    %2584 = vmatprep.subr.bf16.mxu0 0
    %2585 = vmatpush1.bf16.msra.mxu0 0
    %2586 = vmatprep.subr.bf16.mxu0 0
    %2587 = vmatpush1.bf16.msra.mxu0 0
    %2588 = vmatprep.subr.bf16.mxu0 0
    %2589 = vmatpush1.bf16.msra.mxu0 0
    %2590 = vmatprep.mubr.bf16.mxu0 0
    %2591 = vmatmul.mubr.bf16.gmra.mrb[0].mxu0 %v2556
    %v2592 = vpop.f32.mrb[0].mxu0
    %v2593 = vadd.f32 %v2542, %v2592
    %v2594 = vpop.f32.mrb[0].mxu0
    %v2595 = vpop.f32.mrb[0].mxu0
    %v2596 = vadd.f32 %v2542, %v2595
    %v2597 = vpop.f32.mrb[0].mxu0
    %2598 = vdwg.mxu0
    %v2599 = vmax.f32 %v2593, 0.0
    %v2600 = vmax.f32 %v2596, 0.0
    %v2601 = vpack.c.bf16 %v2600, %v2599
    %v2602 = vlaneseq
    %v2603 = vshrl.u32 %v2602, 7
    %v2604 = vsub.s32 3, %v2603
    %v2605 = vrot.slane %v1414, %v2604
    %v2614 = vunpack.c.l.b16 %v1405
    %v2615 = vunpack.c.l.b16 %v1406
    %v2616 = vunpack.c.l.b16 %v1407
    %v2617 = vunpack.c.l.b16 %v1408
    %v2618 = vunpack.c.l.b16 %v1409
    %v2619 = vunpack.c.l.b16 %v1410
    %v2620 = vunpack.c.l.b16 %v1411
    %v2621 = vunpack.c.l.b16 %v1412
    %v2622 = vpack.c.b16 %v2615, %v2614
    %v2623 = vpack.c.b16 %v2617, %v2616
    %v2624 = vpack.c.b16 %v2619, %v2618
    %v2625 = vpack.c.b16 %v2621, %v2620
    %v2631 = vsel %vm1290, %v2601, 0
    %2633 = vmatprep.subr.bf16.mxu0 0
    %2634 = vmatpush1.bf16.msra.mxu0 %v2622
    %2635 = vmatprep.subr.bf16.mxu0 0
    %2636 = vmatpush1.bf16.msra.mxu0 %v2623
    %2637 = vmatprep.subr.bf16.mxu0 0
    %2638 = vmatpush1.bf16.msra.mxu0 %v2624
    %2639 = vmatprep.subr.bf16.mxu0 0
    %2640 = vmatpush1.bf16.msra.mxu0 %v2625
    %2641 = vmatprep.subr.bf16.mxu0 0
    %2642 = vmatpush1.bf16.msra.mxu0 0
    %2643 = vmatprep.subr.bf16.mxu0 0
    %2644 = vmatpush1.bf16.msra.mxu0 0
    %2645 = vmatprep.subr.bf16.mxu0 0
    %2646 = vmatpush1.bf16.msra.mxu0 0
    %2647 = vmatprep.subr.bf16.mxu0 0
    %2648 = vmatpush1.bf16.msra.mxu0 0
    %2649 = vmatprep.subr.bf16.mxu0 0
    %2650 = vmatpush1.bf16.msra.mxu0 0
    %2651 = vmatprep.subr.bf16.mxu0 0
    %2652 = vmatpush1.bf16.msra.mxu0 0
    %2653 = vmatprep.subr.bf16.mxu0 0
    %2654 = vmatpush1.bf16.msra.mxu0 0
    %2655 = vmatprep.subr.bf16.mxu0 0
    %2656 = vmatpush1.bf16.msra.mxu0 0
    %2657 = vmatprep.subr.bf16.mxu0 0
    %2658 = vmatpush1.bf16.msra.mxu0 0
    %2659 = vmatprep.subr.bf16.mxu0 0
    %2660 = vmatpush1.bf16.msra.mxu0 0
    %2661 = vmatprep.subr.bf16.mxu0 0
    %2662 = vmatpush1.bf16.msra.mxu0 0
    %2663 = vmatprep.subr.bf16.mxu0 0
    %2664 = vmatpush1.bf16.msra.mxu0 0
    %2665 = vmatprep.mubr.bf16.mxu0 0
    %2666 = vmatmul.mubr.bf16.gmra.mrb[0].mxu0 %v2631
    %v2667 = vpop.f32.mrb[0].mxu0
    %v2668 = vadd.f32 %v2605, %v2667
    %v2669 = vpop.f32.mrb[0].mxu0
    %v2670 = vpop.f32.mrb[0].mxu0
    %v2671 = vadd.f32 %v2605, %v2670
    %v2672 = vpop.f32.mrb[0].mxu0
    %2673 = vdwg.mxu0
    %v2674 = vadd.f32 %v2536, %v2668
    %v2675 = vadd.f32 %v2537, %v2671
    %v2676 = vsel %vm85, %v2674, 0.0
    %2677 = vadd.xlane.f32.xlu0 %v2676
    %v2678 = vpop.xlane.xlu0 %2677
    %v2679 = vsel %vm85, %v2675, 0.0
    %2680 = vadd.xlane.f32.xlu0 %v2679
    %v2681 = vpop.xlane.xlu0 %2680
    %v2682 = vmul.f32 %v2678, %v1150
    %v2683 = vmul.f32 %v2681, %v1150
    %v2684 = vsub.f32 %v2674, %v2682
    %v2685 = vsub.f32 %v2675, %v2683
    %v2686 = vmul.f32 %v2684, %v2684
    %v2687 = vmul.f32 %v2685, %v2685
    %v2688 = vsel %vm85, %v2686, 0.0
    %2689 = vadd.xlane.f32.xlu0 %v2688
    %v2690 = vpop.xlane.xlu0 %2689
    %v2691 = vsel %vm85, %v2687, 0.0
    %2692 = vadd.xlane.f32.xlu0 %v2691
    %v2693 = vpop.xlane.xlu0 %2692
    %v2694 = vmul.f32 %v2690, %v1163
    %v2695 = vmul.f32 %v2693, %v1163
    %v2696 = vrsqrt.pop %v2694
    %v2697 = vmul.f32 %v2694, %v2696
    %vm2698 = vcmp.eq.f32.partialorder %v2694, inf
    %v2699 = vsel %vm2698, %v2694, %v2697
    %vm2700 = vcmp.eq.f32.partialorder %v2694, 0.0
    %v2701 = vand.u32 %v2694, 2147483648
    %v2702 = vsel %vm2700, %v2701, %v2699
    %v2703 = vrsqrt.pop %v2695
    %v2704 = vmul.f32 %v2695, %v2703
    %vm2705 = vcmp.eq.f32.partialorder %v2695, inf
    %v2706 = vsel %vm2705, %v2695, %v2704
    %vm2707 = vcmp.eq.f32.partialorder %v2695, 0.0
    %v2708 = vand.u32 %v2695, 2147483648
    %v2709 = vsel %vm2707, %v2708, %v2706
    %v2710 = vadd.f32 %v2702, 1e-06
    %v2711 = vadd.f32 %v2709, 1e-06
    %v2712 = vrcp.pop %v2710
    %v2713 = vrcp.pop %v2711
    %v2714 = vmul.f32 %v2684, %v2712
    %v2715 = vmul.f32 %v2685, %v2713
    %v2716 = vlaneseq
    %v2717 = vshrl.u32 %v2716, 7
    %v2718 = vsub.s32 6, %v2717
    %v2719 = vrot.slane %v1414, %v2718
    %v2720 = vmul.f32 %v2719, %v2714
    %v2721 = vmul.f32 %v2719, %v2715
    %v2722 = vlaneseq
    %v2723 = vshrl.u32 %v2722, 7
    %v2724 = vsub.s32 7, %v2723
    %v2725 = vrot.slane %v1414, %v2724
    %v2726 = vadd.f32 %v2720, %v2725
    %v2727 = vadd.f32 %v2721, %v2725
    %v2728 = vld [vmem:[%s6] sm:$0x1]
    %v2729 = vld [vmem:[%s6 + $0x1] sm:$0x1]
    %v2730 = vsel %vm85, %v2726, 0.0
    %2731 = vadd.xlane.f32.xlu0 %v2730
    %v2732 = vpop.xlane.xlu0 %2731
    %v2733 = vsel %vm85, %v2727, 0.0
    %2734 = vadd.xlane.f32.xlu0 %v2733
    %v2735 = vpop.xlane.xlu0 %2734
    %v2736 = vmul.f32 %v2732, %v1150
    %v2737 = vmul.f32 %v2735, %v1150
    %v2738 = vsub.f32 %v2726, %v2736
    %v2739 = vsub.f32 %v2727, %v2737
    %v2740 = vmul.f32 %v2738, %v2738
    %v2741 = vmul.f32 %v2739, %v2739
    %v2742 = vsel %vm85, %v2740, 0.0
    %2743 = vadd.xlane.f32.xlu0 %v2742
    %v2744 = vpop.xlane.xlu0 %2743
    %v2745 = vsel %vm85, %v2741, 0.0
    %2746 = vadd.xlane.f32.xlu0 %v2745
    %v2747 = vpop.xlane.xlu0 %2746
    %v2748 = vmul.f32 %v2744, %v1163
    %v2749 = vmul.f32 %v2747, %v1163
    %v2750 = vrsqrt.pop %v2748
    %v2751 = vmul.f32 %v2748, %v2750
    %vm2752 = vcmp.eq.f32.partialorder %v2748, inf
    %v2753 = vsel %vm2752, %v2748, %v2751
    %vm2754 = vcmp.eq.f32.partialorder %v2748, 0.0
    %v2755 = vand.u32 %v2748, 2147483648
    %v2756 = vsel %vm2754, %v2755, %v2753
    %v2757 = vrsqrt.pop %v2749
    %v2758 = vmul.f32 %v2749, %v2757
    %vm2759 = vcmp.eq.f32.partialorder %v2749, inf
    %v2760 = vsel %vm2759, %v2749, %v2758
    %vm2761 = vcmp.eq.f32.partialorder %v2749, 0.0
    %v2762 = vand.u32 %v2749, 2147483648
    %v2763 = vsel %vm2761, %v2762, %v2760
    %v2764 = vadd.f32 %v2756, 1e-06
    %v2765 = vadd.f32 %v2763, 1e-06
    %v2766 = vrcp.pop %v2764
    %v2767 = vrcp.pop %v2765
    %v2768 = vmul.f32 %v2738, %v2766
    %v2769 = vmul.f32 %v2739, %v2767
    %v2770 = vlaneseq
    %v2771 = vshrl.u32 %v2770, 7
    %v2772 = vsub.s32 0, %v2771
    %v2773 = vrot.slane %v2728, %v2772
    %v2774 = vmul.f32 %v2773, %v2768
    %v2775 = vmul.f32 %v2773, %v2769
    %v2776 = vlaneseq
    %v2777 = vshrl.u32 %v2776, 7
    %v2778 = vsub.s32 0, %v2777
    %v2779 = vrot.slane %v2729, %v2778
    %v2780 = vadd.f32 %v2774, %v2779
    %v2781 = vadd.f32 %v2775, %v2779
    %2782 = vst.msk [vmem:[#allocation5] sm:$0xff] %vm85, %v2780
    %2783 = vst.msk [vmem:[#allocation5 + $0x8] sm:$0xff] %vm85, %v2781
    %2785 = vrot.lane.b32.xlu0 %v1065, 32
    %v2786 = vpop.permute.xlu0 %2785
    %2789 = vrot.lane.b32.xlu0 %v1934, 64
    %v2790 = vpop.permute.xlu0 %2789
    %2793 = vrot.lane.b32.xlu0 %v2407, 96
    %v2794 = vpop.permute.xlu0 %2793
    %v2796 = vsel %vm85, %v592, %v2786
    %v2797 = vsel %vm1290, %v2796, %v2790
    %vm2798 = vcmask 785408
    %v2799 = vsel %vm2798, %v2797, %v2794
    %2800 = vst [vmem:[#allocation6] sm:$0xff] %v2799
    // Predicated region
    $region34: #{tpu_custom_call.1} parent=1 // pred_check
      _
    $region35: #{tpu_custom_call.1} parent=1 // pred_check_branch
      %2802 = sbr.rel (0) target = $region37
    $region36: #{tpu_custom_call.1} parent=1 // pred_region
      %s2804 = ssub.s32 256, 256
      %2805 = vsyncadd [#allocation4], %s2804
      %s2806 = sshll.u32 [#allocation5], 4
      %s2807 = int_to_ptr.vmem [resolvable:$true] %s2806
      %2812 = dma.vmem_to_hbm [thread:$0]  %s2807, 256, %s7, [#allocation4], 128, 128, 8
    $region37: #{tpu_custom_call.1} parent=1 // pred_fallthru
      _
    // Predicated region
    $region38: #{tpu_custom_call.1} parent=1 // pred_check
      _
    $region39: #{tpu_custom_call.1} parent=1 // pred_check_branch
      %2814 = sbr.rel (0) target = $region41
    $region40: #{tpu_custom_call.1} parent=1 // pred_region
      %s2816 = ssub.s32 128, 128
      %2817 = vsyncadd [#allocation7], %s2816
      %s2819 = sshll.u32 [#allocation6], 4
      %s2820 = int_to_ptr.vmem [resolvable:$true] %s2819
      %2822 = dma.vmem_to_hbm [thread:$0]  %s2820, 128, %s8, [#allocation7]
    $region41: #{tpu_custom_call.1} parent=1 // pred_fallthru
      _
    // Predicated region
    $region42: #{tpu_custom_call.1} parent=1 // pred_check
      _
    $region43: #{tpu_custom_call.1} parent=1 // pred_check_branch
      %2824 = sbr.rel (0) target = $region45
    $region44: #{tpu_custom_call.1} parent=1 // pred_region
      %2825 = dma.done [#allocation4], 256
    $region45: #{tpu_custom_call.1} parent=1 // pred_fallthru
      _
    // Predicated region
    $region46: #{tpu_custom_call.1} parent=1 // pred_check
      _
    $region47: #{tpu_custom_call.1} parent=1 // pred_check_branch
      %2827 = sbr.rel (0) target = $region49
    $region48: #{tpu_custom_call.1} parent=1 // pred_region
      %2828 = dma.done [#allocation7], 128
    $region49: #{tpu_custom_call.1} parent=1 // pred_fallthru
      _
    %2829 = vsyncpa [#allocation3], 1
    %2830 = vsyncpa [#allocation4], 1
    %2831 = vsyncpa [#allocation7], 1

</llo_original>
